<compile_context>
chip_gen: v6e
topology: v6e:2x2x1
jax: 0.10.0
libtpu: 0.0.40
codegen_flags: <defaults>
</compile_context>

<pallas_src>
from functools import lru_cache

import numpy as np
import jax
import jax.numpy as jnp
from jax.experimental import pallas as pl
from jax.experimental.pallas import tpu as pltpu

_FC_HIDDEN = 128  # the torch module hard-codes Linear(flat, 128) / Linear(128, nc)


# -----------------------------------------------------------------------------
# One-off probe: resolve pltpu.roll's sign convention at build time (cached),
# so the main kernel issues exactly one roll per shift (no runtime hedge).
# -----------------------------------------------------------------------------
@lru_cache(maxsize=None)
def _roll_is_jnp_convention():
    """True iff pltpu.roll(x, s, axis)[j] == x[(j - s) % n] (jnp.roll semantics)."""
    def probe(o_ref):
        o_ref[...] = pltpu.roll(
            jax.lax.broadcasted_iota(jnp.int32, (1, 256), 1), 1, axis=1)

    try:
        with jax.ensure_compile_time_eval():   # safe even if an outer trace is active
            out = pl.pallas_call(
                probe,
                out_shape=jax.ShapeDtypeStruct((1, 256), jnp.int32),
                out_specs=pl.BlockSpec(memory_space=pltpu.MemorySpace.VMEM),
            )()
            out = np.asarray(jax.block_until_ready(out))
        return bool(out[0, 1] == 0)            # jnp.roll(iota, 1)[1] == 0
    except Exception:                          # conservative default (documented jnp-like)
        return True


def _tree_sum(xs):
    """Pairwise (log-depth) sum of a list of arrays."""
    xs = list(xs)
    while len(xs) > 1:
        nxt = [xs[i] + xs[i + 1] for i in range(0, len(xs) - 1, 2)]
        if len(xs) % 2:
            nxt.append(xs[-1])
        xs = nxt
    return xs[0]


# -----------------------------------------------------------------------------
# Tiny int32 pool-gather index rows (replace the old dense selection matrices).
# rt[dst] = source lane of the pooled value, or -1 for ghost/padding columns.
# -----------------------------------------------------------------------------
@lru_cache(maxsize=None)
def _pool_index_pack(N, H, W):
    def rt_pool(Hs, Ws):
        Hp, Wp = Hs + 2, Ws + 2
        Ho, Wo = Hs // 2, Ws // 2
        Hq, Wq = Ho + 2, Wo + 2
        rt = np.full((N * Hq * Wq,), -1, np.int32)
        for n in range(N):
            for ho in range(Ho):
                for wo in range(Wo):
                    src = n * Hp * Wp + (2 * ho + 1) * Wp + (2 * wo + 1)
                    dst = n * Hq * Wq + (ho + 1) * Wq + (wo + 1)
                    rt[dst] = src
        return rt

    def rt_final(Hs, Ws):
        Hp, Wp = Hs + 2, Ws + 2
        Ho, Wo = Hs // 2, Ws // 2
        rt = np.full((Ho * Wo * N,), -1, np.int32)
        for n in range(N):
            for ho in range(Ho):
                for wo in range(Wo):
                    s = ho * Wo + wo
                    rt[s * N + n] = n * Hp * Wp + (2 * ho + 1) * Wp + (2 * wo + 1)
        return rt

    rt1 = rt_pool(H, W)
    rt2 = rt_pool(H // 2, W // 2)
    rt3 = rt_final(H // 4, W // 4)
    L = 128 * (-(-max(rt1.size, rt2.size, rt3.size) // 128))
    pack = np.full((3, L), -1, np.int32)
    pack[0, :rt1.size] = rt1
    pack[1, :rt2.size] = rt2
    pack[2, :rt3.size] = rt3
    return pack


# -----------------------------------------------------------------------------
# Fused Pallas kernel: conv3x3+ReLU+maxpool (x3) -> fc1 -> ReLU -> fc2.
# Activations are (channels, pixels) with channels on sublanes and the zero-padded
# ("ghost cell") flattened (n, h, w) pixel index on lanes.
# -----------------------------------------------------------------------------
def _make_fused_kernel(N, H, W, channels, seg, roll_is_jnp):
    C1, C2, C3 = channels
    Wp1, P1 = W + 2, N * (H + 2) * (W + 2)
    Wp2, P2 = W // 2 + 2, N * (H // 2 + 2) * (W // 2 + 2)
    Wp3, P3 = W // 4 + 2, N * (H // 4 + 2) * (W // 4 + 2)
    n_sp = (H // 8) * (W // 8)            # spatial positions after the third pool

    def sh(s, P):
        # We want view[p] = x[p + s].  Under jnp.roll semantics (result[j] =
        # x[(j - shift) % P]) that is shift = -s; under the opposite convention it
        # is shift = +s.  Resolved once, at build time, by the host-side probe.
        return (-s) % P if roll_is_jnp else s % P

    def kernel(x_ref, wpack_ref, idx_ref, fw1_ref, fw2_ref, o_ref):

        def conv_relu_poolfold(x, wa, cin, Wp, P):
            # x:  (cin, P) activation in zero-padded pixel coords (ghost cells == 0).
            # wa: (cout, 9*cin + 1) weights, taps tap-major / cin inner + bias column.
            # Returns (cout, P): column p holds the 2x2-max whose pool window has its
            # top-left pixel at p (only ever read at valid window corners).
            contribs = []
            for t in range(9):                      # in-kernel im2col: 8 lane shifts
                ky, kx = divmod(t, 3)
                s = (ky - 1) * Wp + (kx - 1)
                xt = x if s == 0 else pltpu.roll(x, sh(s, P), axis=1)
                wt = wa[:, t * cin:(t + 1) * cin]   # (cout, cin)
                if cin == 1:
                    contribs.append(wt * xt)        # rank-1 tap: VPU broadcast-mult
                else:
                    contribs.append(jnp.dot(wt, xt,
                                            preferred_element_type=jnp.float32))
            y = _tree_sum(contribs) + wa[:, 9 * cin:9 * cin + 1]   # depth-4 sum + bias
            y = jnp.maximum(y, 0.0)                                 # ReLU
            ym = y                                   # fold the 2x2 window onto its
            for d in (1, Wp, Wp + 1):                # top-left pixel (3 single rolls)
                ym = jnp.maximum(ym, pltpu.roll(y, sh(d, P), axis=1))
            return ym

        def pool_gather(ym, rt_row, P_src, P_dst):
            # Gather the pool-window corners AND re-embed them into the next layer's
            # zero-padded pixel coords with one MXU matmul against a 0/1 selector
            # regenerated in VMEM from an iota compare (zero HBM traffic).
            # rt_row: (1, P_dst) int32, rt_row[c] = source lane (or -1 => zero column).
            rows = jax.lax.broadcasted_iota(jnp.int32, (P_src, P_dst), 0)
            sel = jnp.where(rows == rt_row, 1.0, 0.0)
            return jnp.dot(ym, sel, preferred_element_type=jnp.float32)

        # Packed conv parameters: one 128-lane-aligned segment per layer.
        wa1 = wpack_ref[0:C1, 0:9 * 1 + 1]
        wa2 = wpack_ref[0:C2, seg:seg + 9 * C1 + 1]
        wa3 = wpack_ref[0:C3, 2 * seg:2 * seg + 9 * C2 + 1]

        # --- three conv(3x3)+ReLU+maxpool(2x2) blocks, fully VMEM resident -------
        ym1 = conv_relu_poolfold(x_ref[...], wa1, 1, Wp1, P1)        # (C1, P1)
        x2 = pool_gather(ym1, idx_ref[0:1, 0:P2], P1, P2)            # (C1, P2)
        ym2 = conv_relu_poolfold(x2, wa2, C1, Wp2, P2)               # (C2, P2)
        x3 = pool_gather(ym2, idx_ref[1:2, 0:P3], P2, P3)            # (C2, P3)
        ym3 = conv_relu_poolfold(x3, wa3, C2, Wp3, P3)               # (C3, P3)

        # --- pool3 + NCHW flatten + fc1 + ReLU + fc2 ------------------------------
        # One matmul gathers all n_sp*N pooled pixels; the NCHW flatten is folded
        # into host-side permuted fc1 weights, so fc1 is n_sp independent partial
        # matmuls that are tree-summed.  Dropout(p=0.5) is identity at inference.
        fa = pool_gather(ym3, idx_ref[2:3, 0:n_sp * N], P3, n_sp * N)  # (C3, n_sp*N)
        parts = []
        for s in range(n_sp):
            parts.append(jnp.dot(fw1_ref[:, s * C3:(s + 1) * C3],
                                 fa[:, s * N:(s + 1) * N],
                                 preferred_element_type=jnp.float32))
        h = jnp.maximum(_tree_sum(parts) + fw1_ref[:, n_sp * C3:n_sp * C3 + 1], 0.0)
        o_ref[...] = (jnp.dot(fw2_ref[:, 0:_FC_HIDDEN], h,
                              preferred_element_type=jnp.float32)
                      + fw2_ref[:, _FC_HIDDEN:_FC_HIDDEN + 1])        # (num_classes, N)

    return kernel, (P1, P2, P3, n_sp)


# -----------------------------------------------------------------------------
# Forward wrapper
# -----------------------------------------------------------------------------
def membership_classifier_forward(params, x_nchw):
    """x_nchw: (N, 1, H, W) float32 (PyTorch layout).  Returns (N, num_classes)."""
    N, cin, H, W = x_nchw.shape
    assert cin == 1, "module expects a single input channel"
    assert H % 8 == 0 and W % 8 == 0, "three 2x2 pools require spatial % 8 == 0"

    C1 = params["conv1_b"].shape[0]
    C2 = params["conv2_b"].shape[0]
    C3 = params["conv3_b"].shape[0]
    num_classes = params["fc2_b"].shape[0]
    n_sp = (H // 8) * (W // 8)
    assert params["fc1_w"].shape[0] == C3 * n_sp, "fc1 in_features mismatch"

    # --- host-side parameter packing: 5 HBM->VMEM DMAs instead of 14 -------------
    def conv_aug(w, b):        # (3,3,cin,cout) -> (cout, 9*cin tap-major + 1 bias col)
        co, ci = w.shape[3], w.shape[2]
        wt = jnp.transpose(w, (3, 0, 1, 2)).reshape(co, 9 * ci)
        return jnp.concatenate([wt, b.reshape(co, 1)], axis=1)

    w1a = conv_aug(params["conv1_w"], params["conv1_b"])              # (C1, 10)
    w2a = conv_aug(params["conv2_w"], params["conv2_b"])              # (C2, 9*C1+1)
    w3a = conv_aug(params["conv3_w"], params["conv3_b"])              # (C3, 9*C2+1)
    seg = 128 * (-(-max(w1a.shape[1], w2a.shape[1], w3a.shape[1]) // 128))
    cmax = max(C1, C2, C3)
    wpack = jnp.zeros((cmax, 3 * seg), jnp.float32)
    wpack = jax.lax.dynamic_update_slice(wpack, w1a, (0, 0))
    wpack = jax.lax.dynamic_update_slice(wpack, w2a, (0, seg))
    wpack = jax.lax.dynamic_update_slice(wpack, w3a, (0, 2 * seg))

    # fc1 rows are (c, h, w)-ordered per sample (torch x.view on NCHW); regroup per
    # spatial position s, pre-transpose once, and append the bias as a last column.
    fw1c = jnp.transpose(params["fc1_w"].reshape(C3, n_sp, -1),
                         (1, 0, 2)).reshape(n_sp * C3, -1).T          # (128, n_sp*C3)
    fw1aug = jnp.concatenate([fw1c, params["fc1_b"].reshape(-1, 1)], axis=1)
    fw2aug = jnp.concatenate([params["fc2_w"].T,
                              params["fc2_b"].reshape(-1, 1)], axis=1)  # (nc, 129)

    idx_pack = jnp.asarray(_pool_index_pack(N, H, W))                 # (3, L) int32

    kernel, (P1, _, _, _) = _make_fused_kernel(
        N, H, W, (C1, C2, C3), seg, _roll_is_jnp_convention())

    # Zero-padded, (n, h, w)-flattened input: (1, N*(H+2)*(W+2)) (~a KB of prep).
    xpad = jnp.pad(x_nchw[:, 0].astype(jnp.float32), ((0, 0), (1, 1), (1, 1)))
    x_flat = xpad.reshape(1, P1)

    # NOTE(v7x scale-up): at larger batch/spatial, (a) the regenerated selector
    # (P_l x P_{l+1}) grows ~quadratically -- switch to a per-sample selector or a
    # strided-scratch gather before scaling, and (b) add a leading batch grid axis
    # with dimension_semantics=("parallel",) so both v7x TensorCores are used.  At
    # these toy sizes a single grid-less call is optimal.
    out_t = pl.pallas_call(
        kernel,
        out_shape=jax.ShapeDtypeStruct((num_classes, N), jnp.float32),
        in_specs=[pl.BlockSpec(memory_space=pltpu.MemorySpace.VMEM)] * 5,
        out_specs=pl.BlockSpec(memory_space=pltpu.MemorySpace.VMEM),
        compiler_params=pltpu.CompilerParams(
            vmem_limit_bytes=32 * 1024 * 1024),   # explicit budget (v7x: 64 MiB phys)
    )(x_flat, wpack, idx_pack, fw1aug, fw2aug)
    # Kernel emits (num_classes, N); transposing a 2x2-ish array here is negligible.
    return out_t.T


# -----------------------------------------------------------------------------
# Parameters (deterministic, PyTorch-default-like uniform init)
# -----------------------------------------------------------------------------
def init_params(key, hidden_channels, num_classes, spatial, in_channels=1):
    keys = jax.random.split(key, 10)

    def u(k, shape, fan_in):
        bound = 1.0 / float(np.sqrt(fan_in))
        return jax.random.uniform(k, shape, jnp.float32, -bound, bound)

    params = {}
    cins = [in_channels] + list(hidden_channels[:-1])
    for i, (ci, co) in enumerate(zip(cins, hidden_channels)):
        fan_in = ci * 9
        params[f"conv{i+1}_w"] = u(keys[2 * i], (3, 3, ci, co), fan_in)
        params[f"conv{i+1}_b"] = u(keys[2 * i + 1], (co,), fan_in)

    s_out = spatial // 8                          # three 2x pools
    flat = hidden_channels[-1] * s_out * s_out    # lazy fc1 in_features
    params["fc1_w"] = u(keys[6], (flat, _FC_HIDDEN), flat)
    params["fc1_b"] = u(keys[7], (_FC_HIDDEN,), flat)
    params["fc2_w"] = u(keys[8], (_FC_HIDDEN, num_classes), _FC_HIDDEN)
    params["fc2_b"] = u(keys[9], (num_classes,), _FC_HIDDEN)
    return params


# -----------------------------------------------------------------------------
# Pure-JAX reference (numerical self-check only; not part of the kernel)
# -----------------------------------------------------------------------------
def _reference_forward(params, x_nchw):
    hi = jax.lax.Precision.HIGHEST

    def block(x, w, b):
        dn = jax.lax.conv_dimension_numbers(x.shape, w.shape, ("NCHW", "HWIO", "NCHW"))
        y = jax.lax.conv_general_dilated(x, w, (1, 1), "SAME",
                                         dimension_numbers=dn, precision=hi)
        y = jax.nn.relu(y + b.reshape(1, -1, 1, 1))
        return jax.lax.reduce_window(y, -jnp.inf, jax.lax.max,
                                     (1, 1, 2, 2), (1, 1, 2, 2), "VALID")

    x = block(x_nchw, params["conv1_w"], params["conv1_b"])
    x = block(x, params["conv2_w"], params["conv2_b"])
    x = block(x, params["conv3_w"], params["conv3_b"])
    feats = x.reshape(x.shape[0], -1)             # NCHW flatten == (C, H, W) order
    h = jax.nn.relu(jnp.dot(feats, params["fc1_w"], precision=hi) + params["fc1_b"])
    return jnp.dot(h, params["fc2_w"], precision=hi) + params["fc2_b"]


if __name__ == "__main__":
    num_classes = 2
    hidden_channels = (4, 8, 16)
    batch, spatial = 2, 16

    # Resolve the pltpu.roll convention once, outside any jit trace (cached).
    _roll_is_jnp_convention()

    key = jax.random.PRNGKey(0)
    kp, kx = jax.random.split(key)
    params = init_params(kp, hidden_channels, num_classes, spatial)
    x = jax.random.normal(kx, (batch, 1, spatial, spatial), jnp.float32)

    logits = jax.jit(membership_classifier_forward)(params, x)
    jax.block_until_ready(logits)

    assert logits.shape == (batch, num_classes)
    assert bool(jnp.all(jnp.isfinite(logits)))

    ref = _reference_forward(params, x)
    np.testing.assert_allclose(np.asarray(logits), np.asarray(ref),
                               rtol=5e-2, atol=5e-2)
    print("KERNEL_OK")
</pallas_src>

<mosaic_0001>
module attributes {stable_mosaic.version = 11 : i64} {
  func.func @kernel(%arg0: memref<1x648xf32, #tpu.memory_space<vmem>>, %arg1: memref<16x384xf32, #tpu.memory_space<vmem>>, %arg2: memref<3x256xi32, #tpu.memory_space<vmem>>, %arg3: memref<128x65xf32, #tpu.memory_space<vmem>>, %arg4: memref<2x129xf32, #tpu.memory_space<vmem>>, %arg5: memref<2x2xf32, #tpu.memory_space<vmem>>) attributes {dimension_semantics = [], scalar_prefetch = 0 : i64, scratch_operands = 0 : i64, tpu.core_type = #tpu.core_type<tc>} {
    %c0 = arith.constant 0 : index
    %c0_0 = arith.constant 0 : index
    %0 = vector.load %arg1[%c0, %c0_0] : memref<16x384xf32, #tpu.memory_space<vmem>>, vector<4x10xf32>
    %c0_1 = arith.constant 0 : index
    %c128 = arith.constant 128 : index
    %1 = vector.load %arg1[%c0_1, %c128] : memref<16x384xf32, #tpu.memory_space<vmem>>, vector<8x37xf32>
    %c0_2 = arith.constant 0 : index
    %c256 = arith.constant 256 : index
    %2 = vector.load %arg1[%c0_2, %c256] : memref<16x384xf32, #tpu.memory_space<vmem>>, vector<16x73xf32>
    %c0_3 = arith.constant 0 : index
    %c0_4 = arith.constant 0 : index
    %3 = vector.load %arg0[%c0_3, %c0_4] : memref<1x648xf32, #tpu.memory_space<vmem>>, vector<1x648xf32>
    %c19_i32 = arith.constant 19 : i32
    %4 = tpu.dynamic_rotate %3 by %c19_i32 dim 1 : vector<1x648xf32>, i32 -> vector<1x648xf32>
    %5 = vector.extract_strided_slice %0 {offsets = [0, 0], sizes = [4, 1], strides = [1, 1]} : vector<4x10xf32> to vector<4x1xf32>
    %6 = vector.broadcast %5 : vector<4x1xf32> to vector<4x648xf32>
    %7 = vector.broadcast %4 : vector<1x648xf32> to vector<4x648xf32>
    %8 = arith.mulf %6, %7 : vector<4x648xf32>
    %c18_i32 = arith.constant 18 : i32
    %9 = tpu.dynamic_rotate %3 by %c18_i32 dim 1 : vector<1x648xf32>, i32 -> vector<1x648xf32>
    %10 = vector.extract_strided_slice %0 {offsets = [0, 1], sizes = [4, 1], strides = [1, 1]} : vector<4x10xf32> to vector<4x1xf32>
    %11 = vector.broadcast %10 : vector<4x1xf32> to vector<4x648xf32>
    %12 = vector.broadcast %9 : vector<1x648xf32> to vector<4x648xf32>
    %13 = arith.mulf %11, %12 : vector<4x648xf32>
    %c17_i32 = arith.constant 17 : i32
    %14 = tpu.dynamic_rotate %3 by %c17_i32 dim 1 : vector<1x648xf32>, i32 -> vector<1x648xf32>
    %15 = vector.extract_strided_slice %0 {offsets = [0, 2], sizes = [4, 1], strides = [1, 1]} : vector<4x10xf32> to vector<4x1xf32>
    %16 = vector.broadcast %15 : vector<4x1xf32> to vector<4x648xf32>
    %17 = vector.broadcast %14 : vector<1x648xf32> to vector<4x648xf32>
    %18 = arith.mulf %16, %17 : vector<4x648xf32>
    %c1_i32 = arith.constant 1 : i32
    %19 = tpu.dynamic_rotate %3 by %c1_i32 dim 1 : vector<1x648xf32>, i32 -> vector<1x648xf32>
    %20 = vector.extract_strided_slice %0 {offsets = [0, 3], sizes = [4, 1], strides = [1, 1]} : vector<4x10xf32> to vector<4x1xf32>
    %21 = vector.broadcast %20 : vector<4x1xf32> to vector<4x648xf32>
    %22 = vector.broadcast %19 : vector<1x648xf32> to vector<4x648xf32>
    %23 = arith.mulf %21, %22 : vector<4x648xf32>
    %24 = vector.extract_strided_slice %0 {offsets = [0, 4], sizes = [4, 1], strides = [1, 1]} : vector<4x10xf32> to vector<4x1xf32>
    %25 = vector.broadcast %24 : vector<4x1xf32> to vector<4x648xf32>
    %26 = vector.broadcast %3 : vector<1x648xf32> to vector<4x648xf32>
    %27 = arith.mulf %25, %26 : vector<4x648xf32>
    %c647_i32 = arith.constant 647 : i32
    %28 = tpu.dynamic_rotate %3 by %c647_i32 dim 1 : vector<1x648xf32>, i32 -> vector<1x648xf32>
    %29 = vector.extract_strided_slice %0 {offsets = [0, 5], sizes = [4, 1], strides = [1, 1]} : vector<4x10xf32> to vector<4x1xf32>
    %30 = vector.broadcast %29 : vector<4x1xf32> to vector<4x648xf32>
    %31 = vector.broadcast %28 : vector<1x648xf32> to vector<4x648xf32>
    %32 = arith.mulf %30, %31 : vector<4x648xf32>
    %c631_i32 = arith.constant 631 : i32
    %33 = tpu.dynamic_rotate %3 by %c631_i32 dim 1 : vector<1x648xf32>, i32 -> vector<1x648xf32>
    %34 = vector.extract_strided_slice %0 {offsets = [0, 6], sizes = [4, 1], strides = [1, 1]} : vector<4x10xf32> to vector<4x1xf32>
    %35 = vector.broadcast %34 : vector<4x1xf32> to vector<4x648xf32>
    %36 = vector.broadcast %33 : vector<1x648xf32> to vector<4x648xf32>
    %37 = arith.mulf %35, %36 : vector<4x648xf32>
    %c630_i32 = arith.constant 630 : i32
    %38 = tpu.dynamic_rotate %3 by %c630_i32 dim 1 : vector<1x648xf32>, i32 -> vector<1x648xf32>
    %39 = vector.extract_strided_slice %0 {offsets = [0, 7], sizes = [4, 1], strides = [1, 1]} : vector<4x10xf32> to vector<4x1xf32>
    %40 = vector.broadcast %39 : vector<4x1xf32> to vector<4x648xf32>
    %41 = vector.broadcast %38 : vector<1x648xf32> to vector<4x648xf32>
    %42 = arith.mulf %40, %41 : vector<4x648xf32>
    %c629_i32 = arith.constant 629 : i32
    %43 = tpu.dynamic_rotate %3 by %c629_i32 dim 1 : vector<1x648xf32>, i32 -> vector<1x648xf32>
    %44 = vector.extract_strided_slice %0 {offsets = [0, 8], sizes = [4, 1], strides = [1, 1]} : vector<4x10xf32> to vector<4x1xf32>
    %45 = vector.broadcast %44 : vector<4x1xf32> to vector<4x648xf32>
    %46 = vector.broadcast %43 : vector<1x648xf32> to vector<4x648xf32>
    %47 = arith.mulf %45, %46 : vector<4x648xf32>
    %48 = arith.addf %8, %13 : vector<4x648xf32>
    %49 = arith.addf %18, %23 : vector<4x648xf32>
    %50 = arith.addf %27, %32 : vector<4x648xf32>
    %51 = arith.addf %37, %42 : vector<4x648xf32>
    %52 = arith.addf %48, %49 : vector<4x648xf32>
    %53 = arith.addf %50, %51 : vector<4x648xf32>
    %54 = arith.addf %52, %53 : vector<4x648xf32>
    %55 = arith.addf %54, %47 : vector<4x648xf32>
    %56 = vector.extract_strided_slice %0 {offsets = [0, 9], sizes = [4, 1], strides = [1, 1]} : vector<4x10xf32> to vector<4x1xf32>
    %57 = vector.broadcast %56 : vector<4x1xf32> to vector<4x648xf32>
    %58 = arith.addf %55, %57 : vector<4x648xf32>
    %cst = arith.constant 0.000000e+00 : f32
    %59 = vector.broadcast %cst : f32 to vector<4x648xf32>
    %60 = arith.maximumf %58, %59 : vector<4x648xf32>
    %c647_i32_5 = arith.constant 647 : i32
    %61 = tpu.dynamic_rotate %60 by %c647_i32_5 dim 1 : vector<4x648xf32>, i32 -> vector<4x648xf32>
    %62 = arith.maximumf %60, %61 : vector<4x648xf32>
    %c630_i32_6 = arith.constant 630 : i32
    %63 = tpu.dynamic_rotate %60 by %c630_i32_6 dim 1 : vector<4x648xf32>, i32 -> vector<4x648xf32>
    %64 = arith.maximumf %62, %63 : vector<4x648xf32>
    %c629_i32_7 = arith.constant 629 : i32
    %65 = tpu.dynamic_rotate %60 by %c629_i32_7 dim 1 : vector<4x648xf32>, i32 -> vector<4x648xf32>
    %66 = arith.maximumf %64, %65 : vector<4x648xf32>
    %c0_8 = arith.constant 0 : index
    %c0_9 = arith.constant 0 : index
    %67 = vector.load %arg2[%c0_8, %c0_9] : memref<3x256xi32, #tpu.memory_space<vmem>>, vector<1x200xi32>
    %68 = tpu.iota {dimensions = array<i32: 0>} : vector<648x200xi32>
    %69 = vector.broadcast %67 : vector<1x200xi32> to vector<648x200xi32>
    %70 = arith.cmpi eq, %68, %69 : vector<648x200xi32>
    %cst_10 = arith.constant 1.000000e+00 : f32
    %cst_11 = arith.constant 0.000000e+00 : f32
    %71 = vector.broadcast %cst_10 : f32 to vector<648x200xf32>
    %72 = vector.broadcast %cst_11 : f32 to vector<648x200xf32>
    %73 = arith.select %70, %71, %72 : vector<648x200xi1>, vector<648x200xf32>
    %cst_12 = arith.constant dense<0.000000e+00> : vector<4x200xf32>
    %74 = tpu.matmul %66, %73, %cst_12 {dimension_numbers = #tpu.dot_dimension_numbers<[1], [0], [0], [1], [0, 0, 1, 1], [], []>} : vector<4x648xf32>, vector<648x200xf32>, vector<4x200xf32> -> vector<4x200xf32>
    %c11_i32 = arith.constant 11 : i32
    %75 = tpu.dynamic_rotate %74 by %c11_i32 dim 1 : vector<4x200xf32>, i32 -> vector<4x200xf32>
    %76 = vector.extract_strided_slice %1 {offsets = [0, 0], sizes = [8, 4], strides = [1, 1]} : vector<8x37xf32> to vector<8x4xf32>
    %cst_13 = arith.constant dense<0.000000e+00> : vector<8x200xf32>
    %77 = tpu.matmul %76, %75, %cst_13 {dimension_numbers = #tpu.dot_dimension_numbers<[1], [0], [0], [1], [0, 0, 1, 1], [], []>} : vector<8x4xf32>, vector<4x200xf32>, vector<8x200xf32> -> vector<8x200xf32>
    %c10_i32 = arith.constant 10 : i32
    %78 = tpu.dynamic_rotate %74 by %c10_i32 dim 1 : vector<4x200xf32>, i32 -> vector<4x200xf32>
    %79 = vector.extract_strided_slice %1 {offsets = [0, 4], sizes = [8, 4], strides = [1, 1]} : vector<8x37xf32> to vector<8x4xf32>
    %cst_14 = arith.constant dense<0.000000e+00> : vector<8x200xf32>
    %80 = tpu.matmul %79, %78, %cst_14 {dimension_numbers = #tpu.dot_dimension_numbers<[1], [0], [0], [1], [0, 0, 1, 1], [], []>} : vector<8x4xf32>, vector<4x200xf32>, vector<8x200xf32> -> vector<8x200xf32>
    %c9_i32 = arith.constant 9 : i32
    %81 = tpu.dynamic_rotate %74 by %c9_i32 dim 1 : vector<4x200xf32>, i32 -> vector<4x200xf32>
    %82 = vector.extract_strided_slice %1 {offsets = [0, 8], sizes = [8, 4], strides = [1, 1]} : vector<8x37xf32> to vector<8x4xf32>
    %cst_15 = arith.constant dense<0.000000e+00> : vector<8x200xf32>
    %83 = tpu.matmul %82, %81, %cst_15 {dimension_numbers = #tpu.dot_dimension_numbers<[1], [0], [0], [1], [0, 0, 1, 1], [], []>} : vector<8x4xf32>, vector<4x200xf32>, vector<8x200xf32> -> vector<8x200xf32>
    %c1_i32_16 = arith.constant 1 : i32
    %84 = tpu.dynamic_rotate %74 by %c1_i32_16 dim 1 : vector<4x200xf32>, i32 -> vector<4x200xf32>
    %85 = vector.extract_strided_slice %1 {offsets = [0, 12], sizes = [8, 4], strides = [1, 1]} : vector<8x37xf32> to vector<8x4xf32>
    %cst_17 = arith.constant dense<0.000000e+00> : vector<8x200xf32>
    %86 = tpu.matmul %85, %84, %cst_17 {dimension_numbers = #tpu.dot_dimension_numbers<[1], [0], [0], [1], [0, 0, 1, 1], [], []>} : vector<8x4xf32>, vector<4x200xf32>, vector<8x200xf32> -> vector<8x200xf32>
    %87 = vector.extract_strided_slice %1 {offsets = [0, 16], sizes = [8, 4], strides = [1, 1]} : vector<8x37xf32> to vector<8x4xf32>
    %cst_18 = arith.constant dense<0.000000e+00> : vector<8x200xf32>
    %88 = tpu.matmul %87, %74, %cst_18 {dimension_numbers = #tpu.dot_dimension_numbers<[1], [0], [0], [1], [0, 0, 1, 1], [], []>} : vector<8x4xf32>, vector<4x200xf32>, vector<8x200xf32> -> vector<8x200xf32>
    %c199_i32 = arith.constant 199 : i32
    %89 = tpu.dynamic_rotate %74 by %c199_i32 dim 1 : vector<4x200xf32>, i32 -> vector<4x200xf32>
    %90 = vector.extract_strided_slice %1 {offsets = [0, 20], sizes = [8, 4], strides = [1, 1]} : vector<8x37xf32> to vector<8x4xf32>
    %cst_19 = arith.constant dense<0.000000e+00> : vector<8x200xf32>
    %91 = tpu.matmul %90, %89, %cst_19 {dimension_numbers = #tpu.dot_dimension_numbers<[1], [0], [0], [1], [0, 0, 1, 1], [], []>} : vector<8x4xf32>, vector<4x200xf32>, vector<8x200xf32> -> vector<8x200xf32>
    %c191_i32 = arith.constant 191 : i32
    %92 = tpu.dynamic_rotate %74 by %c191_i32 dim 1 : vector<4x200xf32>, i32 -> vector<4x200xf32>
    %93 = vector.extract_strided_slice %1 {offsets = [0, 24], sizes = [8, 4], strides = [1, 1]} : vector<8x37xf32> to vector<8x4xf32>
    %cst_20 = arith.constant dense<0.000000e+00> : vector<8x200xf32>
    %94 = tpu.matmul %93, %92, %cst_20 {dimension_numbers = #tpu.dot_dimension_numbers<[1], [0], [0], [1], [0, 0, 1, 1], [], []>} : vector<8x4xf32>, vector<4x200xf32>, vector<8x200xf32> -> vector<8x200xf32>
    %c190_i32 = arith.constant 190 : i32
    %95 = tpu.dynamic_rotate %74 by %c190_i32 dim 1 : vector<4x200xf32>, i32 -> vector<4x200xf32>
    %96 = vector.extract_strided_slice %1 {offsets = [0, 28], sizes = [8, 4], strides = [1, 1]} : vector<8x37xf32> to vector<8x4xf32>
    %cst_21 = arith.constant dense<0.000000e+00> : vector<8x200xf32>
    %97 = tpu.matmul %96, %95, %cst_21 {dimension_numbers = #tpu.dot_dimension_numbers<[1], [0], [0], [1], [0, 0, 1, 1], [], []>} : vector<8x4xf32>, vector<4x200xf32>, vector<8x200xf32> -> vector<8x200xf32>
    %c189_i32 = arith.constant 189 : i32
    %98 = tpu.dynamic_rotate %74 by %c189_i32 dim 1 : vector<4x200xf32>, i32 -> vector<4x200xf32>
    %99 = vector.extract_strided_slice %1 {offsets = [0, 32], sizes = [8, 4], strides = [1, 1]} : vector<8x37xf32> to vector<8x4xf32>
    %cst_22 = arith.constant dense<0.000000e+00> : vector<8x200xf32>
    %100 = tpu.matmul %99, %98, %cst_22 {dimension_numbers = #tpu.dot_dimension_numbers<[1], [0], [0], [1], [0, 0, 1, 1], [], []>} : vector<8x4xf32>, vector<4x200xf32>, vector<8x200xf32> -> vector<8x200xf32>
    %101 = arith.addf %77, %80 : vector<8x200xf32>
    %102 = arith.addf %83, %86 : vector<8x200xf32>
    %103 = arith.addf %88, %91 : vector<8x200xf32>
    %104 = arith.addf %94, %97 : vector<8x200xf32>
    %105 = arith.addf %101, %102 : vector<8x200xf32>
    %106 = arith.addf %103, %104 : vector<8x200xf32>
    %107 = arith.addf %105, %106 : vector<8x200xf32>
    %108 = arith.addf %107, %100 : vector<8x200xf32>
    %109 = vector.extract_strided_slice %1 {offsets = [0, 36], sizes = [8, 1], strides = [1, 1]} : vector<8x37xf32> to vector<8x1xf32>
    %110 = vector.broadcast %109 : vector<8x1xf32> to vector<8x200xf32>
    %111 = arith.addf %108, %110 : vector<8x200xf32>
    %cst_23 = arith.constant 0.000000e+00 : f32
    %112 = vector.broadcast %cst_23 : f32 to vector<8x200xf32>
    %113 = arith.maximumf %111, %112 : vector<8x200xf32>
    %c199_i32_24 = arith.constant 199 : i32
    %114 = tpu.dynamic_rotate %113 by %c199_i32_24 dim 1 : vector<8x200xf32>, i32 -> vector<8x200xf32>
    %115 = arith.maximumf %113, %114 : vector<8x200xf32>
    %c190_i32_25 = arith.constant 190 : i32
    %116 = tpu.dynamic_rotate %113 by %c190_i32_25 dim 1 : vector<8x200xf32>, i32 -> vector<8x200xf32>
    %117 = arith.maximumf %115, %116 : vector<8x200xf32>
    %c189_i32_26 = arith.constant 189 : i32
    %118 = tpu.dynamic_rotate %113 by %c189_i32_26 dim 1 : vector<8x200xf32>, i32 -> vector<8x200xf32>
    %119 = arith.maximumf %117, %118 : vector<8x200xf32>
    %c1 = arith.constant 1 : index
    %c0_27 = arith.constant 0 : index
    %120 = vector.load %arg2[%c1, %c0_27] : memref<3x256xi32, #tpu.memory_space<vmem>>, vector<1x72xi32>
    %121 = tpu.iota {dimensions = array<i32: 0>} : vector<200x72xi32>
    %122 = vector.broadcast %120 : vector<1x72xi32> to vector<200x72xi32>
    %123 = arith.cmpi eq, %121, %122 : vector<200x72xi32>
    %cst_28 = arith.constant 1.000000e+00 : f32
    %cst_29 = arith.constant 0.000000e+00 : f32
    %124 = vector.broadcast %cst_28 : f32 to vector<200x72xf32>
    %125 = vector.broadcast %cst_29 : f32 to vector<200x72xf32>
    %126 = arith.select %123, %124, %125 : vector<200x72xi1>, vector<200x72xf32>
    %cst_30 = arith.constant dense<0.000000e+00> : vector<8x72xf32>
    %127 = tpu.matmul %119, %126, %cst_30 {dimension_numbers = #tpu.dot_dimension_numbers<[1], [0], [0], [1], [0, 0, 1, 1], [], []>} : vector<8x200xf32>, vector<200x72xf32>, vector<8x72xf32> -> vector<8x72xf32>
    %c7_i32 = arith.constant 7 : i32
    %128 = tpu.dynamic_rotate %127 by %c7_i32 dim 1 : vector<8x72xf32>, i32 -> vector<8x72xf32>
    %129 = vector.extract_strided_slice %2 {offsets = [0, 0], sizes = [16, 8], strides = [1, 1]} : vector<16x73xf32> to vector<16x8xf32>
    %cst_31 = arith.constant dense<0.000000e+00> : vector<16x72xf32>
    %130 = tpu.matmul %129, %128, %cst_31 {dimension_numbers = #tpu.dot_dimension_numbers<[1], [0], [0], [1], [0, 0, 1, 1], [], []>} : vector<16x8xf32>, vector<8x72xf32>, vector<16x72xf32> -> vector<16x72xf32>
    %c6_i32 = arith.constant 6 : i32
    %131 = tpu.dynamic_rotate %127 by %c6_i32 dim 1 : vector<8x72xf32>, i32 -> vector<8x72xf32>
    %132 = vector.extract_strided_slice %2 {offsets = [0, 8], sizes = [16, 8], strides = [1, 1]} : vector<16x73xf32> to vector<16x8xf32>
    %cst_32 = arith.constant dense<0.000000e+00> : vector<16x72xf32>
    %133 = tpu.matmul %132, %131, %cst_32 {dimension_numbers = #tpu.dot_dimension_numbers<[1], [0], [0], [1], [0, 0, 1, 1], [], []>} : vector<16x8xf32>, vector<8x72xf32>, vector<16x72xf32> -> vector<16x72xf32>
    %c5_i32 = arith.constant 5 : i32
    %134 = tpu.dynamic_rotate %127 by %c5_i32 dim 1 : vector<8x72xf32>, i32 -> vector<8x72xf32>
    %135 = vector.extract_strided_slice %2 {offsets = [0, 16], sizes = [16, 8], strides = [1, 1]} : vector<16x73xf32> to vector<16x8xf32>
    %cst_33 = arith.constant dense<0.000000e+00> : vector<16x72xf32>
    %136 = tpu.matmul %135, %134, %cst_33 {dimension_numbers = #tpu.dot_dimension_numbers<[1], [0], [0], [1], [0, 0, 1, 1], [], []>} : vector<16x8xf32>, vector<8x72xf32>, vector<16x72xf32> -> vector<16x72xf32>
    %c1_i32_34 = arith.constant 1 : i32
    %137 = tpu.dynamic_rotate %127 by %c1_i32_34 dim 1 : vector<8x72xf32>, i32 -> vector<8x72xf32>
    %138 = vector.extract_strided_slice %2 {offsets = [0, 24], sizes = [16, 8], strides = [1, 1]} : vector<16x73xf32> to vector<16x8xf32>
    %cst_35 = arith.constant dense<0.000000e+00> : vector<16x72xf32>
    %139 = tpu.matmul %138, %137, %cst_35 {dimension_numbers = #tpu.dot_dimension_numbers<[1], [0], [0], [1], [0, 0, 1, 1], [], []>} : vector<16x8xf32>, vector<8x72xf32>, vector<16x72xf32> -> vector<16x72xf32>
    %140 = vector.extract_strided_slice %2 {offsets = [0, 32], sizes = [16, 8], strides = [1, 1]} : vector<16x73xf32> to vector<16x8xf32>
    %cst_36 = arith.constant dense<0.000000e+00> : vector<16x72xf32>
    %141 = tpu.matmul %140, %127, %cst_36 {dimension_numbers = #tpu.dot_dimension_numbers<[1], [0], [0], [1], [0, 0, 1, 1], [], []>} : vector<16x8xf32>, vector<8x72xf32>, vector<16x72xf32> -> vector<16x72xf32>
    %c71_i32 = arith.constant 71 : i32
    %142 = tpu.dynamic_rotate %127 by %c71_i32 dim 1 : vector<8x72xf32>, i32 -> vector<8x72xf32>
    %143 = vector.extract_strided_slice %2 {offsets = [0, 40], sizes = [16, 8], strides = [1, 1]} : vector<16x73xf32> to vector<16x8xf32>
    %cst_37 = arith.constant dense<0.000000e+00> : vector<16x72xf32>
    %144 = tpu.matmul %143, %142, %cst_37 {dimension_numbers = #tpu.dot_dimension_numbers<[1], [0], [0], [1], [0, 0, 1, 1], [], []>} : vector<16x8xf32>, vector<8x72xf32>, vector<16x72xf32> -> vector<16x72xf32>
    %c67_i32 = arith.constant 67 : i32
    %145 = tpu.dynamic_rotate %127 by %c67_i32 dim 1 : vector<8x72xf32>, i32 -> vector<8x72xf32>
    %146 = vector.extract_strided_slice %2 {offsets = [0, 48], sizes = [16, 8], strides = [1, 1]} : vector<16x73xf32> to vector<16x8xf32>
    %cst_38 = arith.constant dense<0.000000e+00> : vector<16x72xf32>
    %147 = tpu.matmul %146, %145, %cst_38 {dimension_numbers = #tpu.dot_dimension_numbers<[1], [0], [0], [1], [0, 0, 1, 1], [], []>} : vector<16x8xf32>, vector<8x72xf32>, vector<16x72xf32> -> vector<16x72xf32>
    %c66_i32 = arith.constant 66 : i32
    %148 = tpu.dynamic_rotate %127 by %c66_i32 dim 1 : vector<8x72xf32>, i32 -> vector<8x72xf32>
    %149 = vector.extract_strided_slice %2 {offsets = [0, 56], sizes = [16, 8], strides = [1, 1]} : vector<16x73xf32> to vector<16x8xf32>
    %cst_39 = arith.constant dense<0.000000e+00> : vector<16x72xf32>
    %150 = tpu.matmul %149, %148, %cst_39 {dimension_numbers = #tpu.dot_dimension_numbers<[1], [0], [0], [1], [0, 0, 1, 1], [], []>} : vector<16x8xf32>, vector<8x72xf32>, vector<16x72xf32> -> vector<16x72xf32>
    %c65_i32 = arith.constant 65 : i32
    %151 = tpu.dynamic_rotate %127 by %c65_i32 dim 1 : vector<8x72xf32>, i32 -> vector<8x72xf32>
    %152 = vector.extract_strided_slice %2 {offsets = [0, 64], sizes = [16, 8], strides = [1, 1]} : vector<16x73xf32> to vector<16x8xf32>
    %cst_40 = arith.constant dense<0.000000e+00> : vector<16x72xf32>
    %153 = tpu.matmul %152, %151, %cst_40 {dimension_numbers = #tpu.dot_dimension_numbers<[1], [0], [0], [1], [0, 0, 1, 1], [], []>} : vector<16x8xf32>, vector<8x72xf32>, vector<16x72xf32> -> vector<16x72xf32>
    %154 = arith.addf %130, %133 : vector<16x72xf32>
    %155 = arith.addf %136, %139 : vector<16x72xf32>
    %156 = arith.addf %141, %144 : vector<16x72xf32>
    %157 = arith.addf %147, %150 : vector<16x72xf32>
    %158 = arith.addf %154, %155 : vector<16x72xf32>
    %159 = arith.addf %156, %157 : vector<16x72xf32>
    %160 = arith.addf %158, %159 : vector<16x72xf32>
    %161 = arith.addf %160, %153 : vector<16x72xf32>
    %162 = vector.extract_strided_slice %2 {offsets = [0, 72], sizes = [16, 1], strides = [1, 1]} : vector<16x73xf32> to vector<16x1xf32>
    %163 = vector.broadcast %162 : vector<16x1xf32> to vector<16x72xf32>
    %164 = arith.addf %161, %163 : vector<16x72xf32>
    %cst_41 = arith.constant 0.000000e+00 : f32
    %165 = vector.broadcast %cst_41 : f32 to vector<16x72xf32>
    %166 = arith.maximumf %164, %165 : vector<16x72xf32>
    %c71_i32_42 = arith.constant 71 : i32
    %167 = tpu.dynamic_rotate %166 by %c71_i32_42 dim 1 : vector<16x72xf32>, i32 -> vector<16x72xf32>
    %168 = arith.maximumf %166, %167 : vector<16x72xf32>
    %c66_i32_43 = arith.constant 66 : i32
    %169 = tpu.dynamic_rotate %166 by %c66_i32_43 dim 1 : vector<16x72xf32>, i32 -> vector<16x72xf32>
    %170 = arith.maximumf %168, %169 : vector<16x72xf32>
    %c65_i32_44 = arith.constant 65 : i32
    %171 = tpu.dynamic_rotate %166 by %c65_i32_44 dim 1 : vector<16x72xf32>, i32 -> vector<16x72xf32>
    %172 = arith.maximumf %170, %171 : vector<16x72xf32>
    %c2 = arith.constant 2 : index
    %c0_45 = arith.constant 0 : index
    %173 = vector.load %arg2[%c2, %c0_45] : memref<3x256xi32, #tpu.memory_space<vmem>>, vector<1x8xi32>
    %174 = tpu.iota {dimensions = array<i32: 0>} : vector<72x8xi32>
    %175 = vector.broadcast %173 : vector<1x8xi32> to vector<72x8xi32>
    %176 = arith.cmpi eq, %174, %175 : vector<72x8xi32>
    %cst_46 = arith.constant 1.000000e+00 : f32
    %cst_47 = arith.constant 0.000000e+00 : f32
    %177 = vector.broadcast %cst_46 : f32 to vector<72x8xf32>
    %178 = vector.broadcast %cst_47 : f32 to vector<72x8xf32>
    %179 = arith.select %176, %177, %178 : vector<72x8xi1>, vector<72x8xf32>
    %cst_48 = arith.constant dense<0.000000e+00> : vector<16x8xf32>
    %180 = tpu.matmul %172, %179, %cst_48 {dimension_numbers = #tpu.dot_dimension_numbers<[1], [0], [0], [1], [0, 0, 1, 1], [], []>} : vector<16x72xf32>, vector<72x8xf32>, vector<16x8xf32> -> vector<16x8xf32>
    %c0_49 = arith.constant 0 : index
    %c0_50 = arith.constant 0 : index
    %181 = vector.load %arg3[%c0_49, %c0_50] : memref<128x65xf32, #tpu.memory_space<vmem>>, vector<128x16xf32>
    %182 = vector.extract_strided_slice %180 {offsets = [0, 0], sizes = [16, 2], strides = [1, 1]} : vector<16x8xf32> to vector<16x2xf32>
    %cst_51 = arith.constant dense<0.000000e+00> : vector<128x2xf32>
    %183 = tpu.matmul %181, %182, %cst_51 {dimension_numbers = #tpu.dot_dimension_numbers<[1], [0], [0], [1], [0, 0, 1, 1], [], []>} : vector<128x16xf32>, vector<16x2xf32>, vector<128x2xf32> -> vector<128x2xf32>
    %c0_52 = arith.constant 0 : index
    %c16 = arith.constant 16 : index
    %184 = vector.load %arg3[%c0_52, %c16] : memref<128x65xf32, #tpu.memory_space<vmem>>, vector<128x16xf32>
    %185 = vector.extract_strided_slice %180 {offsets = [0, 2], sizes = [16, 2], strides = [1, 1]} : vector<16x8xf32> to vector<16x2xf32>
    %cst_53 = arith.constant dense<0.000000e+00> : vector<128x2xf32>
    %186 = tpu.matmul %184, %185, %cst_53 {dimension_numbers = #tpu.dot_dimension_numbers<[1], [0], [0], [1], [0, 0, 1, 1], [], []>} : vector<128x16xf32>, vector<16x2xf32>, vector<128x2xf32> -> vector<128x2xf32>
    %c0_54 = arith.constant 0 : index
    %c32 = arith.constant 32 : index
    %187 = vector.load %arg3[%c0_54, %c32] : memref<128x65xf32, #tpu.memory_space<vmem>>, vector<128x16xf32>
    %188 = vector.extract_strided_slice %180 {offsets = [0, 4], sizes = [16, 2], strides = [1, 1]} : vector<16x8xf32> to vector<16x2xf32>
    %cst_55 = arith.constant dense<0.000000e+00> : vector<128x2xf32>
    %189 = tpu.matmul %187, %188, %cst_55 {dimension_numbers = #tpu.dot_dimension_numbers<[1], [0], [0], [1], [0, 0, 1, 1], [], []>} : vector<128x16xf32>, vector<16x2xf32>, vector<128x2xf32> -> vector<128x2xf32>
    %c0_56 = arith.constant 0 : index
    %c48 = arith.constant 48 : index
    %190 = vector.load %arg3[%c0_56, %c48] : memref<128x65xf32, #tpu.memory_space<vmem>>, vector<128x16xf32>
    %191 = vector.extract_strided_slice %180 {offsets = [0, 6], sizes = [16, 2], strides = [1, 1]} : vector<16x8xf32> to vector<16x2xf32>
    %cst_57 = arith.constant dense<0.000000e+00> : vector<128x2xf32>
    %192 = tpu.matmul %190, %191, %cst_57 {dimension_numbers = #tpu.dot_dimension_numbers<[1], [0], [0], [1], [0, 0, 1, 1], [], []>} : vector<128x16xf32>, vector<16x2xf32>, vector<128x2xf32> -> vector<128x2xf32>
    %193 = arith.addf %183, %186 : vector<128x2xf32>
    %194 = arith.addf %189, %192 : vector<128x2xf32>
    %195 = arith.addf %193, %194 : vector<128x2xf32>
    %c0_58 = arith.constant 0 : index
    %c64 = arith.constant 64 : index
    %196 = vector.load %arg3[%c0_58, %c64] : memref<128x65xf32, #tpu.memory_space<vmem>>, vector<128x1xf32>
    %197 = vector.broadcast %196 : vector<128x1xf32> to vector<128x2xf32>
    %198 = arith.addf %195, %197 : vector<128x2xf32>
    %cst_59 = arith.constant 0.000000e+00 : f32
    %199 = vector.broadcast %cst_59 : f32 to vector<128x2xf32>
    %200 = arith.maximumf %198, %199 : vector<128x2xf32>
    %c0_60 = arith.constant 0 : index
    %c0_61 = arith.constant 0 : index
    %201 = vector.load %arg4[%c0_60, %c0_61] : memref<2x129xf32, #tpu.memory_space<vmem>>, vector<2x128xf32>
    %cst_62 = arith.constant dense<0.000000e+00> : vector<2x2xf32>
    %202 = tpu.matmul %201, %200, %cst_62 {dimension_numbers = #tpu.dot_dimension_numbers<[1], [0], [0], [1], [0, 0, 1, 1], [], []>} : vector<2x128xf32>, vector<128x2xf32>, vector<2x2xf32> -> vector<2x2xf32>
    %c0_63 = arith.constant 0 : index
    %c128_64 = arith.constant 128 : index
    %203 = vector.load %arg4[%c0_63, %c128_64] : memref<2x129xf32, #tpu.memory_space<vmem>>, vector<2x1xf32>
    %204 = vector.broadcast %203 : vector<2x1xf32> to vector<2x2xf32>
    %205 = arith.addf %202, %204 : vector<2x2xf32>
    %c0_65 = arith.constant 0 : index
    %c0_66 = arith.constant 0 : index
    %206 = vector.load %arg5[%c0_65, %c0_66] : memref<2x2xf32, #tpu.memory_space<vmem>>, vector<2x2xf32>
    tpu.vector_store %arg5[%c0_65, %c0_66], %205 {strides = array<i32>} : memref<2x2xf32, #tpu.memory_space<vmem>>, vector<2x2xf32>,
    return
  }
}

</mosaic_0001>

<llo_original>
// kernel: membership_classifier_forward.1
$region0: #{membership_classifier_forward.1}
  #allocation0 [shape = 'u32[]', space=smem, size = 0x4, offset = 0x4, fixed_abs, tag = 'smem constant byte address 0x4 - core index']
  #allocation1 [shape = 'u32[144,128]{1,0:T(1,128)}', space=vmem, size = 0x12000, scoped, tag = 'internal scratch']
  %s0 = inlined_call_operand.vmem [shape: f32[1,648], index: 0, kind: input, shape index: {}]
  %s1 = inlined_call_operand.vmem [shape: f32[16,384], index: 1, kind: input, shape index: {}]
  %s2 = inlined_call_operand.vmem [shape: s32[3,256], index: 2, kind: input, shape index: {}]
  %s3 = inlined_call_operand.vmem [shape: f32[128,65], index: 3, kind: input, shape index: {}]
  %s4 = inlined_call_operand.vmem [shape: f32[2,129], index: 4, kind: input, shape index: {}]
  %s5 = inlined_call_operand.vmem [shape: f32[2,2], index: 5, kind: output, shape index: {}]
  %s6 = sld [smem:[#allocation0]]
  $region30: #{membership_classifier_forward.1} parent=0
    _
  %s8 = ssub.s32 1, %s6
  %s9 = scalar_select 0, %s8, %s6
  // Predicated region
  $region2: #{membership_classifier_forward.1} parent=0 // pred_check
    _
  $region3: #{membership_classifier_forward.1} parent=0 // pred_check_branch
    %11 = sbr.rel (0) target = $region5
  $region4: #{membership_classifier_forward.1} parent=0 // pred_region
    _
  $region5: #{membership_classifier_forward.1} parent=0 // pred_fallthru
    _
  // Predicated region
  $region6: #{membership_classifier_forward.1} parent=0 // pred_check
    _
  $region7: #{membership_classifier_forward.1} parent=0 // pred_check_branch
    %13 = sbr.rel (0) target = $region9
  $region8: #{membership_classifier_forward.1} parent=0 // pred_region
    _
  $region9: #{membership_classifier_forward.1} parent=0 // pred_fallthru
    _
  // Predicated region
  $region10: #{membership_classifier_forward.1} parent=0 // pred_check
    _
  $region11: #{membership_classifier_forward.1} parent=0 // pred_check_branch
    %15 = sbr.rel (0) target = $region13
  $region12: #{membership_classifier_forward.1} parent=0 // pred_region
    _
  $region13: #{membership_classifier_forward.1} parent=0 // pred_fallthru
    _
  // Predicated region
  $region14: #{membership_classifier_forward.1} parent=0 // pred_check
    _
  $region15: #{membership_classifier_forward.1} parent=0 // pred_check_branch
    %17 = sbr.rel (0) target = $region17
  $region16: #{membership_classifier_forward.1} parent=0 // pred_region
    _
  $region17: #{membership_classifier_forward.1} parent=0 // pred_fallthru
    _
  // Predicated region
  $region18: #{membership_classifier_forward.1} parent=0 // pred_check
    _
  $region19: #{membership_classifier_forward.1} parent=0 // pred_check_branch
    %19 = sbr.rel (0) target = $region21
  $region20: #{membership_classifier_forward.1} parent=0 // pred_region
    _
  $region21: #{membership_classifier_forward.1} parent=0 // pred_fallthru
    _
  %v20 = vld [vmem:[%s1] sm:$0xf]
  %v21 = vld [vmem:[%s1 + $0x8] sm:$0xff]
  %v22 = vld [vmem:[%s1 + $0x10] sm:$0xff]
  %v23 = vld [vmem:[%s1 + $0x28] sm:$0xff]
  %v24 = vld [vmem:[%s0] sm:$0x3f]
  %v26 = vlaneseq
  %v27 = vshrl.u32 %v26, 7
  %v28 = vsub.s32 0, %v27
  %v29 = vrot.slane %v24, %v28
  %v30 = vlaneseq
  %v31 = vshrl.u32 %v30, 7
  %v32 = vsub.s32 1, %v31
  %v33 = vrot.slane %v24, %v32
  %v34 = vlaneseq
  %v35 = vshrl.u32 %v34, 7
  %v36 = vsub.s32 2, %v35
  %v37 = vrot.slane %v24, %v36
  %v38 = vlaneseq
  %v39 = vshrl.u32 %v38, 7
  %v40 = vsub.s32 3, %v39
  %v41 = vrot.slane %v24, %v40
  %v42 = vlaneseq
  %v43 = vshrl.u32 %v42, 7
  %v44 = vsub.s32 4, %v43
  %v45 = vrot.slane %v24, %v44
  %v46 = vlaneseq
  %v47 = vshrl.u32 %v46, 7
  %v48 = vsub.s32 5, %v47
  %v49 = vrot.slane %v24, %v48
  %vm56 = vcmask 1047616
  %57 = vrot.lane.b32.xlu0 %v29, 8
  %v58 = vpop.permute.xlu0 %57
  %59 = vrot.lane.b32.xlu0 %v33, 8
  %v60 = vpop.permute.xlu0 %59
  %61 = vrot.lane.b32.xlu0 %v37, 8
  %v62 = vpop.permute.xlu0 %61
  %63 = vrot.lane.b32.xlu0 %v41, 8
  %v64 = vpop.permute.xlu0 %63
  %65 = vrot.lane.b32.xlu0 %v45, 8
  %v66 = vpop.permute.xlu0 %65
  %v67 = vsel %vm56, %v58, %v49
  %v68 = vsel %vm56, %v60, %v58
  %v69 = vsel %vm56, %v62, %v60
  %v70 = vsel %vm56, %v64, %v62
  %v71 = vsel %vm56, %v66, %v64
  %73 = vset.pattern.permute.xlu0 0
  %74 = vperm.xlu0 %73, %v20
  %v75 = vpop.permute.xlu0 %74
  %v77 = vlaneseq
  %v78 = vshrl.u32 %v77, 7
  %v79 = vsub.s32 0, %v78
  %v80 = vrot.slane %v45, %v79
  %v81 = vlaneseq
  %v82 = vshrl.u32 %v81, 7
  %v83 = vsub.s32 0, %v82
  %v84 = vrot.slane %v67, %v83
  %v85 = vlaneseq
  %v86 = vshrl.u32 %v85, 7
  %v87 = vsub.s32 0, %v86
  %v88 = vrot.slane %v68, %v87
  %v89 = vlaneseq
  %v90 = vshrl.u32 %v89, 7
  %v91 = vsub.s32 0, %v90
  %v92 = vrot.slane %v69, %v91
  %v93 = vlaneseq
  %v94 = vshrl.u32 %v93, 7
  %v95 = vsub.s32 0, %v94
  %v96 = vrot.slane %v70, %v95
  %v97 = vlaneseq
  %v98 = vshrl.u32 %v97, 7
  %v99 = vsub.s32 0, %v98
  %v100 = vrot.slane %v71, %v99
  %v101 = vmul.f32 %v75, %v80
  %v102 = vmul.f32 %v75, %v84
  %v103 = vmul.f32 %v75, %v88
  %v104 = vmul.f32 %v75, %v92
  %v105 = vmul.f32 %v75, %v96
  %v106 = vmul.f32 %v75, %v100
  %107 = vset.pattern.permute.xlu0 1
  %108 = vperm.xlu0 %107, %v20
  %v109 = vpop.permute.xlu0 %108
  %v111 = vmul.f32 %v109, %v80
  %v112 = vmul.f32 %v109, %v84
  %v113 = vmul.f32 %v109, %v88
  %v114 = vmul.f32 %v109, %v92
  %v115 = vmul.f32 %v109, %v96
  %v116 = vmul.f32 %v109, %v100
  %117 = vset.pattern.permute.xlu0 2
  %118 = vperm.xlu0 %117, %v20
  %v119 = vpop.permute.xlu0 %118
  %v121 = vmul.f32 %v119, %v80
  %v122 = vmul.f32 %v119, %v84
  %v123 = vmul.f32 %v119, %v88
  %v124 = vmul.f32 %v119, %v92
  %v125 = vmul.f32 %v119, %v96
  %v126 = vmul.f32 %v119, %v100
  %127 = vrot.lane.b32.xlu0 %v67, 8
  %v128 = vpop.permute.xlu0 %127
  %v129 = vsel %vm56, %v128, %v66
  %130 = vset.pattern.permute.xlu0 3
  %131 = vperm.xlu0 %130, %v20
  %v132 = vpop.permute.xlu0 %131
  %v134 = vlaneseq
  %v135 = vshrl.u32 %v134, 7
  %v136 = vsub.s32 0, %v135
  %v137 = vrot.slane %v129, %v136
  %v138 = vmul.f32 %v132, %v84
  %v139 = vmul.f32 %v132, %v88
  %v140 = vmul.f32 %v132, %v92
  %v141 = vmul.f32 %v132, %v96
  %v142 = vmul.f32 %v132, %v100
  %v143 = vmul.f32 %v132, %v137
  %144 = vset.pattern.permute.xlu0 4
  %145 = vperm.xlu0 %144, %v20
  %v146 = vpop.permute.xlu0 %145
  %v148 = vmul.f32 %v146, %v29
  %v149 = vmul.f32 %v146, %v33
  %v150 = vmul.f32 %v146, %v37
  %v151 = vmul.f32 %v146, %v41
  %v152 = vmul.f32 %v146, %v45
  %v153 = vmul.f32 %v146, %v49
  %154 = vset.pattern.permute.xlu0 5
  %155 = vperm.xlu0 %154, %v20
  %v156 = vpop.permute.xlu0 %155
  %v158 = vlaneseq
  %v159 = vshrl.u32 %v158, 7
  %v160 = vsub.s32 0, %v159
  %v161 = vrot.slane %v29, %v160
  %v162 = vlaneseq
  %v163 = vshrl.u32 %v162, 7
  %v164 = vsub.s32 0, %v163
  %v165 = vrot.slane %v33, %v164
  %v166 = vlaneseq
  %v167 = vshrl.u32 %v166, 7
  %v168 = vsub.s32 0, %v167
  %v169 = vrot.slane %v37, %v168
  %v170 = vlaneseq
  %v171 = vshrl.u32 %v170, 7
  %v172 = vsub.s32 0, %v171
  %v173 = vrot.slane %v41, %v172
  %v174 = vmul.f32 %v156, %v161
  %v175 = vmul.f32 %v156, %v165
  %v176 = vmul.f32 %v156, %v169
  %v177 = vmul.f32 %v156, %v173
  %v178 = vmul.f32 %v156, %v80
  %v179 = vmul.f32 %v156, %v84
  %180 = vset.pattern.permute.xlu0 6
  %181 = vperm.xlu0 %180, %v20
  %v182 = vpop.permute.xlu0 %181
  %v184 = vmul.f32 %v182, %v161
  %v185 = vmul.f32 %v182, %v165
  %v186 = vmul.f32 %v182, %v169
  %v187 = vmul.f32 %v182, %v173
  %v188 = vmul.f32 %v182, %v80
  %v189 = vmul.f32 %v182, %v84
  %190 = vset.pattern.permute.xlu0 7
  %191 = vperm.xlu0 %190, %v20
  %v192 = vpop.permute.xlu0 %191
  %v194 = vmul.f32 %v192, %v161
  %v195 = vmul.f32 %v192, %v165
  %v196 = vmul.f32 %v192, %v169
  %v197 = vmul.f32 %v192, %v173
  %v198 = vmul.f32 %v192, %v80
  %v199 = vmul.f32 %v192, %v84
  %200 = vset.pattern.permute.xlu0 8
  %201 = vperm.xlu0 %200, %v20
  %v202 = vpop.permute.xlu0 %201
  %v204 = vmul.f32 %v202, %v161
  %v205 = vmul.f32 %v202, %v165
  %v206 = vmul.f32 %v202, %v169
  %v207 = vmul.f32 %v202, %v173
  %v208 = vmul.f32 %v202, %v80
  %v209 = vmul.f32 %v202, %v84
  %216 = vrot.lane.b32.xlu0 %v111, 127
  %v217 = vpop.permute.xlu0 %216
  %218 = vrot.lane.b32.xlu0 %v112, 127
  %v219 = vpop.permute.xlu0 %218
  %220 = vrot.lane.b32.xlu0 %v113, 127
  %v221 = vpop.permute.xlu0 %220
  %222 = vrot.lane.b32.xlu0 %v114, 127
  %v223 = vpop.permute.xlu0 %222
  %224 = vrot.lane.b32.xlu0 %v115, 127
  %v225 = vpop.permute.xlu0 %224
  %226 = vrot.lane.b32.xlu0 %v116, 127
  %v227 = vpop.permute.xlu0 %226
  %vm228 = vcmask 1039360
  %v229 = vsel %vm228, %v217, %v219
  %v230 = vsel %vm228, %v219, %v221
  %v231 = vsel %vm228, %v221, %v223
  %v232 = vsel %vm228, %v223, %v225
  %v233 = vsel %vm228, %v225, %v227
  %v240 = vadd.f32 %v101, %v229
  %v241 = vadd.f32 %v102, %v230
  %v242 = vadd.f32 %v103, %v231
  %v243 = vadd.f32 %v104, %v232
  %v244 = vadd.f32 %v105, %v233
  %v245 = vadd.f32 %v106, %v227
  %252 = vrot.lane.b32.xlu0 %v138, 112
  %v253 = vpop.permute.xlu0 %252
  %254 = vrot.lane.b32.xlu0 %v139, 112
  %v255 = vpop.permute.xlu0 %254
  %256 = vrot.lane.b32.xlu0 %v140, 112
  %v257 = vpop.permute.xlu0 %256
  %258 = vrot.lane.b32.xlu0 %v141, 112
  %v259 = vpop.permute.xlu0 %258
  %260 = vrot.lane.b32.xlu0 %v142, 112
  %v261 = vpop.permute.xlu0 %260
  %262 = vrot.lane.b32.xlu0 %v143, 112
  %v263 = vpop.permute.xlu0 %262
  %vm264 = vcmask 916480
  %v265 = vsel %vm264, %v253, %v255
  %v266 = vsel %vm264, %v255, %v257
  %v267 = vsel %vm264, %v257, %v259
  %v268 = vsel %vm264, %v259, %v261
  %v269 = vsel %vm264, %v261, %v263
  %v276 = vadd.f32 %v121, %v253
  %v277 = vadd.f32 %v122, %v265
  %v278 = vadd.f32 %v123, %v266
  %v279 = vadd.f32 %v124, %v267
  %v280 = vadd.f32 %v125, %v268
  %v281 = vadd.f32 %v126, %v269
  %288 = vrot.lane.b32.xlu0 %v174, 127
  %v289 = vpop.permute.xlu0 %288
  %290 = vrot.lane.b32.xlu0 %v175, 127
  %v291 = vpop.permute.xlu0 %290
  %292 = vrot.lane.b32.xlu0 %v176, 127
  %v293 = vpop.permute.xlu0 %292
  %294 = vrot.lane.b32.xlu0 %v177, 127
  %v295 = vpop.permute.xlu0 %294
  %296 = vrot.lane.b32.xlu0 %v178, 127
  %v297 = vpop.permute.xlu0 %296
  %298 = vrot.lane.b32.xlu0 %v179, 127
  %v299 = vpop.permute.xlu0 %298
  %v300 = vsel %vm228, %v289, %v291
  %v301 = vsel %vm228, %v291, %v293
  %v302 = vsel %vm228, %v293, %v295
  %v303 = vsel %vm228, %v295, %v297
  %v304 = vsel %vm228, %v297, %v299
  %v311 = vadd.f32 %v148, %v300
  %v312 = vadd.f32 %v149, %v301
  %v313 = vadd.f32 %v150, %v302
  %v314 = vadd.f32 %v151, %v303
  %v315 = vadd.f32 %v152, %v304
  %v316 = vadd.f32 %v153, %v299
  %323 = vrot.lane.b32.xlu0 %v194, 127
  %v324 = vpop.permute.xlu0 %323
  %325 = vrot.lane.b32.xlu0 %v195, 127
  %v326 = vpop.permute.xlu0 %325
  %327 = vrot.lane.b32.xlu0 %v196, 127
  %v328 = vpop.permute.xlu0 %327
  %329 = vrot.lane.b32.xlu0 %v197, 127
  %v330 = vpop.permute.xlu0 %329
  %331 = vrot.lane.b32.xlu0 %v198, 127
  %v332 = vpop.permute.xlu0 %331
  %333 = vrot.lane.b32.xlu0 %v199, 127
  %v334 = vpop.permute.xlu0 %333
  %v335 = vsel %vm228, %v324, %v326
  %v336 = vsel %vm228, %v326, %v328
  %v337 = vsel %vm228, %v328, %v330
  %v338 = vsel %vm228, %v330, %v332
  %v339 = vsel %vm228, %v332, %v334
  %v346 = vadd.f32 %v184, %v335
  %v347 = vadd.f32 %v185, %v336
  %v348 = vadd.f32 %v186, %v337
  %v349 = vadd.f32 %v187, %v338
  %v350 = vadd.f32 %v188, %v339
  %v351 = vadd.f32 %v189, %v334
  %358 = vrot.lane.b32.xlu0 %v276, 126
  %v359 = vpop.permute.xlu0 %358
  %360 = vrot.lane.b32.xlu0 %v277, 126
  %v361 = vpop.permute.xlu0 %360
  %362 = vrot.lane.b32.xlu0 %v278, 126
  %v363 = vpop.permute.xlu0 %362
  %364 = vrot.lane.b32.xlu0 %v279, 126
  %v365 = vpop.permute.xlu0 %364
  %366 = vrot.lane.b32.xlu0 %v280, 126
  %v367 = vpop.permute.xlu0 %366
  %368 = vrot.lane.b32.xlu0 %v281, 126
  %v369 = vpop.permute.xlu0 %368
  %vm370 = vcmask 1031168
  %v371 = vsel %vm370, %v359, %v361
  %v372 = vsel %vm370, %v361, %v363
  %v373 = vsel %vm370, %v363, %v365
  %v374 = vsel %vm370, %v365, %v367
  %v375 = vsel %vm370, %v367, %v369
  %v382 = vadd.f32 %v240, %v371
  %v383 = vadd.f32 %v241, %v372
  %v384 = vadd.f32 %v242, %v373
  %v385 = vadd.f32 %v243, %v374
  %v386 = vadd.f32 %v244, %v375
  %v387 = vadd.f32 %v245, %v369
  %394 = vrot.lane.b32.xlu0 %v346, 111
  %v395 = vpop.permute.xlu0 %394
  %396 = vrot.lane.b32.xlu0 %v347, 111
  %v397 = vpop.permute.xlu0 %396
  %398 = vrot.lane.b32.xlu0 %v348, 111
  %v399 = vpop.permute.xlu0 %398
  %400 = vrot.lane.b32.xlu0 %v349, 111
  %v401 = vpop.permute.xlu0 %400
  %402 = vrot.lane.b32.xlu0 %v350, 111
  %v403 = vpop.permute.xlu0 %402
  %404 = vrot.lane.b32.xlu0 %v351, 111
  %v405 = vpop.permute.xlu0 %404
  %vm406 = vcmask 908288
  %v407 = vsel %vm406, %v395, %v397
  %v408 = vsel %vm406, %v397, %v399
  %v409 = vsel %vm406, %v399, %v401
  %v410 = vsel %vm406, %v401, %v403
  %v411 = vsel %vm406, %v403, %v405
  %v418 = vadd.f32 %v311, %v407
  %v419 = vadd.f32 %v312, %v408
  %v420 = vadd.f32 %v313, %v409
  %v421 = vadd.f32 %v314, %v410
  %v422 = vadd.f32 %v315, %v411
  %v423 = vadd.f32 %v316, %v405
  %430 = vrot.lane.b32.xlu0 %v418, 117
  %v431 = vpop.permute.xlu0 %430
  %432 = vrot.lane.b32.xlu0 %v419, 117
  %v433 = vpop.permute.xlu0 %432
  %434 = vrot.lane.b32.xlu0 %v420, 117
  %v435 = vpop.permute.xlu0 %434
  %436 = vrot.lane.b32.xlu0 %v421, 117
  %v437 = vpop.permute.xlu0 %436
  %438 = vrot.lane.b32.xlu0 %v422, 117
  %v439 = vpop.permute.xlu0 %438
  %440 = vrot.lane.b32.xlu0 %v423, 117
  %v441 = vpop.permute.xlu0 %440
  %vm442 = vcmask 957440
  %v443 = vsel %vm442, %v431, %v433
  %v444 = vsel %vm442, %v433, %v435
  %v445 = vsel %vm442, %v435, %v437
  %v446 = vsel %vm442, %v437, %v439
  %v447 = vsel %vm442, %v439, %v441
  %v454 = vadd.f32 %v382, %v431
  %v455 = vadd.f32 %v383, %v443
  %v456 = vadd.f32 %v384, %v444
  %v457 = vadd.f32 %v385, %v445
  %v458 = vadd.f32 %v386, %v446
  %v459 = vadd.f32 %v387, %v447
  %466 = vrot.lane.b32.xlu0 %v204, 98
  %v467 = vpop.permute.xlu0 %466
  %468 = vrot.lane.b32.xlu0 %v205, 98
  %v469 = vpop.permute.xlu0 %468
  %470 = vrot.lane.b32.xlu0 %v206, 98
  %v471 = vpop.permute.xlu0 %470
  %472 = vrot.lane.b32.xlu0 %v207, 98
  %v473 = vpop.permute.xlu0 %472
  %474 = vrot.lane.b32.xlu0 %v208, 98
  %v475 = vpop.permute.xlu0 %474
  %476 = vrot.lane.b32.xlu0 %v209, 98
  %v477 = vpop.permute.xlu0 %476
  %vm478 = vcmask 801792
  %v479 = vsel %vm478, %v467, %v469
  %v480 = vsel %vm478, %v469, %v471
  %v481 = vsel %vm478, %v471, %v473
  %v482 = vsel %vm478, %v473, %v475
  %v483 = vsel %vm478, %v475, %v477
  %v490 = vadd.f32 %v454, %v467
  %v491 = vadd.f32 %v455, %v479
  %v492 = vadd.f32 %v456, %v480
  %v493 = vadd.f32 %v457, %v481
  %v494 = vadd.f32 %v458, %v482
  %v495 = vadd.f32 %v459, %v483
  %496 = vset.pattern.permute.xlu0 9
  %497 = vperm.xlu0 %496, %v20
  %v498 = vpop.permute.xlu0 %497
  %v500 = vadd.f32 %v490, %v498
  %v501 = vadd.f32 %v491, %v498
  %v502 = vadd.f32 %v492, %v498
  %v503 = vadd.f32 %v493, %v498
  %v504 = vadd.f32 %v494, %v498
  %v505 = vadd.f32 %v495, %v498
  %v506 = vmax.f32 %v500, 0.0
  %v507 = vmax.f32 %v501, 0.0
  %v508 = vmax.f32 %v502, 0.0
  %v509 = vmax.f32 %v503, 0.0
  %v510 = vmax.f32 %v504, 0.0
  %v511 = vmax.f32 %v505, 0.0
  %518 = vrot.lane.b32.xlu0 %v506, 11
  %v519 = vpop.permute.xlu0 %518
  %520 = vrot.lane.b32.xlu0 %v507, 11
  %v521 = vpop.permute.xlu0 %520
  %522 = vrot.lane.b32.xlu0 %v508, 11
  %v523 = vpop.permute.xlu0 %522
  %524 = vrot.lane.b32.xlu0 %v509, 11
  %v525 = vpop.permute.xlu0 %524
  %526 = vrot.lane.b32.xlu0 %v510, 11
  %v527 = vpop.permute.xlu0 %526
  %528 = vrot.lane.b32.xlu0 %v511, 11
  %v529 = vpop.permute.xlu0 %528
  %vm530 = vcmask 89088
  %v531 = vsel %vm530, %v519, %v521
  %v532 = vsel %vm530, %v521, %v523
  %v533 = vsel %vm530, %v523, %v525
  %v534 = vsel %vm530, %v525, %v527
  %v535 = vsel %vm530, %v527, %v529
  %538 = vrot.lane.b32.xlu0 %v531, 8
  %v539 = vpop.permute.xlu0 %538
  %v540 = vsel %vm56, %v539, %v529
  %542 = vrot.lane.b32.xlu0 %v531, 116
  %v543 = vpop.permute.xlu0 %542
  %544 = vrot.lane.b32.xlu0 %v532, 116
  %v545 = vpop.permute.xlu0 %544
  %546 = vrot.lane.b32.xlu0 %v533, 116
  %v547 = vpop.permute.xlu0 %546
  %548 = vrot.lane.b32.xlu0 %v534, 116
  %v549 = vpop.permute.xlu0 %548
  %550 = vrot.lane.b32.xlu0 %v535, 116
  %v551 = vpop.permute.xlu0 %550
  %552 = vrot.lane.b32.xlu0 %v540, 116
  %v553 = vpop.permute.xlu0 %552
  %vm554 = vcmask 949248
  %v555 = vsel %vm554, %v543, %v545
  %v556 = vsel %vm554, %v545, %v547
  %v557 = vsel %vm554, %v547, %v549
  %v558 = vsel %vm554, %v549, %v551
  %v559 = vsel %vm554, %v551, %v553
  %v566 = vmax.f32 %v506, %v543
  %v567 = vmax.f32 %v507, %v555
  %v568 = vmax.f32 %v508, %v556
  %v569 = vmax.f32 %v509, %v557
  %v570 = vmax.f32 %v510, %v558
  %v571 = vmax.f32 %v511, %v559
  %572 = vrot.lane.b32.xlu0 %v531, 99
  %v573 = vpop.permute.xlu0 %572
  %574 = vrot.lane.b32.xlu0 %v532, 99
  %v575 = vpop.permute.xlu0 %574
  %576 = vrot.lane.b32.xlu0 %v533, 99
  %v577 = vpop.permute.xlu0 %576
  %578 = vrot.lane.b32.xlu0 %v534, 99
  %v579 = vpop.permute.xlu0 %578
  %580 = vrot.lane.b32.xlu0 %v535, 99
  %v581 = vpop.permute.xlu0 %580
  %582 = vrot.lane.b32.xlu0 %v540, 99
  %v583 = vpop.permute.xlu0 %582
  %vm584 = vcmask 809984
  %v585 = vsel %vm584, %v573, %v575
  %v586 = vsel %vm584, %v575, %v577
  %v587 = vsel %vm584, %v577, %v579
  %v588 = vsel %vm584, %v579, %v581
  %v589 = vsel %vm584, %v581, %v583
  %v596 = vmax.f32 %v566, %v573
  %v597 = vmax.f32 %v567, %v585
  %v598 = vmax.f32 %v568, %v586
  %v599 = vmax.f32 %v569, %v587
  %v600 = vmax.f32 %v570, %v588
  %v601 = vmax.f32 %v571, %v589
  %602 = vrot.lane.b32.xlu0 %v531, 98
  %v603 = vpop.permute.xlu0 %602
  %604 = vrot.lane.b32.xlu0 %v532, 98
  %v605 = vpop.permute.xlu0 %604
  %606 = vrot.lane.b32.xlu0 %v533, 98
  %v607 = vpop.permute.xlu0 %606
  %608 = vrot.lane.b32.xlu0 %v534, 98
  %v609 = vpop.permute.xlu0 %608
  %610 = vrot.lane.b32.xlu0 %v535, 98
  %v611 = vpop.permute.xlu0 %610
  %612 = vrot.lane.b32.xlu0 %v540, 98
  %v613 = vpop.permute.xlu0 %612
  %v614 = vsel %vm478, %v603, %v605
  %v615 = vsel %vm478, %v605, %v607
  %v616 = vsel %vm478, %v607, %v609
  %v617 = vsel %vm478, %v609, %v611
  %v618 = vsel %vm478, %v611, %v613
  %v625 = vmax.f32 %v596, %v603
  %v626 = vmax.f32 %v597, %v614
  %v627 = vmax.f32 %v598, %v615
  %v628 = vmax.f32 %v599, %v616
  %v629 = vmax.f32 %v600, %v617
  %v630 = vmax.f32 %v601, %v618
  %v631 = vld [vmem:[%s2] ss:$4 sm:$0x3]
  %v632 = vlaneseq
  %v633 = vshrl.u32 %v632, 7
  %v634 = vadd.s32 %v633, 8
  %v635 = vadd.s32 %v633, 16
  %v636 = vadd.s32 %v633, 24
  %v637 = vadd.s32 %v633, 32
  %v638 = vadd.s32 %v633, 40
  %v639 = vadd.s32 %v633, 48
  %v640 = vadd.s32 %v633, 56
  %v641 = vadd.s32 %v633, 64
  %v642 = vadd.s32 %v633, 72
  %v643 = vadd.s32 %v633, 80
  %v644 = vadd.s32 %v633, 88
  %v645 = vadd.s32 %v633, 96
  %v646 = vadd.s32 %v633, 104
  %v647 = vadd.s32 %v633, 112
  %v648 = vadd.s32 %v633, 120
  %v649 = vadd.s32 %v633, 128
  %v650 = vadd.s32 %v633, 136
  %v651 = vadd.s32 %v633, 144
  %v652 = vadd.s32 %v633, 152
  %v653 = vadd.s32 %v633, 160
  %v654 = vadd.s32 %v633, 168
  %v655 = vadd.s32 %v633, 176
  %v656 = vadd.s32 %v633, 184
  %v657 = vadd.s32 %v633, 192
  %v658 = vadd.s32 %v633, 200
  %v659 = vadd.s32 %v633, 208
  %v660 = vadd.s32 %v633, 216
  %v661 = vadd.s32 %v633, 224
  %v662 = vadd.s32 %v633, 232
  %v663 = vadd.s32 %v633, 240
  %v664 = vadd.s32 %v633, 248
  %v665 = vadd.s32 %v633, 256
  %v666 = vadd.s32 %v633, 264
  %v667 = vadd.s32 %v633, 272
  %v668 = vadd.s32 %v633, 280
  %v669 = vadd.s32 %v633, 288
  %v670 = vadd.s32 %v633, 296
  %v671 = vadd.s32 %v633, 304
  %v672 = vadd.s32 %v633, 312
  %v673 = vadd.s32 %v633, 320
  %v674 = vadd.s32 %v633, 328
  %v675 = vadd.s32 %v633, 336
  %v676 = vadd.s32 %v633, 344
  %v677 = vadd.s32 %v633, 352
  %v678 = vadd.s32 %v633, 360
  %v679 = vadd.s32 %v633, 368
  %v680 = vadd.s32 %v633, 376
  %v681 = vadd.s32 %v633, 384
  %v682 = vadd.s32 %v633, 392
  %v683 = vadd.s32 %v633, 400
  %v684 = vadd.s32 %v633, 408
  %v685 = vadd.s32 %v633, 416
  %v686 = vadd.s32 %v633, 424
  %v687 = vadd.s32 %v633, 432
  %v688 = vadd.s32 %v633, 440
  %v689 = vadd.s32 %v633, 448
  %v690 = vadd.s32 %v633, 456
  %v691 = vadd.s32 %v633, 464
  %v692 = vadd.s32 %v633, 472
  %v693 = vadd.s32 %v633, 480
  %v694 = vadd.s32 %v633, 488
  %v695 = vadd.s32 %v633, 496
  %v696 = vadd.s32 %v633, 504
  %v697 = vadd.s32 %v633, 512
  %v698 = vadd.s32 %v633, 520
  %v699 = vadd.s32 %v633, 528
  %v700 = vadd.s32 %v633, 536
  %v701 = vadd.s32 %v633, 544
  %v702 = vadd.s32 %v633, 552
  %v703 = vadd.s32 %v633, 560
  %v704 = vadd.s32 %v633, 568
  %v705 = vadd.s32 %v633, 576
  %v706 = vadd.s32 %v633, 584
  %v707 = vadd.s32 %v633, 592
  %v708 = vadd.s32 %v633, 600
  %v709 = vadd.s32 %v633, 608
  %v710 = vadd.s32 %v633, 616
  %v711 = vadd.s32 %v633, 624
  %v712 = vadd.s32 %v633, 632
  %v713 = vadd.s32 %v633, 640
  %v714 = vlaneseq
  %v715 = vshrl.u32 %v714, 7
  %v716 = vsub.s32 0, %v715
  %v717 = vrot.slane %v631, %v716
  %v718 = vlaneseq
  %v719 = vshrl.u32 %v718, 7
  %v720 = vsub.s32 1, %v719
  %v721 = vrot.slane %v631, %v720
  %vm722 = vcmp.eq.s32.totalorder %v633, %v717
  %vm723 = vcmp.eq.s32.totalorder %v633, %v721
  %vm724 = vcmp.eq.s32.totalorder %v634, %v717
  %vm725 = vcmp.eq.s32.totalorder %v634, %v721
  %vm726 = vcmp.eq.s32.totalorder %v635, %v717
  %vm727 = vcmp.eq.s32.totalorder %v635, %v721
  %vm728 = vcmp.eq.s32.totalorder %v636, %v717
  %vm729 = vcmp.eq.s32.totalorder %v636, %v721
  %vm730 = vcmp.eq.s32.totalorder %v637, %v717
  %vm731 = vcmp.eq.s32.totalorder %v637, %v721
  %vm732 = vcmp.eq.s32.totalorder %v638, %v717
  %vm733 = vcmp.eq.s32.totalorder %v638, %v721
  %vm734 = vcmp.eq.s32.totalorder %v639, %v717
  %vm735 = vcmp.eq.s32.totalorder %v639, %v721
  %vm736 = vcmp.eq.s32.totalorder %v640, %v717
  %vm737 = vcmp.eq.s32.totalorder %v640, %v721
  %vm738 = vcmp.eq.s32.totalorder %v641, %v717
  %vm739 = vcmp.eq.s32.totalorder %v641, %v721
  %vm740 = vcmp.eq.s32.totalorder %v642, %v717
  %vm741 = vcmp.eq.s32.totalorder %v642, %v721
  %vm742 = vcmp.eq.s32.totalorder %v643, %v717
  %vm743 = vcmp.eq.s32.totalorder %v643, %v721
  %vm744 = vcmp.eq.s32.totalorder %v644, %v717
  %vm745 = vcmp.eq.s32.totalorder %v644, %v721
  %vm746 = vcmp.eq.s32.totalorder %v645, %v717
  %vm747 = vcmp.eq.s32.totalorder %v645, %v721
  %vm748 = vcmp.eq.s32.totalorder %v646, %v717
  %vm749 = vcmp.eq.s32.totalorder %v646, %v721
  %vm750 = vcmp.eq.s32.totalorder %v647, %v717
  %vm751 = vcmp.eq.s32.totalorder %v647, %v721
  %vm752 = vcmp.eq.s32.totalorder %v648, %v717
  %vm753 = vcmp.eq.s32.totalorder %v648, %v721
  %vm754 = vcmp.eq.s32.totalorder %v649, %v717
  %vm755 = vcmp.eq.s32.totalorder %v649, %v721
  %vm756 = vcmp.eq.s32.totalorder %v650, %v717
  %vm757 = vcmp.eq.s32.totalorder %v650, %v721
  %vm758 = vcmp.eq.s32.totalorder %v651, %v717
  %vm759 = vcmp.eq.s32.totalorder %v651, %v721
  %vm760 = vcmp.eq.s32.totalorder %v652, %v717
  %vm761 = vcmp.eq.s32.totalorder %v652, %v721
  %vm762 = vcmp.eq.s32.totalorder %v653, %v717
  %vm763 = vcmp.eq.s32.totalorder %v653, %v721
  %vm764 = vcmp.eq.s32.totalorder %v654, %v717
  %vm765 = vcmp.eq.s32.totalorder %v654, %v721
  %vm766 = vcmp.eq.s32.totalorder %v655, %v717
  %vm767 = vcmp.eq.s32.totalorder %v655, %v721
  %vm768 = vcmp.eq.s32.totalorder %v656, %v717
  %vm769 = vcmp.eq.s32.totalorder %v656, %v721
  %vm770 = vcmp.eq.s32.totalorder %v657, %v717
  %vm771 = vcmp.eq.s32.totalorder %v657, %v721
  %vm772 = vcmp.eq.s32.totalorder %v658, %v717
  %vm773 = vcmp.eq.s32.totalorder %v658, %v721
  %vm774 = vcmp.eq.s32.totalorder %v659, %v717
  %vm775 = vcmp.eq.s32.totalorder %v659, %v721
  %vm776 = vcmp.eq.s32.totalorder %v660, %v717
  %vm777 = vcmp.eq.s32.totalorder %v660, %v721
  %vm778 = vcmp.eq.s32.totalorder %v661, %v717
  %vm779 = vcmp.eq.s32.totalorder %v661, %v721
  %vm780 = vcmp.eq.s32.totalorder %v662, %v717
  %vm781 = vcmp.eq.s32.totalorder %v662, %v721
  %vm782 = vcmp.eq.s32.totalorder %v663, %v717
  %vm783 = vcmp.eq.s32.totalorder %v663, %v721
  %vm784 = vcmp.eq.s32.totalorder %v664, %v717
  %vm785 = vcmp.eq.s32.totalorder %v664, %v721
  %vm786 = vcmp.eq.s32.totalorder %v665, %v717
  %vm787 = vcmp.eq.s32.totalorder %v665, %v721
  %vm788 = vcmp.eq.s32.totalorder %v666, %v717
  %vm789 = vcmp.eq.s32.totalorder %v666, %v721
  %vm790 = vcmp.eq.s32.totalorder %v667, %v717
  %vm791 = vcmp.eq.s32.totalorder %v667, %v721
  %vm792 = vcmp.eq.s32.totalorder %v668, %v717
  %vm793 = vcmp.eq.s32.totalorder %v668, %v721
  %vm794 = vcmp.eq.s32.totalorder %v669, %v717
  %vm795 = vcmp.eq.s32.totalorder %v669, %v721
  %vm796 = vcmp.eq.s32.totalorder %v670, %v717
  %vm797 = vcmp.eq.s32.totalorder %v670, %v721
  %vm798 = vcmp.eq.s32.totalorder %v671, %v717
  %vm799 = vcmp.eq.s32.totalorder %v671, %v721
  %vm800 = vcmp.eq.s32.totalorder %v672, %v717
  %vm801 = vcmp.eq.s32.totalorder %v672, %v721
  %vm802 = vcmp.eq.s32.totalorder %v673, %v717
  %vm803 = vcmp.eq.s32.totalorder %v673, %v721
  %vm804 = vcmp.eq.s32.totalorder %v674, %v717
  %vm805 = vcmp.eq.s32.totalorder %v674, %v721
  %vm806 = vcmp.eq.s32.totalorder %v675, %v717
  %vm807 = vcmp.eq.s32.totalorder %v675, %v721
  %vm808 = vcmp.eq.s32.totalorder %v676, %v717
  %vm809 = vcmp.eq.s32.totalorder %v676, %v721
  %vm810 = vcmp.eq.s32.totalorder %v677, %v717
  %vm811 = vcmp.eq.s32.totalorder %v677, %v721
  %vm812 = vcmp.eq.s32.totalorder %v678, %v717
  %vm813 = vcmp.eq.s32.totalorder %v678, %v721
  %vm814 = vcmp.eq.s32.totalorder %v679, %v717
  %vm815 = vcmp.eq.s32.totalorder %v679, %v721
  %vm816 = vcmp.eq.s32.totalorder %v680, %v717
  %vm817 = vcmp.eq.s32.totalorder %v680, %v721
  %vm818 = vcmp.eq.s32.totalorder %v681, %v717
  %vm819 = vcmp.eq.s32.totalorder %v681, %v721
  %vm820 = vcmp.eq.s32.totalorder %v682, %v717
  %vm821 = vcmp.eq.s32.totalorder %v682, %v721
  %vm822 = vcmp.eq.s32.totalorder %v683, %v717
  %vm823 = vcmp.eq.s32.totalorder %v683, %v721
  %vm824 = vcmp.eq.s32.totalorder %v684, %v717
  %vm825 = vcmp.eq.s32.totalorder %v684, %v721
  %vm826 = vcmp.eq.s32.totalorder %v685, %v717
  %vm827 = vcmp.eq.s32.totalorder %v685, %v721
  %vm828 = vcmp.eq.s32.totalorder %v686, %v717
  %vm829 = vcmp.eq.s32.totalorder %v686, %v721
  %vm830 = vcmp.eq.s32.totalorder %v687, %v717
  %vm831 = vcmp.eq.s32.totalorder %v687, %v721
  %vm832 = vcmp.eq.s32.totalorder %v688, %v717
  %vm833 = vcmp.eq.s32.totalorder %v688, %v721
  %vm834 = vcmp.eq.s32.totalorder %v689, %v717
  %vm835 = vcmp.eq.s32.totalorder %v689, %v721
  %vm836 = vcmp.eq.s32.totalorder %v690, %v717
  %vm837 = vcmp.eq.s32.totalorder %v690, %v721
  %vm838 = vcmp.eq.s32.totalorder %v691, %v717
  %vm839 = vcmp.eq.s32.totalorder %v691, %v721
  %vm840 = vcmp.eq.s32.totalorder %v692, %v717
  %vm841 = vcmp.eq.s32.totalorder %v692, %v721
  %vm842 = vcmp.eq.s32.totalorder %v693, %v717
  %vm843 = vcmp.eq.s32.totalorder %v693, %v721
  %vm844 = vcmp.eq.s32.totalorder %v694, %v717
  %vm845 = vcmp.eq.s32.totalorder %v694, %v721
  %vm846 = vcmp.eq.s32.totalorder %v695, %v717
  %vm847 = vcmp.eq.s32.totalorder %v695, %v721
  %vm848 = vcmp.eq.s32.totalorder %v696, %v717
  %vm849 = vcmp.eq.s32.totalorder %v696, %v721
  %vm850 = vcmp.eq.s32.totalorder %v697, %v717
  %vm851 = vcmp.eq.s32.totalorder %v697, %v721
  %vm852 = vcmp.eq.s32.totalorder %v698, %v717
  %vm853 = vcmp.eq.s32.totalorder %v698, %v721
  %vm854 = vcmp.eq.s32.totalorder %v699, %v717
  %vm855 = vcmp.eq.s32.totalorder %v699, %v721
  %vm856 = vcmp.eq.s32.totalorder %v700, %v717
  %vm857 = vcmp.eq.s32.totalorder %v700, %v721
  %vm858 = vcmp.eq.s32.totalorder %v701, %v717
  %vm859 = vcmp.eq.s32.totalorder %v701, %v721
  %vm860 = vcmp.eq.s32.totalorder %v702, %v717
  %vm861 = vcmp.eq.s32.totalorder %v702, %v721
  %vm862 = vcmp.eq.s32.totalorder %v703, %v717
  %vm863 = vcmp.eq.s32.totalorder %v703, %v721
  %vm864 = vcmp.eq.s32.totalorder %v704, %v717
  %vm865 = vcmp.eq.s32.totalorder %v704, %v721
  %vm866 = vcmp.eq.s32.totalorder %v705, %v717
  %vm867 = vcmp.eq.s32.totalorder %v705, %v721
  %vm868 = vcmp.eq.s32.totalorder %v706, %v717
  %vm869 = vcmp.eq.s32.totalorder %v706, %v721
  %vm870 = vcmp.eq.s32.totalorder %v707, %v717
  %vm871 = vcmp.eq.s32.totalorder %v707, %v721
  %vm872 = vcmp.eq.s32.totalorder %v708, %v717
  %vm873 = vcmp.eq.s32.totalorder %v708, %v721
  %vm874 = vcmp.eq.s32.totalorder %v709, %v717
  %vm875 = vcmp.eq.s32.totalorder %v709, %v721
  %vm876 = vcmp.eq.s32.totalorder %v710, %v717
  %vm877 = vcmp.eq.s32.totalorder %v710, %v721
  %vm878 = vcmp.eq.s32.totalorder %v711, %v717
  %vm879 = vcmp.eq.s32.totalorder %v711, %v721
  %vm880 = vcmp.eq.s32.totalorder %v712, %v717
  %vm881 = vcmp.eq.s32.totalorder %v712, %v721
  %vm882 = vcmp.eq.s32.totalorder %v713, %v717
  %vm883 = vcmp.eq.s32.totalorder %v713, %v721
  %v884 = vsel %vm722, 1.0, 0.0
  %v885 = vsel %vm723, 1.0, 0.0
  %v886 = vsel %vm724, 1.0, 0.0
  %v887 = vsel %vm725, 1.0, 0.0
  %v888 = vsel %vm726, 1.0, 0.0
  %v889 = vsel %vm727, 1.0, 0.0
  %v890 = vsel %vm728, 1.0, 0.0
  %v891 = vsel %vm729, 1.0, 0.0
  %v892 = vsel %vm730, 1.0, 0.0
  %v893 = vsel %vm731, 1.0, 0.0
  %v894 = vsel %vm732, 1.0, 0.0
  %v895 = vsel %vm733, 1.0, 0.0
  %v896 = vsel %vm734, 1.0, 0.0
  %v897 = vsel %vm735, 1.0, 0.0
  %v898 = vsel %vm736, 1.0, 0.0
  %v899 = vsel %vm737, 1.0, 0.0
  %v900 = vsel %vm738, 1.0, 0.0
  %v901 = vsel %vm739, 1.0, 0.0
  %v902 = vsel %vm740, 1.0, 0.0
  %v903 = vsel %vm741, 1.0, 0.0
  %v904 = vsel %vm742, 1.0, 0.0
  %v905 = vsel %vm743, 1.0, 0.0
  %v906 = vsel %vm744, 1.0, 0.0
  %v907 = vsel %vm745, 1.0, 0.0
  %v908 = vsel %vm746, 1.0, 0.0
  %v909 = vsel %vm747, 1.0, 0.0
  %v910 = vsel %vm748, 1.0, 0.0
  %v911 = vsel %vm749, 1.0, 0.0
  %v912 = vsel %vm750, 1.0, 0.0
  %v913 = vsel %vm751, 1.0, 0.0
  %v914 = vsel %vm752, 1.0, 0.0
  %v915 = vsel %vm753, 1.0, 0.0
  %v916 = vsel %vm754, 1.0, 0.0
  %v917 = vsel %vm755, 1.0, 0.0
  %v918 = vsel %vm756, 1.0, 0.0
  %v919 = vsel %vm757, 1.0, 0.0
  %v920 = vsel %vm758, 1.0, 0.0
  %v921 = vsel %vm759, 1.0, 0.0
  %v922 = vsel %vm760, 1.0, 0.0
  %v923 = vsel %vm761, 1.0, 0.0
  %v924 = vsel %vm762, 1.0, 0.0
  %v925 = vsel %vm763, 1.0, 0.0
  %v926 = vsel %vm764, 1.0, 0.0
  %v927 = vsel %vm765, 1.0, 0.0
  %v928 = vsel %vm766, 1.0, 0.0
  %v929 = vsel %vm767, 1.0, 0.0
  %v930 = vsel %vm768, 1.0, 0.0
  %v931 = vsel %vm769, 1.0, 0.0
  %v932 = vsel %vm770, 1.0, 0.0
  %v933 = vsel %vm771, 1.0, 0.0
  %v934 = vsel %vm772, 1.0, 0.0
  %v935 = vsel %vm773, 1.0, 0.0
  %v936 = vsel %vm774, 1.0, 0.0
  %v937 = vsel %vm775, 1.0, 0.0
  %v938 = vsel %vm776, 1.0, 0.0
  %v939 = vsel %vm777, 1.0, 0.0
  %v940 = vsel %vm778, 1.0, 0.0
  %v941 = vsel %vm779, 1.0, 0.0
  %v942 = vsel %vm780, 1.0, 0.0
  %v943 = vsel %vm781, 1.0, 0.0
  %v944 = vsel %vm782, 1.0, 0.0
  %v945 = vsel %vm783, 1.0, 0.0
  %v946 = vsel %vm784, 1.0, 0.0
  %v947 = vsel %vm785, 1.0, 0.0
  %v948 = vsel %vm786, 1.0, 0.0
  %v949 = vsel %vm787, 1.0, 0.0
  %v950 = vsel %vm788, 1.0, 0.0
  %v951 = vsel %vm789, 1.0, 0.0
  %v952 = vsel %vm790, 1.0, 0.0
  %v953 = vsel %vm791, 1.0, 0.0
  %v954 = vsel %vm792, 1.0, 0.0
  %v955 = vsel %vm793, 1.0, 0.0
  %v956 = vsel %vm794, 1.0, 0.0
  %v957 = vsel %vm795, 1.0, 0.0
  %v958 = vsel %vm796, 1.0, 0.0
  %v959 = vsel %vm797, 1.0, 0.0
  %v960 = vsel %vm798, 1.0, 0.0
  %v961 = vsel %vm799, 1.0, 0.0
  %v962 = vsel %vm800, 1.0, 0.0
  %v963 = vsel %vm801, 1.0, 0.0
  %v964 = vsel %vm802, 1.0, 0.0
  %v965 = vsel %vm803, 1.0, 0.0
  %v966 = vsel %vm804, 1.0, 0.0
  %v967 = vsel %vm805, 1.0, 0.0
  %v968 = vsel %vm806, 1.0, 0.0
  %v969 = vsel %vm807, 1.0, 0.0
  %v970 = vsel %vm808, 1.0, 0.0
  %v971 = vsel %vm809, 1.0, 0.0
  %v972 = vsel %vm810, 1.0, 0.0
  %v973 = vsel %vm811, 1.0, 0.0
  %v974 = vsel %vm812, 1.0, 0.0
  %v975 = vsel %vm813, 1.0, 0.0
  %v976 = vsel %vm814, 1.0, 0.0
  %v977 = vsel %vm815, 1.0, 0.0
  %v978 = vsel %vm816, 1.0, 0.0
  %v979 = vsel %vm817, 1.0, 0.0
  %v980 = vsel %vm818, 1.0, 0.0
  %v981 = vsel %vm819, 1.0, 0.0
  %v982 = vsel %vm820, 1.0, 0.0
  %v983 = vsel %vm821, 1.0, 0.0
  %v984 = vsel %vm822, 1.0, 0.0
  %v985 = vsel %vm823, 1.0, 0.0
  %v986 = vsel %vm824, 1.0, 0.0
  %v987 = vsel %vm825, 1.0, 0.0
  %v988 = vsel %vm826, 1.0, 0.0
  %v989 = vsel %vm827, 1.0, 0.0
  %v990 = vsel %vm828, 1.0, 0.0
  %v991 = vsel %vm829, 1.0, 0.0
  %v992 = vsel %vm830, 1.0, 0.0
  %v993 = vsel %vm831, 1.0, 0.0
  %v994 = vsel %vm832, 1.0, 0.0
  %v995 = vsel %vm833, 1.0, 0.0
  %v996 = vsel %vm834, 1.0, 0.0
  %v997 = vsel %vm835, 1.0, 0.0
  %v998 = vsel %vm836, 1.0, 0.0
  %v999 = vsel %vm837, 1.0, 0.0
  %v1000 = vsel %vm838, 1.0, 0.0
  %v1001 = vsel %vm839, 1.0, 0.0
  %v1002 = vsel %vm840, 1.0, 0.0
  %v1003 = vsel %vm841, 1.0, 0.0
  %v1004 = vsel %vm842, 1.0, 0.0
  %v1005 = vsel %vm843, 1.0, 0.0
  %v1006 = vsel %vm844, 1.0, 0.0
  %v1007 = vsel %vm845, 1.0, 0.0
  %v1008 = vsel %vm846, 1.0, 0.0
  %v1009 = vsel %vm847, 1.0, 0.0
  %v1010 = vsel %vm848, 1.0, 0.0
  %v1011 = vsel %vm849, 1.0, 0.0
  %v1012 = vsel %vm850, 1.0, 0.0
  %v1013 = vsel %vm851, 1.0, 0.0
  %v1014 = vsel %vm852, 1.0, 0.0
  %v1015 = vsel %vm853, 1.0, 0.0
  %v1016 = vsel %vm854, 1.0, 0.0
  %v1017 = vsel %vm855, 1.0, 0.0
  %v1018 = vsel %vm856, 1.0, 0.0
  %v1019 = vsel %vm857, 1.0, 0.0
  %v1020 = vsel %vm858, 1.0, 0.0
  %v1021 = vsel %vm859, 1.0, 0.0
  %v1022 = vsel %vm860, 1.0, 0.0
  %v1023 = vsel %vm861, 1.0, 0.0
  %v1024 = vsel %vm862, 1.0, 0.0
  %v1025 = vsel %vm863, 1.0, 0.0
  %v1026 = vsel %vm864, 1.0, 0.0
  %v1027 = vsel %vm865, 1.0, 0.0
  %v1028 = vsel %vm866, 1.0, 0.0
  %v1029 = vsel %vm867, 1.0, 0.0
  %v1030 = vsel %vm868, 1.0, 0.0
  %v1031 = vsel %vm869, 1.0, 0.0
  %v1032 = vsel %vm870, 1.0, 0.0
  %v1033 = vsel %vm871, 1.0, 0.0
  %v1034 = vsel %vm872, 1.0, 0.0
  %v1035 = vsel %vm873, 1.0, 0.0
  %v1036 = vsel %vm874, 1.0, 0.0
  %v1037 = vsel %vm875, 1.0, 0.0
  %v1038 = vsel %vm876, 1.0, 0.0
  %v1039 = vsel %vm877, 1.0, 0.0
  %v1040 = vsel %vm878, 1.0, 0.0
  %v1041 = vsel %vm879, 1.0, 0.0
  %v1042 = vsel %vm880, 1.0, 0.0
  %v1043 = vsel %vm881, 1.0, 0.0
  %v1044 = vsel %vm882, 1.0, 0.0
  %v1045 = vsel %vm883, 1.0, 0.0
  %1052 = vrot.lane.b32.xlu0 %v625, 11
  %v1053 = vpop.permute.xlu0 %1052
  %1054 = vrot.lane.b32.xlu0 %v626, 11
  %v1055 = vpop.permute.xlu0 %1054
  %1056 = vrot.lane.b32.xlu0 %v627, 11
  %v1057 = vpop.permute.xlu0 %1056
  %1058 = vrot.lane.b32.xlu0 %v628, 11
  %v1059 = vpop.permute.xlu0 %1058
  %1060 = vrot.lane.b32.xlu0 %v629, 11
  %v1061 = vpop.permute.xlu0 %1060
  %1062 = vrot.lane.b32.xlu0 %v630, 11
  %v1063 = vpop.permute.xlu0 %1062
  %v1064 = vsel %vm530, %v1053, %v1055
  %v1065 = vsel %vm530, %v1055, %v1057
  %v1066 = vsel %vm530, %v1057, %v1059
  %v1067 = vsel %vm530, %v1059, %v1061
  %v1068 = vsel %vm530, %v1061, %v1063
  %vm1074 = vcmask 64512
  %v1075 = vsel %vm1074, %v1063, 0
  %1077 = vmatprep.subr.mxu0 %v915
  %1078 = vmatpush1.msra.mxu0 %v914
  %1079 = vmatprep.subr.mxu0 %v913
  %1080 = vmatpush1.msra.mxu0 %v912
  %1081 = vmatprep.subr.mxu0 %v911
  %1082 = vmatpush1.msra.mxu0 %v910
  %1083 = vmatprep.subr.mxu0 %v909
  %1084 = vmatpush1.msra.mxu0 %v908
  %1085 = vmatprep.subr.mxu0 %v907
  %1086 = vmatpush1.msra.mxu0 %v906
  %1087 = vmatprep.subr.mxu0 %v905
  %1088 = vmatpush1.msra.mxu0 %v904
  %1089 = vmatprep.subr.mxu0 %v903
  %1090 = vmatpush1.msra.mxu0 %v902
  %1091 = vmatprep.subr.mxu0 %v901
  %1092 = vmatpush1.msra.mxu0 %v900
  %1093 = vmatprep.subr.mxu0 %v899
  %1094 = vmatpush1.msra.mxu0 %v898
  %1095 = vmatprep.subr.mxu0 %v897
  %1096 = vmatpush1.msra.mxu0 %v896
  %1097 = vmatprep.subr.mxu0 %v895
  %1098 = vmatpush1.msra.mxu0 %v894
  %1099 = vmatprep.subr.mxu0 %v893
  %1100 = vmatpush1.msra.mxu0 %v892
  %1101 = vmatprep.subr.mxu0 %v891
  %1102 = vmatpush1.msra.mxu0 %v890
  %1103 = vmatprep.subr.mxu0 %v889
  %1104 = vmatpush1.msra.mxu0 %v888
  %1105 = vmatprep.subr.mxu0 %v887
  %1106 = vmatpush1.msra.mxu0 %v886
  %1107 = vmatprep.subr.mxu0 %v885
  %1108 = vmatpush1.msra.mxu0 %v884
  %1109 = vmatprep.subr.mxu0 %v947
  %1110 = vmatpush2.msra.mxu0 %v946
  %1111 = vmatprep.subr.mxu0 %v945
  %1112 = vmatpush2.msra.mxu0 %v944
  %1113 = vmatprep.subr.mxu0 %v943
  %1114 = vmatpush2.msra.mxu0 %v942
  %1115 = vmatprep.subr.mxu0 %v941
  %1116 = vmatpush2.msra.mxu0 %v940
  %1117 = vmatprep.subr.mxu0 %v939
  %1118 = vmatpush2.msra.mxu0 %v938
  %1119 = vmatprep.subr.mxu0 %v937
  %1120 = vmatpush2.msra.mxu0 %v936
  %1121 = vmatprep.subr.mxu0 %v935
  %1122 = vmatpush2.msra.mxu0 %v934
  %1123 = vmatprep.subr.mxu0 %v933
  %1124 = vmatpush2.msra.mxu0 %v932
  %1125 = vmatprep.subr.mxu0 %v931
  %1126 = vmatpush2.msra.mxu0 %v930
  %1127 = vmatprep.subr.mxu0 %v929
  %1128 = vmatpush2.msra.mxu0 %v928
  %1129 = vmatprep.subr.mxu0 %v927
  %1130 = vmatpush2.msra.mxu0 %v926
  %1131 = vmatprep.subr.mxu0 %v925
  %1132 = vmatpush2.msra.mxu0 %v924
  %1133 = vmatprep.subr.mxu0 %v923
  %1134 = vmatpush2.msra.mxu0 %v922
  %1135 = vmatprep.subr.mxu0 %v921
  %1136 = vmatpush2.msra.mxu0 %v920
  %1137 = vmatprep.subr.mxu0 %v919
  %1138 = vmatpush2.msra.mxu0 %v918
  %1139 = vmatprep.subr.mxu0 %v917
  %1140 = vmatpush2.msra.mxu0 %v916
  %1141 = vmatprep.mubr.f32.mxu0 %v1065
  %1142 = vmatmul.mubr.f32.gmra.mxu0 %v1064
  %v1143 = vpop.f32.mrf.mxu0
  %v1144 = vadd.f32 0.0, %v1143
  %v1145 = vpop.f32.mrf.mxu0
  %v1146 = vadd.f32 0.0, %v1145
  %1147 = vdwg.mxu0
  %1148 = vmatprep.subr.mxu0 %v979
  %1149 = vmatpush1.msra.mxu0 %v978
  %1150 = vmatprep.subr.mxu0 %v977
  %1151 = vmatpush1.msra.mxu0 %v976
  %1152 = vmatprep.subr.mxu0 %v975
  %1153 = vmatpush1.msra.mxu0 %v974
  %1154 = vmatprep.subr.mxu0 %v973
  %1155 = vmatpush1.msra.mxu0 %v972
  %1156 = vmatprep.subr.mxu0 %v971
  %1157 = vmatpush1.msra.mxu0 %v970
  %1158 = vmatprep.subr.mxu0 %v969
  %1159 = vmatpush1.msra.mxu0 %v968
  %1160 = vmatprep.subr.mxu0 %v967
  %1161 = vmatpush1.msra.mxu0 %v966
  %1162 = vmatprep.subr.mxu0 %v965
  %1163 = vmatpush1.msra.mxu0 %v964
  %1164 = vmatprep.subr.mxu0 %v963
  %1165 = vmatpush1.msra.mxu0 %v962
  %1166 = vmatprep.subr.mxu0 %v961
  %1167 = vmatpush1.msra.mxu0 %v960
  %1168 = vmatprep.subr.mxu0 %v959
  %1169 = vmatpush1.msra.mxu0 %v958
  %1170 = vmatprep.subr.mxu0 %v957
  %1171 = vmatpush1.msra.mxu0 %v956
  %1172 = vmatprep.subr.mxu0 %v955
  %1173 = vmatpush1.msra.mxu0 %v954
  %1174 = vmatprep.subr.mxu0 %v953
  %1175 = vmatpush1.msra.mxu0 %v952
  %1176 = vmatprep.subr.mxu0 %v951
  %1177 = vmatpush1.msra.mxu0 %v950
  %1178 = vmatprep.subr.mxu0 %v949
  %1179 = vmatpush1.msra.mxu0 %v948
  %1180 = vmatprep.subr.mxu0 %v1011
  %1181 = vmatpush2.msra.mxu0 %v1010
  %1182 = vmatprep.subr.mxu0 %v1009
  %1183 = vmatpush2.msra.mxu0 %v1008
  %1184 = vmatprep.subr.mxu0 %v1007
  %1185 = vmatpush2.msra.mxu0 %v1006
  %1186 = vmatprep.subr.mxu0 %v1005
  %1187 = vmatpush2.msra.mxu0 %v1004
  %1188 = vmatprep.subr.mxu0 %v1003
  %1189 = vmatpush2.msra.mxu0 %v1002
  %1190 = vmatprep.subr.mxu0 %v1001
  %1191 = vmatpush2.msra.mxu0 %v1000
  %1192 = vmatprep.subr.mxu0 %v999
  %1193 = vmatpush2.msra.mxu0 %v998
  %1194 = vmatprep.subr.mxu0 %v997
  %1195 = vmatpush2.msra.mxu0 %v996
  %1196 = vmatprep.subr.mxu0 %v995
  %1197 = vmatpush2.msra.mxu0 %v994
  %1198 = vmatprep.subr.mxu0 %v993
  %1199 = vmatpush2.msra.mxu0 %v992
  %1200 = vmatprep.subr.mxu0 %v991
  %1201 = vmatpush2.msra.mxu0 %v990
  %1202 = vmatprep.subr.mxu0 %v989
  %1203 = vmatpush2.msra.mxu0 %v988
  %1204 = vmatprep.subr.mxu0 %v987
  %1205 = vmatpush2.msra.mxu0 %v986
  %1206 = vmatprep.subr.mxu0 %v985
  %1207 = vmatpush2.msra.mxu0 %v984
  %1208 = vmatprep.subr.mxu0 %v983
  %1209 = vmatpush2.msra.mxu0 %v982
  %1210 = vmatprep.subr.mxu0 %v981
  %1211 = vmatpush2.msra.mxu0 %v980
  %1212 = vmatprep.mubr.f32.mxu0 %v1067
  %1213 = vmatmul.mubr.f32.gmra.mxu0 %v1066
  %v1214 = vpop.f32.mrf.mxu0
  %v1215 = vadd.f32 %v1144, %v1214
  %v1216 = vpop.f32.mrf.mxu0
  %v1217 = vadd.f32 %v1146, %v1216
  %1218 = vdwg.mxu0
  %1219 = vmatprep.subr.mxu0 %v1043
  %1220 = vmatpush1.msra.mxu0 %v1042
  %1221 = vmatprep.subr.mxu0 %v1041
  %1222 = vmatpush1.msra.mxu0 %v1040
  %1223 = vmatprep.subr.mxu0 %v1039
  %1224 = vmatpush1.msra.mxu0 %v1038
  %1225 = vmatprep.subr.mxu0 %v1037
  %1226 = vmatpush1.msra.mxu0 %v1036
  %1227 = vmatprep.subr.mxu0 %v1035
  %1228 = vmatpush1.msra.mxu0 %v1034
  %1229 = vmatprep.subr.mxu0 %v1033
  %1230 = vmatpush1.msra.mxu0 %v1032
  %1231 = vmatprep.subr.mxu0 %v1031
  %1232 = vmatpush1.msra.mxu0 %v1030
  %1233 = vmatprep.subr.mxu0 %v1029
  %1234 = vmatpush1.msra.mxu0 %v1028
  %1235 = vmatprep.subr.mxu0 %v1027
  %1236 = vmatpush1.msra.mxu0 %v1026
  %1237 = vmatprep.subr.mxu0 %v1025
  %1238 = vmatpush1.msra.mxu0 %v1024
  %1239 = vmatprep.subr.mxu0 %v1023
  %1240 = vmatpush1.msra.mxu0 %v1022
  %1241 = vmatprep.subr.mxu0 %v1021
  %1242 = vmatpush1.msra.mxu0 %v1020
  %1243 = vmatprep.subr.mxu0 %v1019
  %1244 = vmatpush1.msra.mxu0 %v1018
  %1245 = vmatprep.subr.mxu0 %v1017
  %1246 = vmatpush1.msra.mxu0 %v1016
  %1247 = vmatprep.subr.mxu0 %v1015
  %1248 = vmatpush1.msra.mxu0 %v1014
  %1249 = vmatprep.subr.mxu0 %v1013
  %1250 = vmatpush1.msra.mxu0 %v1012
  %1251 = vmatprep.subr.mxu0 0.0
  %1252 = vmatpush2.msra.mxu0 0.0
  %1253 = vmatprep.subr.mxu0 0.0
  %1254 = vmatpush2.msra.mxu0 0.0
  %1255 = vmatprep.subr.mxu0 0.0
  %1256 = vmatpush2.msra.mxu0 0.0
  %1257 = vmatprep.subr.mxu0 0.0
  %1258 = vmatpush2.msra.mxu0 0.0
  %1259 = vmatprep.subr.mxu0 0.0
  %1260 = vmatpush2.msra.mxu0 0.0
  %1261 = vmatprep.subr.mxu0 0.0
  %1262 = vmatpush2.msra.mxu0 0.0
  %1263 = vmatprep.subr.mxu0 0.0
  %1264 = vmatpush2.msra.mxu0 0.0
  %1265 = vmatprep.subr.mxu0 0.0
  %1266 = vmatpush2.msra.mxu0 0.0
  %1267 = vmatprep.subr.mxu0 0.0
  %1268 = vmatpush2.msra.mxu0 0.0
  %1269 = vmatprep.subr.mxu0 0.0
  %1270 = vmatpush2.msra.mxu0 0.0
  %1271 = vmatprep.subr.mxu0 0.0
  %1272 = vmatpush2.msra.mxu0 0.0
  %1273 = vmatprep.subr.mxu0 0.0
  %1274 = vmatpush2.msra.mxu0 0.0
  %1275 = vmatprep.subr.mxu0 0.0
  %1276 = vmatpush2.msra.mxu0 0.0
  %1277 = vmatprep.subr.mxu0 0.0
  %1278 = vmatpush2.msra.mxu0 0.0
  %1279 = vmatprep.subr.mxu0 0.0
  %1280 = vmatpush2.msra.mxu0 0.0
  %1281 = vmatprep.subr.mxu0 %v1045
  %1282 = vmatpush2.msra.mxu0 %v1044
  %1283 = vmatprep.mubr.f32.mxu0 %v1075
  %1284 = vmatmul.mubr.f32.gmra.mxu0 %v1068
  %v1285 = vpop.f32.mrf.mxu0
  %v1286 = vadd.f32 %v1215, %v1285
  %v1287 = vpop.f32.mrf.mxu0
  %v1288 = vadd.f32 %v1217, %v1287
  %1289 = vdwg.mxu0
  %vm1290 = vcmask 1048128
  %1291 = vrot.lane.b32.xlu0 %v1286, 72
  %v1292 = vpop.permute.xlu0 %1291
  %v1293 = vsel %vm1290, %v1292, %v1288
  %1294 = vrot.lane.b32.xlu0 %v1293, 72
  %v1295 = vpop.permute.xlu0 %1294
  %v1296 = vsel %vm1290, %v1295, %v1292
  %1298 = vrot.lane.b32.xlu0 %v21, 124
  %v1299 = vpop.permute.xlu0 %1298
  %1303 = vrot.lane.b32.xlu0 %v1293, 66
  %v1304 = vpop.permute.xlu0 %1303
  %1305 = vrot.lane.b32.xlu0 %v1296, 66
  %v1306 = vpop.permute.xlu0 %1305
  %1307 = vrot.lane.b32.xlu0 %v1295, 66
  %v1308 = vpop.permute.xlu0 %1307
  %vm1309 = vcmask 539648
  %v1310 = vsel %vm1309, %v1304, %v1306
  %v1311 = vsel %vm1309, %v1306, %v1308
  %vm1312 = vcmask 31744
  %v1313 = vsel %vm1312, %v1299, 0
  %vm1315 = vcmask 1043456
  %v1316 = vsel %vm1315, %v1310, 0
  %v1318 = vsel %vm1315, %v1311, 0
  %1320 = vmatprep.subr.mxu0 0.0
  %1321 = vmatpush1.msra.mxu0 0.0
  %1322 = vmatprep.subr.mxu0 0.0
  %1323 = vmatpush1.msra.mxu0 0.0
  %1324 = vmatprep.subr.mxu0 0.0
  %1325 = vmatpush1.msra.mxu0 0.0
  %1326 = vmatprep.subr.mxu0 0.0
  %1327 = vmatpush1.msra.mxu0 0.0
  %1328 = vmatprep.subr.mxu0 0.0
  %1329 = vmatpush1.msra.mxu0 0.0
  %1330 = vmatprep.subr.mxu0 0.0
  %1331 = vmatpush1.msra.mxu0 0.0
  %1332 = vmatprep.subr.mxu0 0.0
  %1333 = vmatpush1.msra.mxu0 0.0
  %1334 = vmatprep.subr.mxu0 0.0
  %1335 = vmatpush1.msra.mxu0 0.0
  %1336 = vmatprep.subr.mxu0 0.0
  %1337 = vmatpush1.msra.mxu0 0.0
  %1338 = vmatprep.subr.mxu0 0.0
  %1339 = vmatpush1.msra.mxu0 0.0
  %1340 = vmatprep.subr.mxu0 0.0
  %1341 = vmatpush1.msra.mxu0 0.0
  %1342 = vmatprep.subr.mxu0 0.0
  %1343 = vmatpush1.msra.mxu0 0.0
  %1344 = vmatprep.subr.mxu0 0.0
  %1345 = vmatpush1.msra.mxu0 0.0
  %1346 = vmatprep.subr.mxu0 0.0
  %1347 = vmatpush1.msra.mxu0 0.0
  %1348 = vmatprep.subr.mxu0 0.0
  %1349 = vmatpush1.msra.mxu0 0.0
  %1350 = vmatprep.subr.mxu0 %v1318
  %1351 = vmatpush1.msra.mxu0 %v1316
  %1352 = vmatprep.subr.mxu0 0.0
  %1353 = vmatpush2.msra.mxu0 0.0
  %1354 = vmatprep.subr.mxu0 0.0
  %1355 = vmatpush2.msra.mxu0 0.0
  %1356 = vmatprep.subr.mxu0 0.0
  %1357 = vmatpush2.msra.mxu0 0.0
  %1358 = vmatprep.subr.mxu0 0.0
  %1359 = vmatpush2.msra.mxu0 0.0
  %1360 = vmatprep.subr.mxu0 0.0
  %1361 = vmatpush2.msra.mxu0 0.0
  %1362 = vmatprep.subr.mxu0 0.0
  %1363 = vmatpush2.msra.mxu0 0.0
  %1364 = vmatprep.subr.mxu0 0.0
  %1365 = vmatpush2.msra.mxu0 0.0
  %1366 = vmatprep.subr.mxu0 0.0
  %1367 = vmatpush2.msra.mxu0 0.0
  %1368 = vmatprep.subr.mxu0 0.0
  %1369 = vmatpush2.msra.mxu0 0.0
  %1370 = vmatprep.subr.mxu0 0.0
  %1371 = vmatpush2.msra.mxu0 0.0
  %1372 = vmatprep.subr.mxu0 0.0
  %1373 = vmatpush2.msra.mxu0 0.0
  %1374 = vmatprep.subr.mxu0 0.0
  %1375 = vmatpush2.msra.mxu0 0.0
  %1376 = vmatprep.subr.mxu0 0.0
  %1377 = vmatpush2.msra.mxu0 0.0
  %1378 = vmatprep.subr.mxu0 0.0
  %1379 = vmatpush2.msra.mxu0 0.0
  %1380 = vmatprep.subr.mxu0 0.0
  %1381 = vmatpush2.msra.mxu0 0.0
  %1382 = vmatprep.subr.mxu0 0.0
  %1383 = vmatpush2.msra.mxu0 0.0
  %1384 = vmatprep.mubr.f32.mxu0 0.0
  %1385 = vmatmul.mubr.f32.gmra.mxu0 %v1313
  %v1386 = vpop.f32.mrf.mxu0
  %v1387 = vadd.f32 0.0, %v1386
  %v1388 = vpop.f32.mrf.mxu0
  %v1389 = vadd.f32 0.0, %v1388
  %1390 = vdwg.mxu0
  %1391 = vrot.lane.b32.xlu0 %v21, 116
  %v1392 = vpop.permute.xlu0 %1391
  %1393 = vrot.lane.b32.xlu0 %v1293, 57
  %v1394 = vpop.permute.xlu0 %1393
  %1395 = vrot.lane.b32.xlu0 %v1296, 57
  %v1396 = vpop.permute.xlu0 %1395
  %1397 = vrot.lane.b32.xlu0 %v1295, 57
  %v1398 = vpop.permute.xlu0 %1397
  %vm1399 = vcmask 465920
  %v1400 = vsel %vm1399, %v1394, %v1396
  %v1401 = vsel %vm1399, %v1396, %v1398
  %v1402 = vsel %vm1312, %v1392, 0
  %v1404 = vsel %vm1315, %v1400, 0
  %v1406 = vsel %vm1315, %v1401, 0
  %1408 = vmatprep.subr.mxu0 0.0
  %1409 = vmatpush1.msra.mxu0 0.0
  %1410 = vmatprep.subr.mxu0 0.0
  %1411 = vmatpush1.msra.mxu0 0.0
  %1412 = vmatprep.subr.mxu0 0.0
  %1413 = vmatpush1.msra.mxu0 0.0
  %1414 = vmatprep.subr.mxu0 0.0
  %1415 = vmatpush1.msra.mxu0 0.0
  %1416 = vmatprep.subr.mxu0 0.0
  %1417 = vmatpush1.msra.mxu0 0.0
  %1418 = vmatprep.subr.mxu0 0.0
  %1419 = vmatpush1.msra.mxu0 0.0
  %1420 = vmatprep.subr.mxu0 0.0
  %1421 = vmatpush1.msra.mxu0 0.0
  %1422 = vmatprep.subr.mxu0 0.0
  %1423 = vmatpush1.msra.mxu0 0.0
  %1424 = vmatprep.subr.mxu0 0.0
  %1425 = vmatpush1.msra.mxu0 0.0
  %1426 = vmatprep.subr.mxu0 0.0
  %1427 = vmatpush1.msra.mxu0 0.0
  %1428 = vmatprep.subr.mxu0 0.0
  %1429 = vmatpush1.msra.mxu0 0.0
  %1430 = vmatprep.subr.mxu0 0.0
  %1431 = vmatpush1.msra.mxu0 0.0
  %1432 = vmatprep.subr.mxu0 0.0
  %1433 = vmatpush1.msra.mxu0 0.0
  %1434 = vmatprep.subr.mxu0 0.0
  %1435 = vmatpush1.msra.mxu0 0.0
  %1436 = vmatprep.subr.mxu0 0.0
  %1437 = vmatpush1.msra.mxu0 0.0
  %1438 = vmatprep.subr.mxu0 %v1406
  %1439 = vmatpush1.msra.mxu0 %v1404
  %1440 = vmatprep.subr.mxu0 0.0
  %1441 = vmatpush2.msra.mxu0 0.0
  %1442 = vmatprep.subr.mxu0 0.0
  %1443 = vmatpush2.msra.mxu0 0.0
  %1444 = vmatprep.subr.mxu0 0.0
  %1445 = vmatpush2.msra.mxu0 0.0
  %1446 = vmatprep.subr.mxu0 0.0
  %1447 = vmatpush2.msra.mxu0 0.0
  %1448 = vmatprep.subr.mxu0 0.0
  %1449 = vmatpush2.msra.mxu0 0.0
  %1450 = vmatprep.subr.mxu0 0.0
  %1451 = vmatpush2.msra.mxu0 0.0
  %1452 = vmatprep.subr.mxu0 0.0
  %1453 = vmatpush2.msra.mxu0 0.0
  %1454 = vmatprep.subr.mxu0 0.0
  %1455 = vmatpush2.msra.mxu0 0.0
  %1456 = vmatprep.subr.mxu0 0.0
  %1457 = vmatpush2.msra.mxu0 0.0
  %1458 = vmatprep.subr.mxu0 0.0
  %1459 = vmatpush2.msra.mxu0 0.0
  %1460 = vmatprep.subr.mxu0 0.0
  %1461 = vmatpush2.msra.mxu0 0.0
  %1462 = vmatprep.subr.mxu0 0.0
  %1463 = vmatpush2.msra.mxu0 0.0
  %1464 = vmatprep.subr.mxu0 0.0
  %1465 = vmatpush2.msra.mxu0 0.0
  %1466 = vmatprep.subr.mxu0 0.0
  %1467 = vmatpush2.msra.mxu0 0.0
  %1468 = vmatprep.subr.mxu0 0.0
  %1469 = vmatpush2.msra.mxu0 0.0
  %1470 = vmatprep.subr.mxu0 0.0
  %1471 = vmatpush2.msra.mxu0 0.0
  %1472 = vmatprep.mubr.f32.mxu0 0.0
  %1473 = vmatmul.mubr.f32.gmra.mxu0 %v1402
  %v1474 = vpop.f32.mrf.mxu0
  %v1475 = vadd.f32 0.0, %v1474
  %v1476 = vpop.f32.mrf.mxu0
  %v1477 = vadd.f32 0.0, %v1476
  %1478 = vdwg.mxu0
  %1479 = vrot.lane.b32.xlu0 %v21, 108
  %v1480 = vpop.permute.xlu0 %1479
  %1482 = vrot.lane.b32.xlu0 %v1286, 127
  %v1483 = vpop.permute.xlu0 %1482
  %1484 = vrot.lane.b32.xlu0 %v1293, 127
  %v1485 = vpop.permute.xlu0 %1484
  %v1486 = vsel %vm228, %v1483, %v1485
  %v1487 = vsel %vm1312, %v1480, 0
  %v1489 = vsel %vm1315, %v1486, 0
  %v1491 = vsel %vm1315, %v1485, 0
  %1493 = vmatprep.subr.mxu0 0.0
  %1494 = vmatpush1.msra.mxu0 0.0
  %1495 = vmatprep.subr.mxu0 0.0
  %1496 = vmatpush1.msra.mxu0 0.0
  %1497 = vmatprep.subr.mxu0 0.0
  %1498 = vmatpush1.msra.mxu0 0.0
  %1499 = vmatprep.subr.mxu0 0.0
  %1500 = vmatpush1.msra.mxu0 0.0
  %1501 = vmatprep.subr.mxu0 0.0
  %1502 = vmatpush1.msra.mxu0 0.0
  %1503 = vmatprep.subr.mxu0 0.0
  %1504 = vmatpush1.msra.mxu0 0.0
  %1505 = vmatprep.subr.mxu0 0.0
  %1506 = vmatpush1.msra.mxu0 0.0
  %1507 = vmatprep.subr.mxu0 0.0
  %1508 = vmatpush1.msra.mxu0 0.0
  %1509 = vmatprep.subr.mxu0 0.0
  %1510 = vmatpush1.msra.mxu0 0.0
  %1511 = vmatprep.subr.mxu0 0.0
  %1512 = vmatpush1.msra.mxu0 0.0
  %1513 = vmatprep.subr.mxu0 0.0
  %1514 = vmatpush1.msra.mxu0 0.0
  %1515 = vmatprep.subr.mxu0 0.0
  %1516 = vmatpush1.msra.mxu0 0.0
  %1517 = vmatprep.subr.mxu0 0.0
  %1518 = vmatpush1.msra.mxu0 0.0
  %1519 = vmatprep.subr.mxu0 0.0
  %1520 = vmatpush1.msra.mxu0 0.0
  %1521 = vmatprep.subr.mxu0 0.0
  %1522 = vmatpush1.msra.mxu0 0.0
  %1523 = vmatprep.subr.mxu0 %v1491
  %1524 = vmatpush1.msra.mxu0 %v1489
  %1525 = vmatprep.subr.mxu0 0.0
  %1526 = vmatpush2.msra.mxu0 0.0
  %1527 = vmatprep.subr.mxu0 0.0
  %1528 = vmatpush2.msra.mxu0 0.0
  %1529 = vmatprep.subr.mxu0 0.0
  %1530 = vmatpush2.msra.mxu0 0.0
  %1531 = vmatprep.subr.mxu0 0.0
  %1532 = vmatpush2.msra.mxu0 0.0
  %1533 = vmatprep.subr.mxu0 0.0
  %1534 = vmatpush2.msra.mxu0 0.0
  %1535 = vmatprep.subr.mxu0 0.0
  %1536 = vmatpush2.msra.mxu0 0.0
  %1537 = vmatprep.subr.mxu0 0.0
  %1538 = vmatpush2.msra.mxu0 0.0
  %1539 = vmatprep.subr.mxu0 0.0
  %1540 = vmatpush2.msra.mxu0 0.0
  %1541 = vmatprep.subr.mxu0 0.0
  %1542 = vmatpush2.msra.mxu0 0.0
  %1543 = vmatprep.subr.mxu0 0.0
  %1544 = vmatpush2.msra.mxu0 0.0
  %1545 = vmatprep.subr.mxu0 0.0
  %1546 = vmatpush2.msra.mxu0 0.0
  %1547 = vmatprep.subr.mxu0 0.0
  %1548 = vmatpush2.msra.mxu0 0.0
  %1549 = vmatprep.subr.mxu0 0.0
  %1550 = vmatpush2.msra.mxu0 0.0
  %1551 = vmatprep.subr.mxu0 0.0
  %1552 = vmatpush2.msra.mxu0 0.0
  %1553 = vmatprep.subr.mxu0 0.0
  %1554 = vmatpush2.msra.mxu0 0.0
  %1555 = vmatprep.subr.mxu0 0.0
  %1556 = vmatpush2.msra.mxu0 0.0
  %1557 = vmatprep.mubr.f32.mxu0 0.0
  %1558 = vmatmul.mubr.f32.gmra.mxu0 %v1487
  %v1559 = vpop.f32.mrf.mxu0
  %v1560 = vadd.f32 0.0, %v1559
  %v1561 = vpop.f32.mrf.mxu0
  %v1562 = vadd.f32 0.0, %v1561
  %1563 = vdwg.mxu0
  %1564 = vrot.lane.b32.xlu0 %v21, 100
  %v1565 = vpop.permute.xlu0 %1564
  %1566 = vrot.lane.b32.xlu0 %v1286, 118
  %v1567 = vpop.permute.xlu0 %1566
  %1568 = vrot.lane.b32.xlu0 %v1293, 118
  %v1569 = vpop.permute.xlu0 %1568
  %vm1570 = vcmask 965632
  %v1571 = vsel %vm1570, %v1567, %v1569
  %v1572 = vsel %vm1312, %v1565, 0
  %v1574 = vsel %vm1315, %v1571, 0
  %v1576 = vsel %vm1315, %v1569, 0
  %1578 = vmatprep.subr.mxu0 0.0
  %1579 = vmatpush1.msra.mxu0 0.0
  %1580 = vmatprep.subr.mxu0 0.0
  %1581 = vmatpush1.msra.mxu0 0.0
  %1582 = vmatprep.subr.mxu0 0.0
  %1583 = vmatpush1.msra.mxu0 0.0
  %1584 = vmatprep.subr.mxu0 0.0
  %1585 = vmatpush1.msra.mxu0 0.0
  %1586 = vmatprep.subr.mxu0 0.0
  %1587 = vmatpush1.msra.mxu0 0.0
  %1588 = vmatprep.subr.mxu0 0.0
  %1589 = vmatpush1.msra.mxu0 0.0
  %1590 = vmatprep.subr.mxu0 0.0
  %1591 = vmatpush1.msra.mxu0 0.0
  %1592 = vmatprep.subr.mxu0 0.0
  %1593 = vmatpush1.msra.mxu0 0.0
  %1594 = vmatprep.subr.mxu0 0.0
  %1595 = vmatpush1.msra.mxu0 0.0
  %1596 = vmatprep.subr.mxu0 0.0
  %1597 = vmatpush1.msra.mxu0 0.0
  %1598 = vmatprep.subr.mxu0 0.0
  %1599 = vmatpush1.msra.mxu0 0.0
  %1600 = vmatprep.subr.mxu0 0.0
  %1601 = vmatpush1.msra.mxu0 0.0
  %1602 = vmatprep.subr.mxu0 0.0
  %1603 = vmatpush1.msra.mxu0 0.0
  %1604 = vmatprep.subr.mxu0 0.0
  %1605 = vmatpush1.msra.mxu0 0.0
  %1606 = vmatprep.subr.mxu0 0.0
  %1607 = vmatpush1.msra.mxu0 0.0
  %1608 = vmatprep.subr.mxu0 %v1576
  %1609 = vmatpush1.msra.mxu0 %v1574
  %1610 = vmatprep.subr.mxu0 0.0
  %1611 = vmatpush2.msra.mxu0 0.0
  %1612 = vmatprep.subr.mxu0 0.0
  %1613 = vmatpush2.msra.mxu0 0.0
  %1614 = vmatprep.subr.mxu0 0.0
  %1615 = vmatpush2.msra.mxu0 0.0
  %1616 = vmatprep.subr.mxu0 0.0
  %1617 = vmatpush2.msra.mxu0 0.0
  %1618 = vmatprep.subr.mxu0 0.0
  %1619 = vmatpush2.msra.mxu0 0.0
  %1620 = vmatprep.subr.mxu0 0.0
  %1621 = vmatpush2.msra.mxu0 0.0
  %1622 = vmatprep.subr.mxu0 0.0
  %1623 = vmatpush2.msra.mxu0 0.0
  %1624 = vmatprep.subr.mxu0 0.0
  %1625 = vmatpush2.msra.mxu0 0.0
  %1626 = vmatprep.subr.mxu0 0.0
  %1627 = vmatpush2.msra.mxu0 0.0
  %1628 = vmatprep.subr.mxu0 0.0
  %1629 = vmatpush2.msra.mxu0 0.0
  %1630 = vmatprep.subr.mxu0 0.0
  %1631 = vmatpush2.msra.mxu0 0.0
  %1632 = vmatprep.subr.mxu0 0.0
  %1633 = vmatpush2.msra.mxu0 0.0
  %1634 = vmatprep.subr.mxu0 0.0
  %1635 = vmatpush2.msra.mxu0 0.0
  %1636 = vmatprep.subr.mxu0 0.0
  %1637 = vmatpush2.msra.mxu0 0.0
  %1638 = vmatprep.subr.mxu0 0.0
  %1639 = vmatpush2.msra.mxu0 0.0
  %1640 = vmatprep.subr.mxu0 0.0
  %1641 = vmatpush2.msra.mxu0 0.0
  %1642 = vmatprep.mubr.f32.mxu0 0.0
  %1643 = vmatmul.mubr.f32.gmra.mxu0 %v1572
  %v1644 = vpop.f32.mrf.mxu0
  %v1645 = vadd.f32 0.0, %v1644
  %v1646 = vpop.f32.mrf.mxu0
  %v1647 = vadd.f32 0.0, %v1646
  %1648 = vdwg.mxu0
  %1649 = vrot.lane.b32.xlu0 %v21, 96
  %v1650 = vpop.permute.xlu0 %1649
  %1651 = vrot.lane.b32.xlu0 %v1286, 117
  %v1652 = vpop.permute.xlu0 %1651
  %1653 = vrot.lane.b32.xlu0 %v1293, 117
  %v1654 = vpop.permute.xlu0 %1653
  %v1655 = vsel %vm442, %v1652, %v1654
  %v1656 = vsel %vm1312, %v1650, 0
  %v1658 = vsel %vm1315, %v1655, 0
  %v1660 = vsel %vm1315, %v1654, 0
  %1662 = vmatprep.subr.mxu0 0.0
  %1663 = vmatpush1.msra.mxu0 0.0
  %1664 = vmatprep.subr.mxu0 0.0
  %1665 = vmatpush1.msra.mxu0 0.0
  %1666 = vmatprep.subr.mxu0 0.0
  %1667 = vmatpush1.msra.mxu0 0.0
  %1668 = vmatprep.subr.mxu0 0.0
  %1669 = vmatpush1.msra.mxu0 0.0
  %1670 = vmatprep.subr.mxu0 0.0
  %1671 = vmatpush1.msra.mxu0 0.0
  %1672 = vmatprep.subr.mxu0 0.0
  %1673 = vmatpush1.msra.mxu0 0.0
  %1674 = vmatprep.subr.mxu0 0.0
  %1675 = vmatpush1.msra.mxu0 0.0
  %1676 = vmatprep.subr.mxu0 0.0
  %1677 = vmatpush1.msra.mxu0 0.0
  %1678 = vmatprep.subr.mxu0 0.0
  %1679 = vmatpush1.msra.mxu0 0.0
  %1680 = vmatprep.subr.mxu0 0.0
  %1681 = vmatpush1.msra.mxu0 0.0
  %1682 = vmatprep.subr.mxu0 0.0
  %1683 = vmatpush1.msra.mxu0 0.0
  %1684 = vmatprep.subr.mxu0 0.0
  %1685 = vmatpush1.msra.mxu0 0.0
  %1686 = vmatprep.subr.mxu0 0.0
  %1687 = vmatpush1.msra.mxu0 0.0
  %1688 = vmatprep.subr.mxu0 0.0
  %1689 = vmatpush1.msra.mxu0 0.0
  %1690 = vmatprep.subr.mxu0 0.0
  %1691 = vmatpush1.msra.mxu0 0.0
  %1692 = vmatprep.subr.mxu0 %v1660
  %1693 = vmatpush1.msra.mxu0 %v1658
  %1694 = vmatprep.subr.mxu0 0.0
  %1695 = vmatpush2.msra.mxu0 0.0
  %1696 = vmatprep.subr.mxu0 0.0
  %1697 = vmatpush2.msra.mxu0 0.0
  %1698 = vmatprep.subr.mxu0 0.0
  %1699 = vmatpush2.msra.mxu0 0.0
  %1700 = vmatprep.subr.mxu0 0.0
  %1701 = vmatpush2.msra.mxu0 0.0
  %1702 = vmatprep.subr.mxu0 0.0
  %1703 = vmatpush2.msra.mxu0 0.0
  %1704 = vmatprep.subr.mxu0 0.0
  %1705 = vmatpush2.msra.mxu0 0.0
  %1706 = vmatprep.subr.mxu0 0.0
  %1707 = vmatpush2.msra.mxu0 0.0
  %1708 = vmatprep.subr.mxu0 0.0
  %1709 = vmatpush2.msra.mxu0 0.0
  %1710 = vmatprep.subr.mxu0 0.0
  %1711 = vmatpush2.msra.mxu0 0.0
  %1712 = vmatprep.subr.mxu0 0.0
  %1713 = vmatpush2.msra.mxu0 0.0
  %1714 = vmatprep.subr.mxu0 0.0
  %1715 = vmatpush2.msra.mxu0 0.0
  %1716 = vmatprep.subr.mxu0 0.0
  %1717 = vmatpush2.msra.mxu0 0.0
  %1718 = vmatprep.subr.mxu0 0.0
  %1719 = vmatpush2.msra.mxu0 0.0
  %1720 = vmatprep.subr.mxu0 0.0
  %1721 = vmatpush2.msra.mxu0 0.0
  %1722 = vmatprep.subr.mxu0 0.0
  %1723 = vmatpush2.msra.mxu0 0.0
  %1724 = vmatprep.subr.mxu0 0.0
  %1725 = vmatpush2.msra.mxu0 0.0
  %1726 = vmatprep.mubr.f32.mxu0 0.0
  %1727 = vmatmul.mubr.f32.gmra.mxu0 %v1656
  %v1728 = vpop.f32.mrf.mxu0
  %v1729 = vadd.f32 0.0, %v1728
  %v1730 = vpop.f32.mrf.mxu0
  %v1731 = vadd.f32 0.0, %v1730
  %1732 = vdwg.mxu0
  %1733 = vrot.lane.b32.xlu0 %v1293, 67
  %v1734 = vpop.permute.xlu0 %1733
  %1735 = vrot.lane.b32.xlu0 %v1296, 67
  %v1736 = vpop.permute.xlu0 %1735
  %1737 = vrot.lane.b32.xlu0 %v1295, 67
  %v1738 = vpop.permute.xlu0 %1737
  %vm1739 = vcmask 547840
  %v1740 = vsel %vm1739, %v1734, %v1736
  %v1741 = vsel %vm1739, %v1736, %v1738
  %v1742 = vsel %vm1312, %v21, 0
  %v1744 = vsel %vm1315, %v1740, 0
  %v1746 = vsel %vm1315, %v1741, 0
  %1748 = vmatprep.subr.mxu0 0.0
  %1749 = vmatpush1.msra.mxu0 0.0
  %1750 = vmatprep.subr.mxu0 0.0
  %1751 = vmatpush1.msra.mxu0 0.0
  %1752 = vmatprep.subr.mxu0 0.0
  %1753 = vmatpush1.msra.mxu0 0.0
  %1754 = vmatprep.subr.mxu0 0.0
  %1755 = vmatpush1.msra.mxu0 0.0
  %1756 = vmatprep.subr.mxu0 0.0
  %1757 = vmatpush1.msra.mxu0 0.0
  %1758 = vmatprep.subr.mxu0 0.0
  %1759 = vmatpush1.msra.mxu0 0.0
  %1760 = vmatprep.subr.mxu0 0.0
  %1761 = vmatpush1.msra.mxu0 0.0
  %1762 = vmatprep.subr.mxu0 0.0
  %1763 = vmatpush1.msra.mxu0 0.0
  %1764 = vmatprep.subr.mxu0 0.0
  %1765 = vmatpush1.msra.mxu0 0.0
  %1766 = vmatprep.subr.mxu0 0.0
  %1767 = vmatpush1.msra.mxu0 0.0
  %1768 = vmatprep.subr.mxu0 0.0
  %1769 = vmatpush1.msra.mxu0 0.0
  %1770 = vmatprep.subr.mxu0 0.0
  %1771 = vmatpush1.msra.mxu0 0.0
  %1772 = vmatprep.subr.mxu0 0.0
  %1773 = vmatpush1.msra.mxu0 0.0
  %1774 = vmatprep.subr.mxu0 0.0
  %1775 = vmatpush1.msra.mxu0 0.0
  %1776 = vmatprep.subr.mxu0 0.0
  %1777 = vmatpush1.msra.mxu0 0.0
  %1778 = vmatprep.subr.mxu0 %v1746
  %1779 = vmatpush1.msra.mxu0 %v1744
  %1780 = vmatprep.subr.mxu0 0.0
  %1781 = vmatpush2.msra.mxu0 0.0
  %1782 = vmatprep.subr.mxu0 0.0
  %1783 = vmatpush2.msra.mxu0 0.0
  %1784 = vmatprep.subr.mxu0 0.0
  %1785 = vmatpush2.msra.mxu0 0.0
  %1786 = vmatprep.subr.mxu0 0.0
  %1787 = vmatpush2.msra.mxu0 0.0
  %1788 = vmatprep.subr.mxu0 0.0
  %1789 = vmatpush2.msra.mxu0 0.0
  %1790 = vmatprep.subr.mxu0 0.0
  %1791 = vmatpush2.msra.mxu0 0.0
  %1792 = vmatprep.subr.mxu0 0.0
  %1793 = vmatpush2.msra.mxu0 0.0
  %1794 = vmatprep.subr.mxu0 0.0
  %1795 = vmatpush2.msra.mxu0 0.0
  %1796 = vmatprep.subr.mxu0 0.0
  %1797 = vmatpush2.msra.mxu0 0.0
  %1798 = vmatprep.subr.mxu0 0.0
  %1799 = vmatpush2.msra.mxu0 0.0
  %1800 = vmatprep.subr.mxu0 0.0
  %1801 = vmatpush2.msra.mxu0 0.0
  %1802 = vmatprep.subr.mxu0 0.0
  %1803 = vmatpush2.msra.mxu0 0.0
  %1804 = vmatprep.subr.mxu0 0.0
  %1805 = vmatpush2.msra.mxu0 0.0
  %1806 = vmatprep.subr.mxu0 0.0
  %1807 = vmatpush2.msra.mxu0 0.0
  %1808 = vmatprep.subr.mxu0 0.0
  %1809 = vmatpush2.msra.mxu0 0.0
  %1810 = vmatprep.subr.mxu0 0.0
  %1811 = vmatpush2.msra.mxu0 0.0
  %1812 = vmatprep.mubr.f32.mxu0 0.0
  %1813 = vmatmul.mubr.f32.gmra.mxu0 %v1742
  %v1814 = vpop.f32.mrf.mxu0
  %v1815 = vadd.f32 %v1387, %v1814
  %v1816 = vpop.f32.mrf.mxu0
  %v1817 = vadd.f32 %v1389, %v1816
  %1818 = vdwg.mxu0
  %1819 = vrot.lane.b32.xlu0 %v21, 120
  %v1820 = vpop.permute.xlu0 %1819
  %1821 = vrot.lane.b32.xlu0 %v1293, 65
  %v1822 = vpop.permute.xlu0 %1821
  %1823 = vrot.lane.b32.xlu0 %v1296, 65
  %v1824 = vpop.permute.xlu0 %1823
  %1825 = vrot.lane.b32.xlu0 %v1295, 65
  %v1826 = vpop.permute.xlu0 %1825
  %vm1827 = vcmask 531456
  %v1828 = vsel %vm1827, %v1822, %v1824
  %v1829 = vsel %vm1827, %v1824, %v1826
  %v1830 = vsel %vm1312, %v1820, 0
  %v1832 = vsel %vm1315, %v1828, 0
  %v1834 = vsel %vm1315, %v1829, 0
  %1836 = vmatprep.subr.mxu0 0.0
  %1837 = vmatpush1.msra.mxu0 0.0
  %1838 = vmatprep.subr.mxu0 0.0
  %1839 = vmatpush1.msra.mxu0 0.0
  %1840 = vmatprep.subr.mxu0 0.0
  %1841 = vmatpush1.msra.mxu0 0.0
  %1842 = vmatprep.subr.mxu0 0.0
  %1843 = vmatpush1.msra.mxu0 0.0
  %1844 = vmatprep.subr.mxu0 0.0
  %1845 = vmatpush1.msra.mxu0 0.0
  %1846 = vmatprep.subr.mxu0 0.0
  %1847 = vmatpush1.msra.mxu0 0.0
  %1848 = vmatprep.subr.mxu0 0.0
  %1849 = vmatpush1.msra.mxu0 0.0
  %1850 = vmatprep.subr.mxu0 0.0
  %1851 = vmatpush1.msra.mxu0 0.0
  %1852 = vmatprep.subr.mxu0 0.0
  %1853 = vmatpush1.msra.mxu0 0.0
  %1854 = vmatprep.subr.mxu0 0.0
  %1855 = vmatpush1.msra.mxu0 0.0
  %1856 = vmatprep.subr.mxu0 0.0
  %1857 = vmatpush1.msra.mxu0 0.0
  %1858 = vmatprep.subr.mxu0 0.0
  %1859 = vmatpush1.msra.mxu0 0.0
  %1860 = vmatprep.subr.mxu0 0.0
  %1861 = vmatpush1.msra.mxu0 0.0
  %1862 = vmatprep.subr.mxu0 0.0
  %1863 = vmatpush1.msra.mxu0 0.0
  %1864 = vmatprep.subr.mxu0 0.0
  %1865 = vmatpush1.msra.mxu0 0.0
  %1866 = vmatprep.subr.mxu0 %v1834
  %1867 = vmatpush1.msra.mxu0 %v1832
  %1868 = vmatprep.subr.mxu0 0.0
  %1869 = vmatpush2.msra.mxu0 0.0
  %1870 = vmatprep.subr.mxu0 0.0
  %1871 = vmatpush2.msra.mxu0 0.0
  %1872 = vmatprep.subr.mxu0 0.0
  %1873 = vmatpush2.msra.mxu0 0.0
  %1874 = vmatprep.subr.mxu0 0.0
  %1875 = vmatpush2.msra.mxu0 0.0
  %1876 = vmatprep.subr.mxu0 0.0
  %1877 = vmatpush2.msra.mxu0 0.0
  %1878 = vmatprep.subr.mxu0 0.0
  %1879 = vmatpush2.msra.mxu0 0.0
  %1880 = vmatprep.subr.mxu0 0.0
  %1881 = vmatpush2.msra.mxu0 0.0
  %1882 = vmatprep.subr.mxu0 0.0
  %1883 = vmatpush2.msra.mxu0 0.0
  %1884 = vmatprep.subr.mxu0 0.0
  %1885 = vmatpush2.msra.mxu0 0.0
  %1886 = vmatprep.subr.mxu0 0.0
  %1887 = vmatpush2.msra.mxu0 0.0
  %1888 = vmatprep.subr.mxu0 0.0
  %1889 = vmatpush2.msra.mxu0 0.0
  %1890 = vmatprep.subr.mxu0 0.0
  %1891 = vmatpush2.msra.mxu0 0.0
  %1892 = vmatprep.subr.mxu0 0.0
  %1893 = vmatpush2.msra.mxu0 0.0
  %1894 = vmatprep.subr.mxu0 0.0
  %1895 = vmatpush2.msra.mxu0 0.0
  %1896 = vmatprep.subr.mxu0 0.0
  %1897 = vmatpush2.msra.mxu0 0.0
  %1898 = vmatprep.subr.mxu0 0.0
  %1899 = vmatpush2.msra.mxu0 0.0
  %1900 = vmatprep.mubr.f32.mxu0 0.0
  %1901 = vmatmul.mubr.f32.gmra.mxu0 %v1830
  %v1902 = vpop.f32.mrf.mxu0
  %v1903 = vadd.f32 %v1475, %v1902
  %v1904 = vpop.f32.mrf.mxu0
  %v1905 = vadd.f32 %v1477, %v1904
  %1906 = vdwg.mxu0
  %1907 = vrot.lane.b32.xlu0 %v21, 112
  %v1908 = vpop.permute.xlu0 %1907
  %v1909 = vsel %vm1312, %v1908, 0
  %v1911 = vsel %vm1315, %v1286, 0
  %v1914 = vsel %vm1315, %v1288, 0
  %1916 = vmatprep.subr.mxu0 0.0
  %1917 = vmatpush1.msra.mxu0 0.0
  %1918 = vmatprep.subr.mxu0 0.0
  %1919 = vmatpush1.msra.mxu0 0.0
  %1920 = vmatprep.subr.mxu0 0.0
  %1921 = vmatpush1.msra.mxu0 0.0
  %1922 = vmatprep.subr.mxu0 0.0
  %1923 = vmatpush1.msra.mxu0 0.0
  %1924 = vmatprep.subr.mxu0 0.0
  %1925 = vmatpush1.msra.mxu0 0.0
  %1926 = vmatprep.subr.mxu0 0.0
  %1927 = vmatpush1.msra.mxu0 0.0
  %1928 = vmatprep.subr.mxu0 0.0
  %1929 = vmatpush1.msra.mxu0 0.0
  %1930 = vmatprep.subr.mxu0 0.0
  %1931 = vmatpush1.msra.mxu0 0.0
  %1932 = vmatprep.subr.mxu0 0.0
  %1933 = vmatpush1.msra.mxu0 0.0
  %1934 = vmatprep.subr.mxu0 0.0
  %1935 = vmatpush1.msra.mxu0 0.0
  %1936 = vmatprep.subr.mxu0 0.0
  %1937 = vmatpush1.msra.mxu0 0.0
  %1938 = vmatprep.subr.mxu0 0.0
  %1939 = vmatpush1.msra.mxu0 0.0
  %1940 = vmatprep.subr.mxu0 0.0
  %1941 = vmatpush1.msra.mxu0 0.0
  %1942 = vmatprep.subr.mxu0 0.0
  %1943 = vmatpush1.msra.mxu0 0.0
  %1944 = vmatprep.subr.mxu0 0.0
  %1945 = vmatpush1.msra.mxu0 0.0
  %1946 = vmatprep.subr.mxu0 %v1914
  %1947 = vmatpush1.msra.mxu0 %v1911
  %1948 = vmatprep.subr.mxu0 0.0
  %1949 = vmatpush2.msra.mxu0 0.0
  %1950 = vmatprep.subr.mxu0 0.0
  %1951 = vmatpush2.msra.mxu0 0.0
  %1952 = vmatprep.subr.mxu0 0.0
  %1953 = vmatpush2.msra.mxu0 0.0
  %1954 = vmatprep.subr.mxu0 0.0
  %1955 = vmatpush2.msra.mxu0 0.0
  %1956 = vmatprep.subr.mxu0 0.0
  %1957 = vmatpush2.msra.mxu0 0.0
  %1958 = vmatprep.subr.mxu0 0.0
  %1959 = vmatpush2.msra.mxu0 0.0
  %1960 = vmatprep.subr.mxu0 0.0
  %1961 = vmatpush2.msra.mxu0 0.0
  %1962 = vmatprep.subr.mxu0 0.0
  %1963 = vmatpush2.msra.mxu0 0.0
  %1964 = vmatprep.subr.mxu0 0.0
  %1965 = vmatpush2.msra.mxu0 0.0
  %1966 = vmatprep.subr.mxu0 0.0
  %1967 = vmatpush2.msra.mxu0 0.0
  %1968 = vmatprep.subr.mxu0 0.0
  %1969 = vmatpush2.msra.mxu0 0.0
  %1970 = vmatprep.subr.mxu0 0.0
  %1971 = vmatpush2.msra.mxu0 0.0
  %1972 = vmatprep.subr.mxu0 0.0
  %1973 = vmatpush2.msra.mxu0 0.0
  %1974 = vmatprep.subr.mxu0 0.0
  %1975 = vmatpush2.msra.mxu0 0.0
  %1976 = vmatprep.subr.mxu0 0.0
  %1977 = vmatpush2.msra.mxu0 0.0
  %1978 = vmatprep.subr.mxu0 0.0
  %1979 = vmatpush2.msra.mxu0 0.0
  %1980 = vmatprep.mubr.f32.mxu0 0.0
  %1981 = vmatmul.mubr.f32.gmra.mxu0 %v1909
  %v1982 = vpop.f32.mrf.mxu0
  %v1983 = vadd.f32 %v1560, %v1982
  %v1984 = vpop.f32.mrf.mxu0
  %v1985 = vadd.f32 %v1562, %v1984
  %1986 = vdwg.mxu0
  %1987 = vrot.lane.b32.xlu0 %v21, 104
  %v1988 = vpop.permute.xlu0 %1987
  %1989 = vrot.lane.b32.xlu0 %v1286, 119
  %v1990 = vpop.permute.xlu0 %1989
  %1991 = vrot.lane.b32.xlu0 %v1293, 119
  %v1992 = vpop.permute.xlu0 %1991
  %vm1993 = vcmask 973824
  %v1994 = vsel %vm1993, %v1990, %v1992
  %v1995 = vsel %vm1312, %v1988, 0
  %v1997 = vsel %vm1315, %v1994, 0
  %v1999 = vsel %vm1315, %v1992, 0
  %2001 = vmatprep.subr.mxu0 0.0
  %2002 = vmatpush1.msra.mxu0 0.0
  %2003 = vmatprep.subr.mxu0 0.0
  %2004 = vmatpush1.msra.mxu0 0.0
  %2005 = vmatprep.subr.mxu0 0.0
  %2006 = vmatpush1.msra.mxu0 0.0
  %2007 = vmatprep.subr.mxu0 0.0
  %2008 = vmatpush1.msra.mxu0 0.0
  %2009 = vmatprep.subr.mxu0 0.0
  %2010 = vmatpush1.msra.mxu0 0.0
  %2011 = vmatprep.subr.mxu0 0.0
  %2012 = vmatpush1.msra.mxu0 0.0
  %2013 = vmatprep.subr.mxu0 0.0
  %2014 = vmatpush1.msra.mxu0 0.0
  %2015 = vmatprep.subr.mxu0 0.0
  %2016 = vmatpush1.msra.mxu0 0.0
  %2017 = vmatprep.subr.mxu0 0.0
  %2018 = vmatpush1.msra.mxu0 0.0
  %2019 = vmatprep.subr.mxu0 0.0
  %2020 = vmatpush1.msra.mxu0 0.0
  %2021 = vmatprep.subr.mxu0 0.0
  %2022 = vmatpush1.msra.mxu0 0.0
  %2023 = vmatprep.subr.mxu0 0.0
  %2024 = vmatpush1.msra.mxu0 0.0
  %2025 = vmatprep.subr.mxu0 0.0
  %2026 = vmatpush1.msra.mxu0 0.0
  %2027 = vmatprep.subr.mxu0 0.0
  %2028 = vmatpush1.msra.mxu0 0.0
  %2029 = vmatprep.subr.mxu0 0.0
  %2030 = vmatpush1.msra.mxu0 0.0
  %2031 = vmatprep.subr.mxu0 %v1999
  %2032 = vmatpush1.msra.mxu0 %v1997
  %2033 = vmatprep.subr.mxu0 0.0
  %2034 = vmatpush2.msra.mxu0 0.0
  %2035 = vmatprep.subr.mxu0 0.0
  %2036 = vmatpush2.msra.mxu0 0.0
  %2037 = vmatprep.subr.mxu0 0.0
  %2038 = vmatpush2.msra.mxu0 0.0
  %2039 = vmatprep.subr.mxu0 0.0
  %2040 = vmatpush2.msra.mxu0 0.0
  %2041 = vmatprep.subr.mxu0 0.0
  %2042 = vmatpush2.msra.mxu0 0.0
  %2043 = vmatprep.subr.mxu0 0.0
  %2044 = vmatpush2.msra.mxu0 0.0
  %2045 = vmatprep.subr.mxu0 0.0
  %2046 = vmatpush2.msra.mxu0 0.0
  %2047 = vmatprep.subr.mxu0 0.0
  %2048 = vmatpush2.msra.mxu0 0.0
  %2049 = vmatprep.subr.mxu0 0.0
  %2050 = vmatpush2.msra.mxu0 0.0
  %2051 = vmatprep.subr.mxu0 0.0
  %2052 = vmatpush2.msra.mxu0 0.0
  %2053 = vmatprep.subr.mxu0 0.0
  %2054 = vmatpush2.msra.mxu0 0.0
  %2055 = vmatprep.subr.mxu0 0.0
  %2056 = vmatpush2.msra.mxu0 0.0
  %2057 = vmatprep.subr.mxu0 0.0
  %2058 = vmatpush2.msra.mxu0 0.0
  %2059 = vmatprep.subr.mxu0 0.0
  %2060 = vmatpush2.msra.mxu0 0.0
  %2061 = vmatprep.subr.mxu0 0.0
  %2062 = vmatpush2.msra.mxu0 0.0
  %2063 = vmatprep.subr.mxu0 0.0
  %2064 = vmatpush2.msra.mxu0 0.0
  %2065 = vmatprep.mubr.f32.mxu0 0.0
  %2066 = vmatmul.mubr.f32.gmra.mxu0 %v1995
  %v2067 = vpop.f32.mrf.mxu0
  %v2068 = vadd.f32 %v1645, %v2067
  %v2069 = vpop.f32.mrf.mxu0
  %v2070 = vadd.f32 %v1647, %v2069
  %2071 = vdwg.mxu0
  %v2072 = vadd.f32 %v1815, %v1903
  %v2073 = vadd.f32 %v1817, %v1905
  %v2074 = vadd.f32 %v1983, %v2068
  %v2075 = vadd.f32 %v1985, %v2070
  %v2076 = vadd.f32 %v2072, %v2074
  %v2077 = vadd.f32 %v2073, %v2075
  %v2078 = vadd.f32 %v2076, %v1729
  %v2079 = vadd.f32 %v2077, %v1731
  %2080 = vset.pattern.permute.xlu0 36
  %2081 = vperm.xlu0 %2080, %v21
  %v2082 = vpop.permute.xlu0 %2081
  %v2084 = vadd.f32 %v2078, %v2082
  %v2085 = vadd.f32 %v2079, %v2082
  %v2086 = vmax.f32 %v2084, 0.0
  %v2087 = vmax.f32 %v2085, 0.0
  %2088 = vrot.lane.b32.xlu0 %v2086, 72
  %v2089 = vpop.permute.xlu0 %2088
  %v2090 = vsel %vm1290, %v2089, %v2087
  %2093 = vrot.lane.b32.xlu0 %v2086, 127
  %v2094 = vpop.permute.xlu0 %2093
  %2095 = vrot.lane.b32.xlu0 %v2090, 127
  %v2096 = vpop.permute.xlu0 %2095
  %v2097 = vsel %vm228, %v2094, %v2096
  %v2100 = vmax.f32 %v2086, %v2097
  %v2101 = vmax.f32 %v2087, %v2096
  %2102 = vrot.lane.b32.xlu0 %v2086, 118
  %v2103 = vpop.permute.xlu0 %2102
  %2104 = vrot.lane.b32.xlu0 %v2090, 118
  %v2105 = vpop.permute.xlu0 %2104
  %v2106 = vsel %vm1570, %v2103, %v2105
  %v2109 = vmax.f32 %v2100, %v2106
  %v2110 = vmax.f32 %v2101, %v2105
  %2111 = vrot.lane.b32.xlu0 %v2086, 117
  %v2112 = vpop.permute.xlu0 %2111
  %2113 = vrot.lane.b32.xlu0 %v2090, 117
  %v2114 = vpop.permute.xlu0 %2113
  %v2115 = vsel %vm442, %v2112, %v2114
  %v2118 = vmax.f32 %v2109, %v2115
  %v2119 = vmax.f32 %v2110, %v2114
  %v2120 = vld [vmem:[%s2 + $0x1] sm:$0x1]
  %v2121 = vlaneseq
  %v2122 = vshrl.u32 %v2121, 7
  %v2123 = vsub.s32 0, %v2122
  %v2124 = vrot.slane %v2120, %v2123
  %vm2125 = vcmp.eq.s32.totalorder %v633, %v2124
  %vm2126 = vcmp.eq.s32.totalorder %v634, %v2124
  %vm2127 = vcmp.eq.s32.totalorder %v635, %v2124
  %vm2128 = vcmp.eq.s32.totalorder %v636, %v2124
  %vm2129 = vcmp.eq.s32.totalorder %v637, %v2124
  %vm2130 = vcmp.eq.s32.totalorder %v638, %v2124
  %vm2131 = vcmp.eq.s32.totalorder %v639, %v2124
  %vm2132 = vcmp.eq.s32.totalorder %v640, %v2124
  %vm2133 = vcmp.eq.s32.totalorder %v641, %v2124
  %vm2134 = vcmp.eq.s32.totalorder %v642, %v2124
  %vm2135 = vcmp.eq.s32.totalorder %v643, %v2124
  %vm2136 = vcmp.eq.s32.totalorder %v644, %v2124
  %vm2137 = vcmp.eq.s32.totalorder %v645, %v2124
  %vm2138 = vcmp.eq.s32.totalorder %v646, %v2124
  %vm2139 = vcmp.eq.s32.totalorder %v647, %v2124
  %vm2140 = vcmp.eq.s32.totalorder %v648, %v2124
  %vm2141 = vcmp.eq.s32.totalorder %v649, %v2124
  %vm2142 = vcmp.eq.s32.totalorder %v650, %v2124
  %vm2143 = vcmp.eq.s32.totalorder %v651, %v2124
  %vm2144 = vcmp.eq.s32.totalorder %v652, %v2124
  %vm2145 = vcmp.eq.s32.totalorder %v653, %v2124
  %vm2146 = vcmp.eq.s32.totalorder %v654, %v2124
  %vm2147 = vcmp.eq.s32.totalorder %v655, %v2124
  %vm2148 = vcmp.eq.s32.totalorder %v656, %v2124
  %vm2149 = vcmp.eq.s32.totalorder %v657, %v2124
  %v2150 = vsel %vm2125, 1.0, 0.0
  %v2151 = vsel %vm2126, 1.0, 0.0
  %v2152 = vsel %vm2127, 1.0, 0.0
  %v2153 = vsel %vm2128, 1.0, 0.0
  %v2154 = vsel %vm2129, 1.0, 0.0
  %v2155 = vsel %vm2130, 1.0, 0.0
  %v2156 = vsel %vm2131, 1.0, 0.0
  %v2157 = vsel %vm2132, 1.0, 0.0
  %v2158 = vsel %vm2133, 1.0, 0.0
  %v2159 = vsel %vm2134, 1.0, 0.0
  %v2160 = vsel %vm2135, 1.0, 0.0
  %v2161 = vsel %vm2136, 1.0, 0.0
  %v2162 = vsel %vm2137, 1.0, 0.0
  %v2163 = vsel %vm2138, 1.0, 0.0
  %v2164 = vsel %vm2139, 1.0, 0.0
  %v2165 = vsel %vm2140, 1.0, 0.0
  %v2166 = vsel %vm2141, 1.0, 0.0
  %v2167 = vsel %vm2142, 1.0, 0.0
  %v2168 = vsel %vm2143, 1.0, 0.0
  %v2169 = vsel %vm2144, 1.0, 0.0
  %v2170 = vsel %vm2145, 1.0, 0.0
  %v2171 = vsel %vm2146, 1.0, 0.0
  %v2172 = vsel %vm2147, 1.0, 0.0
  %v2173 = vsel %vm2148, 1.0, 0.0
  %v2174 = vsel %vm2149, 1.0, 0.0
  %vm2175 = vcmask 588800
  %v2177 = vsel %vm2175, %v2119, 0
  %2179 = vmatprep.subr.mxu0 0.0
  %2180 = vmatpush1.msra.mxu0 %v2165
  %2181 = vmatprep.subr.mxu0 0.0
  %2182 = vmatpush1.msra.mxu0 %v2164
  %2183 = vmatprep.subr.mxu0 0.0
  %2184 = vmatpush1.msra.mxu0 %v2163
  %2185 = vmatprep.subr.mxu0 0.0
  %2186 = vmatpush1.msra.mxu0 %v2162
  %2187 = vmatprep.subr.mxu0 0.0
  %2188 = vmatpush1.msra.mxu0 %v2161
  %2189 = vmatprep.subr.mxu0 0.0
  %2190 = vmatpush1.msra.mxu0 %v2160
  %2191 = vmatprep.subr.mxu0 0.0
  %2192 = vmatpush1.msra.mxu0 %v2159
  %2193 = vmatprep.subr.mxu0 0.0
  %2194 = vmatpush1.msra.mxu0 %v2158
  %2195 = vmatprep.subr.mxu0 0.0
  %2196 = vmatpush1.msra.mxu0 %v2157
  %2197 = vmatprep.subr.mxu0 0.0
  %2198 = vmatpush1.msra.mxu0 %v2156
  %2199 = vmatprep.subr.mxu0 0.0
  %2200 = vmatpush1.msra.mxu0 %v2155
  %2201 = vmatprep.subr.mxu0 0.0
  %2202 = vmatpush1.msra.mxu0 %v2154
  %2203 = vmatprep.subr.mxu0 0.0
  %2204 = vmatpush1.msra.mxu0 %v2153
  %2205 = vmatprep.subr.mxu0 0.0
  %2206 = vmatpush1.msra.mxu0 %v2152
  %2207 = vmatprep.subr.mxu0 0.0
  %2208 = vmatpush1.msra.mxu0 %v2151
  %2209 = vmatprep.subr.mxu0 0.0
  %2210 = vmatpush1.msra.mxu0 %v2150
  %2211 = vmatprep.subr.mxu0 0.0
  %2212 = vmatpush2.msra.mxu0 0.0
  %2213 = vmatprep.subr.mxu0 0.0
  %2214 = vmatpush2.msra.mxu0 0.0
  %2215 = vmatprep.subr.mxu0 0.0
  %2216 = vmatpush2.msra.mxu0 0.0
  %2217 = vmatprep.subr.mxu0 0.0
  %2218 = vmatpush2.msra.mxu0 0.0
  %2219 = vmatprep.subr.mxu0 0.0
  %2220 = vmatpush2.msra.mxu0 0.0
  %2221 = vmatprep.subr.mxu0 0.0
  %2222 = vmatpush2.msra.mxu0 0.0
  %2223 = vmatprep.subr.mxu0 0.0
  %2224 = vmatpush2.msra.mxu0 0.0
  %2225 = vmatprep.subr.mxu0 0.0
  %2226 = vmatpush2.msra.mxu0 %v2174
  %2227 = vmatprep.subr.mxu0 0.0
  %2228 = vmatpush2.msra.mxu0 %v2173
  %2229 = vmatprep.subr.mxu0 0.0
  %2230 = vmatpush2.msra.mxu0 %v2172
  %2231 = vmatprep.subr.mxu0 0.0
  %2232 = vmatpush2.msra.mxu0 %v2171
  %2233 = vmatprep.subr.mxu0 0.0
  %2234 = vmatpush2.msra.mxu0 %v2170
  %2235 = vmatprep.subr.mxu0 0.0
  %2236 = vmatpush2.msra.mxu0 %v2169
  %2237 = vmatprep.subr.mxu0 0.0
  %2238 = vmatpush2.msra.mxu0 %v2168
  %2239 = vmatprep.subr.mxu0 0.0
  %2240 = vmatpush2.msra.mxu0 %v2167
  %2241 = vmatprep.subr.mxu0 0.0
  %2242 = vmatpush2.msra.mxu0 %v2166
  %2243 = vmatprep.mubr.f32.mxu0 %v2177
  %2244 = vmatmul.mubr.f32.gmra.mxu0 %v2118
  %v2245 = vpop.f32.mrf.mxu0
  %v2246 = vadd.f32 0.0, %v2245
  %v2247 = vpop.f32.mrf.mxu0
  %2248 = vdwg.mxu0
  %2249 = vrot.lane.b32.xlu0 %v2246, 72
  %v2250 = vpop.permute.xlu0 %2249
  %v2251 = vsel %vm1290, %v2250, %v2246
  %2252 = vrot.lane.b32.xlu0 %v2251, 72
  %v2253 = vpop.permute.xlu0 %2252
  %v2254 = vsel %vm1290, %v2253, %v2246
  %2257 = vrot.lane.b32.xlu0 %v22, 120
  %v2258 = vpop.permute.xlu0 %2257
  %2259 = vrot.lane.b32.xlu0 %v23, 120
  %v2260 = vpop.permute.xlu0 %2259
  %2263 = vrot.lane.b32.xlu0 %v2254, 62
  %v2264 = vpop.permute.xlu0 %2263
  %2265 = vrot.lane.b32.xlu0 %v2253, 62
  %v2266 = vpop.permute.xlu0 %2265
  %vm2267 = vcmask 506880
  %v2268 = vsel %vm2267, %v2264, %v2266
  %v2270 = vsel %vm1074, %v2258, 0
  %v2272 = vsel %vm1074, %v2260, 0
  %2274 = vmatprep.subr.mxu0 0.0
  %2275 = vmatpush1.msra.mxu0 0.0
  %2276 = vmatprep.subr.mxu0 0.0
  %2277 = vmatpush1.msra.mxu0 0.0
  %2278 = vmatprep.subr.mxu0 0.0
  %2279 = vmatpush1.msra.mxu0 0.0
  %2280 = vmatprep.subr.mxu0 0.0
  %2281 = vmatpush1.msra.mxu0 0.0
  %2282 = vmatprep.subr.mxu0 0.0
  %2283 = vmatpush1.msra.mxu0 0.0
  %2284 = vmatprep.subr.mxu0 0.0
  %2285 = vmatpush1.msra.mxu0 0.0
  %2286 = vmatprep.subr.mxu0 0.0
  %2287 = vmatpush1.msra.mxu0 0.0
  %2288 = vmatprep.subr.mxu0 0.0
  %2289 = vmatpush1.msra.mxu0 0.0
  %2290 = vmatprep.subr.mxu0 0.0
  %2291 = vmatpush1.msra.mxu0 0.0
  %2292 = vmatprep.subr.mxu0 0.0
  %2293 = vmatpush1.msra.mxu0 0.0
  %2294 = vmatprep.subr.mxu0 0.0
  %2295 = vmatpush1.msra.mxu0 0.0
  %2296 = vmatprep.subr.mxu0 0.0
  %2297 = vmatpush1.msra.mxu0 0.0
  %2298 = vmatprep.subr.mxu0 0.0
  %2299 = vmatpush1.msra.mxu0 0.0
  %2300 = vmatprep.subr.mxu0 0.0
  %2301 = vmatpush1.msra.mxu0 0.0
  %2302 = vmatprep.subr.mxu0 0.0
  %2303 = vmatpush1.msra.mxu0 0.0
  %2304 = vmatprep.subr.mxu0 0.0
  %2305 = vmatpush1.msra.mxu0 %v2268
  %2306 = vmatprep.subr.mxu0 0.0
  %2307 = vmatpush2.msra.mxu0 0.0
  %2308 = vmatprep.subr.mxu0 0.0
  %2309 = vmatpush2.msra.mxu0 0.0
  %2310 = vmatprep.subr.mxu0 0.0
  %2311 = vmatpush2.msra.mxu0 0.0
  %2312 = vmatprep.subr.mxu0 0.0
  %2313 = vmatpush2.msra.mxu0 0.0
  %2314 = vmatprep.subr.mxu0 0.0
  %2315 = vmatpush2.msra.mxu0 0.0
  %2316 = vmatprep.subr.mxu0 0.0
  %2317 = vmatpush2.msra.mxu0 0.0
  %2318 = vmatprep.subr.mxu0 0.0
  %2319 = vmatpush2.msra.mxu0 0.0
  %2320 = vmatprep.subr.mxu0 0.0
  %2321 = vmatpush2.msra.mxu0 0.0
  %2322 = vmatprep.subr.mxu0 0.0
  %2323 = vmatpush2.msra.mxu0 0.0
  %2324 = vmatprep.subr.mxu0 0.0
  %2325 = vmatpush2.msra.mxu0 0.0
  %2326 = vmatprep.subr.mxu0 0.0
  %2327 = vmatpush2.msra.mxu0 0.0
  %2328 = vmatprep.subr.mxu0 0.0
  %2329 = vmatpush2.msra.mxu0 0.0
  %2330 = vmatprep.subr.mxu0 0.0
  %2331 = vmatpush2.msra.mxu0 0.0
  %2332 = vmatprep.subr.mxu0 0.0
  %2333 = vmatpush2.msra.mxu0 0.0
  %2334 = vmatprep.subr.mxu0 0.0
  %2335 = vmatpush2.msra.mxu0 0.0
  %2336 = vmatprep.subr.mxu0 0.0
  %2337 = vmatpush2.msra.mxu0 0.0
  %2338 = vmatprep.mubr.f32.mxu0 0.0
  %2339 = vmatmul.mubr.f32.gmra.mxu0 %v2270
  %v2340 = vpop.f32.mrf.mxu0
  %v2341 = vadd.f32 0.0, %v2340
  %v2342 = vpop.f32.mrf.mxu0
  %2343 = vmatprep.mubr.f32.mxu0 0.0
  %2344 = vmatmul.mubr.f32.gmra.mxu0 %v2272
  %v2345 = vpop.f32.mrf.mxu0
  %v2346 = vadd.f32 0.0, %v2345
  %v2347 = vpop.f32.mrf.mxu0
  %2348 = vdwg.mxu0
  %2349 = vrot.lane.b32.xlu0 %v22, 104
  %v2350 = vpop.permute.xlu0 %2349
  %2351 = vrot.lane.b32.xlu0 %v23, 104
  %v2352 = vpop.permute.xlu0 %2351
  %2353 = vrot.lane.b32.xlu0 %v2254, 57
  %v2354 = vpop.permute.xlu0 %2353
  %2355 = vrot.lane.b32.xlu0 %v2253, 57
  %v2356 = vpop.permute.xlu0 %2355
  %v2357 = vsel %vm1399, %v2354, %v2356
  %v2359 = vsel %vm1074, %v2350, 0
  %v2361 = vsel %vm1074, %v2352, 0
  %2363 = vmatprep.subr.mxu0 0.0
  %2364 = vmatpush1.msra.mxu0 0.0
  %2365 = vmatprep.subr.mxu0 0.0
  %2366 = vmatpush1.msra.mxu0 0.0
  %2367 = vmatprep.subr.mxu0 0.0
  %2368 = vmatpush1.msra.mxu0 0.0
  %2369 = vmatprep.subr.mxu0 0.0
  %2370 = vmatpush1.msra.mxu0 0.0
  %2371 = vmatprep.subr.mxu0 0.0
  %2372 = vmatpush1.msra.mxu0 0.0
  %2373 = vmatprep.subr.mxu0 0.0
  %2374 = vmatpush1.msra.mxu0 0.0
  %2375 = vmatprep.subr.mxu0 0.0
  %2376 = vmatpush1.msra.mxu0 0.0
  %2377 = vmatprep.subr.mxu0 0.0
  %2378 = vmatpush1.msra.mxu0 0.0
  %2379 = vmatprep.subr.mxu0 0.0
  %2380 = vmatpush1.msra.mxu0 0.0
  %2381 = vmatprep.subr.mxu0 0.0
  %2382 = vmatpush1.msra.mxu0 0.0
  %2383 = vmatprep.subr.mxu0 0.0
  %2384 = vmatpush1.msra.mxu0 0.0
  %2385 = vmatprep.subr.mxu0 0.0
  %2386 = vmatpush1.msra.mxu0 0.0
  %2387 = vmatprep.subr.mxu0 0.0
  %2388 = vmatpush1.msra.mxu0 0.0
  %2389 = vmatprep.subr.mxu0 0.0
  %2390 = vmatpush1.msra.mxu0 0.0
  %2391 = vmatprep.subr.mxu0 0.0
  %2392 = vmatpush1.msra.mxu0 0.0
  %2393 = vmatprep.subr.mxu0 0.0
  %2394 = vmatpush1.msra.mxu0 %v2357
  %2395 = vmatprep.subr.mxu0 0.0
  %2396 = vmatpush2.msra.mxu0 0.0
  %2397 = vmatprep.subr.mxu0 0.0
  %2398 = vmatpush2.msra.mxu0 0.0
  %2399 = vmatprep.subr.mxu0 0.0
  %2400 = vmatpush2.msra.mxu0 0.0
  %2401 = vmatprep.subr.mxu0 0.0
  %2402 = vmatpush2.msra.mxu0 0.0
  %2403 = vmatprep.subr.mxu0 0.0
  %2404 = vmatpush2.msra.mxu0 0.0
  %2405 = vmatprep.subr.mxu0 0.0
  %2406 = vmatpush2.msra.mxu0 0.0
  %2407 = vmatprep.subr.mxu0 0.0
  %2408 = vmatpush2.msra.mxu0 0.0
  %2409 = vmatprep.subr.mxu0 0.0
  %2410 = vmatpush2.msra.mxu0 0.0
  %2411 = vmatprep.subr.mxu0 0.0
  %2412 = vmatpush2.msra.mxu0 0.0
  %2413 = vmatprep.subr.mxu0 0.0
  %2414 = vmatpush2.msra.mxu0 0.0
  %2415 = vmatprep.subr.mxu0 0.0
  %2416 = vmatpush2.msra.mxu0 0.0
  %2417 = vmatprep.subr.mxu0 0.0
  %2418 = vmatpush2.msra.mxu0 0.0
  %2419 = vmatprep.subr.mxu0 0.0
  %2420 = vmatpush2.msra.mxu0 0.0
  %2421 = vmatprep.subr.mxu0 0.0
  %2422 = vmatpush2.msra.mxu0 0.0
  %2423 = vmatprep.subr.mxu0 0.0
  %2424 = vmatpush2.msra.mxu0 0.0
  %2425 = vmatprep.subr.mxu0 0.0
  %2426 = vmatpush2.msra.mxu0 0.0
  %2427 = vmatprep.mubr.f32.mxu0 0.0
  %2428 = vmatmul.mubr.f32.gmra.mxu0 %v2359
  %v2429 = vpop.f32.mrf.mxu0
  %v2430 = vadd.f32 0.0, %v2429
  %v2431 = vpop.f32.mrf.mxu0
  %2432 = vmatprep.mubr.f32.mxu0 0.0
  %2433 = vmatmul.mubr.f32.gmra.mxu0 %v2361
  %v2434 = vpop.f32.mrf.mxu0
  %v2435 = vadd.f32 0.0, %v2434
  %v2436 = vpop.f32.mrf.mxu0
  %2437 = vdwg.mxu0
  %2438 = vrot.lane.b32.xlu0 %v22, 88
  %v2439 = vpop.permute.xlu0 %2438
  %2440 = vrot.lane.b32.xlu0 %v23, 88
  %v2441 = vpop.permute.xlu0 %2440
  %2442 = vrot.lane.b32.xlu0 %v2254, 127
  %v2443 = vpop.permute.xlu0 %2442
  %v2445 = vsel %vm1074, %v2439, 0
  %v2447 = vsel %vm1074, %v2441, 0
  %2449 = vmatprep.subr.mxu0 0.0
  %2450 = vmatpush1.msra.mxu0 0.0
  %2451 = vmatprep.subr.mxu0 0.0
  %2452 = vmatpush1.msra.mxu0 0.0
  %2453 = vmatprep.subr.mxu0 0.0
  %2454 = vmatpush1.msra.mxu0 0.0
  %2455 = vmatprep.subr.mxu0 0.0
  %2456 = vmatpush1.msra.mxu0 0.0
  %2457 = vmatprep.subr.mxu0 0.0
  %2458 = vmatpush1.msra.mxu0 0.0
  %2459 = vmatprep.subr.mxu0 0.0
  %2460 = vmatpush1.msra.mxu0 0.0
  %2461 = vmatprep.subr.mxu0 0.0
  %2462 = vmatpush1.msra.mxu0 0.0
  %2463 = vmatprep.subr.mxu0 0.0
  %2464 = vmatpush1.msra.mxu0 0.0
  %2465 = vmatprep.subr.mxu0 0.0
  %2466 = vmatpush1.msra.mxu0 0.0
  %2467 = vmatprep.subr.mxu0 0.0
  %2468 = vmatpush1.msra.mxu0 0.0
  %2469 = vmatprep.subr.mxu0 0.0
  %2470 = vmatpush1.msra.mxu0 0.0
  %2471 = vmatprep.subr.mxu0 0.0
  %2472 = vmatpush1.msra.mxu0 0.0
  %2473 = vmatprep.subr.mxu0 0.0
  %2474 = vmatpush1.msra.mxu0 0.0
  %2475 = vmatprep.subr.mxu0 0.0
  %2476 = vmatpush1.msra.mxu0 0.0
  %2477 = vmatprep.subr.mxu0 0.0
  %2478 = vmatpush1.msra.mxu0 0.0
  %2479 = vmatprep.subr.mxu0 0.0
  %2480 = vmatpush1.msra.mxu0 %v2443
  %2481 = vmatprep.subr.mxu0 0.0
  %2482 = vmatpush2.msra.mxu0 0.0
  %2483 = vmatprep.subr.mxu0 0.0
  %2484 = vmatpush2.msra.mxu0 0.0
  %2485 = vmatprep.subr.mxu0 0.0
  %2486 = vmatpush2.msra.mxu0 0.0
  %2487 = vmatprep.subr.mxu0 0.0
  %2488 = vmatpush2.msra.mxu0 0.0
  %2489 = vmatprep.subr.mxu0 0.0
  %2490 = vmatpush2.msra.mxu0 0.0
  %2491 = vmatprep.subr.mxu0 0.0
  %2492 = vmatpush2.msra.mxu0 0.0
  %2493 = vmatprep.subr.mxu0 0.0
  %2494 = vmatpush2.msra.mxu0 0.0
  %2495 = vmatprep.subr.mxu0 0.0
  %2496 = vmatpush2.msra.mxu0 0.0
  %2497 = vmatprep.subr.mxu0 0.0
  %2498 = vmatpush2.msra.mxu0 0.0
  %2499 = vmatprep.subr.mxu0 0.0
  %2500 = vmatpush2.msra.mxu0 0.0
  %2501 = vmatprep.subr.mxu0 0.0
  %2502 = vmatpush2.msra.mxu0 0.0
  %2503 = vmatprep.subr.mxu0 0.0
  %2504 = vmatpush2.msra.mxu0 0.0
  %2505 = vmatprep.subr.mxu0 0.0
  %2506 = vmatpush2.msra.mxu0 0.0
  %2507 = vmatprep.subr.mxu0 0.0
  %2508 = vmatpush2.msra.mxu0 0.0
  %2509 = vmatprep.subr.mxu0 0.0
  %2510 = vmatpush2.msra.mxu0 0.0
  %2511 = vmatprep.subr.mxu0 0.0
  %2512 = vmatpush2.msra.mxu0 0.0
  %2513 = vmatprep.mubr.f32.mxu0 0.0
  %2514 = vmatmul.mubr.f32.gmra.mxu0 %v2445
  %v2515 = vpop.f32.mrf.mxu0
  %v2516 = vadd.f32 0.0, %v2515
  %v2517 = vpop.f32.mrf.mxu0
  %2518 = vmatprep.mubr.f32.mxu0 0.0
  %2519 = vmatmul.mubr.f32.gmra.mxu0 %v2447
  %v2520 = vpop.f32.mrf.mxu0
  %v2521 = vadd.f32 0.0, %v2520
  %v2522 = vpop.f32.mrf.mxu0
  %2523 = vdwg.mxu0
  %2524 = vrot.lane.b32.xlu0 %v22, 72
  %v2525 = vpop.permute.xlu0 %2524
  %2526 = vrot.lane.b32.xlu0 %v23, 72
  %v2527 = vpop.permute.xlu0 %2526
  %2528 = vrot.lane.b32.xlu0 %v2254, 122
  %v2529 = vpop.permute.xlu0 %2528
  %v2531 = vsel %vm1074, %v2525, 0
  %v2533 = vsel %vm1074, %v2527, 0
  %2535 = vmatprep.subr.mxu0 0.0
  %2536 = vmatpush1.msra.mxu0 0.0
  %2537 = vmatprep.subr.mxu0 0.0
  %2538 = vmatpush1.msra.mxu0 0.0
  %2539 = vmatprep.subr.mxu0 0.0
  %2540 = vmatpush1.msra.mxu0 0.0
  %2541 = vmatprep.subr.mxu0 0.0
  %2542 = vmatpush1.msra.mxu0 0.0
  %2543 = vmatprep.subr.mxu0 0.0
  %2544 = vmatpush1.msra.mxu0 0.0
  %2545 = vmatprep.subr.mxu0 0.0
  %2546 = vmatpush1.msra.mxu0 0.0
  %2547 = vmatprep.subr.mxu0 0.0
  %2548 = vmatpush1.msra.mxu0 0.0
  %2549 = vmatprep.subr.mxu0 0.0
  %2550 = vmatpush1.msra.mxu0 0.0
  %2551 = vmatprep.subr.mxu0 0.0
  %2552 = vmatpush1.msra.mxu0 0.0
  %2553 = vmatprep.subr.mxu0 0.0
  %2554 = vmatpush1.msra.mxu0 0.0
  %2555 = vmatprep.subr.mxu0 0.0
  %2556 = vmatpush1.msra.mxu0 0.0
  %2557 = vmatprep.subr.mxu0 0.0
  %2558 = vmatpush1.msra.mxu0 0.0
  %2559 = vmatprep.subr.mxu0 0.0
  %2560 = vmatpush1.msra.mxu0 0.0
  %2561 = vmatprep.subr.mxu0 0.0
  %2562 = vmatpush1.msra.mxu0 0.0
  %2563 = vmatprep.subr.mxu0 0.0
  %2564 = vmatpush1.msra.mxu0 0.0
  %2565 = vmatprep.subr.mxu0 0.0
  %2566 = vmatpush1.msra.mxu0 %v2529
  %2567 = vmatprep.subr.mxu0 0.0
  %2568 = vmatpush2.msra.mxu0 0.0
  %2569 = vmatprep.subr.mxu0 0.0
  %2570 = vmatpush2.msra.mxu0 0.0
  %2571 = vmatprep.subr.mxu0 0.0
  %2572 = vmatpush2.msra.mxu0 0.0
  %2573 = vmatprep.subr.mxu0 0.0
  %2574 = vmatpush2.msra.mxu0 0.0
  %2575 = vmatprep.subr.mxu0 0.0
  %2576 = vmatpush2.msra.mxu0 0.0
  %2577 = vmatprep.subr.mxu0 0.0
  %2578 = vmatpush2.msra.mxu0 0.0
  %2579 = vmatprep.subr.mxu0 0.0
  %2580 = vmatpush2.msra.mxu0 0.0
  %2581 = vmatprep.subr.mxu0 0.0
  %2582 = vmatpush2.msra.mxu0 0.0
  %2583 = vmatprep.subr.mxu0 0.0
  %2584 = vmatpush2.msra.mxu0 0.0
  %2585 = vmatprep.subr.mxu0 0.0
  %2586 = vmatpush2.msra.mxu0 0.0
  %2587 = vmatprep.subr.mxu0 0.0
  %2588 = vmatpush2.msra.mxu0 0.0
  %2589 = vmatprep.subr.mxu0 0.0
  %2590 = vmatpush2.msra.mxu0 0.0
  %2591 = vmatprep.subr.mxu0 0.0
  %2592 = vmatpush2.msra.mxu0 0.0
  %2593 = vmatprep.subr.mxu0 0.0
  %2594 = vmatpush2.msra.mxu0 0.0
  %2595 = vmatprep.subr.mxu0 0.0
  %2596 = vmatpush2.msra.mxu0 0.0
  %2597 = vmatprep.subr.mxu0 0.0
  %2598 = vmatpush2.msra.mxu0 0.0
  %2599 = vmatprep.mubr.f32.mxu0 0.0
  %2600 = vmatmul.mubr.f32.gmra.mxu0 %v2531
  %v2601 = vpop.f32.mrf.mxu0
  %v2602 = vadd.f32 0.0, %v2601
  %v2603 = vpop.f32.mrf.mxu0
  %2604 = vmatprep.mubr.f32.mxu0 0.0
  %2605 = vmatmul.mubr.f32.gmra.mxu0 %v2533
  %v2606 = vpop.f32.mrf.mxu0
  %v2607 = vadd.f32 0.0, %v2606
  %v2608 = vpop.f32.mrf.mxu0
  %2609 = vdwg.mxu0
  %2610 = vrot.lane.b32.xlu0 %v22, 64
  %v2611 = vpop.permute.xlu0 %2610
  %2612 = vrot.lane.b32.xlu0 %v23, 64
  %v2613 = vpop.permute.xlu0 %2612
  %2614 = vrot.lane.b32.xlu0 %v2254, 121
  %v2615 = vpop.permute.xlu0 %2614
  %v2617 = vsel %vm1074, %v2611, 0
  %v2619 = vsel %vm1074, %v2613, 0
  %2621 = vmatprep.subr.mxu0 0.0
  %2622 = vmatpush1.msra.mxu0 0.0
  %2623 = vmatprep.subr.mxu0 0.0
  %2624 = vmatpush1.msra.mxu0 0.0
  %2625 = vmatprep.subr.mxu0 0.0
  %2626 = vmatpush1.msra.mxu0 0.0
  %2627 = vmatprep.subr.mxu0 0.0
  %2628 = vmatpush1.msra.mxu0 0.0
  %2629 = vmatprep.subr.mxu0 0.0
  %2630 = vmatpush1.msra.mxu0 0.0
  %2631 = vmatprep.subr.mxu0 0.0
  %2632 = vmatpush1.msra.mxu0 0.0
  %2633 = vmatprep.subr.mxu0 0.0
  %2634 = vmatpush1.msra.mxu0 0.0
  %2635 = vmatprep.subr.mxu0 0.0
  %2636 = vmatpush1.msra.mxu0 0.0
  %2637 = vmatprep.subr.mxu0 0.0
  %2638 = vmatpush1.msra.mxu0 0.0
  %2639 = vmatprep.subr.mxu0 0.0
  %2640 = vmatpush1.msra.mxu0 0.0
  %2641 = vmatprep.subr.mxu0 0.0
  %2642 = vmatpush1.msra.mxu0 0.0
  %2643 = vmatprep.subr.mxu0 0.0
  %2644 = vmatpush1.msra.mxu0 0.0
  %2645 = vmatprep.subr.mxu0 0.0
  %2646 = vmatpush1.msra.mxu0 0.0
  %2647 = vmatprep.subr.mxu0 0.0
  %2648 = vmatpush1.msra.mxu0 0.0
  %2649 = vmatprep.subr.mxu0 0.0
  %2650 = vmatpush1.msra.mxu0 0.0
  %2651 = vmatprep.subr.mxu0 0.0
  %2652 = vmatpush1.msra.mxu0 %v2615
  %2653 = vmatprep.subr.mxu0 0.0
  %2654 = vmatpush2.msra.mxu0 0.0
  %2655 = vmatprep.subr.mxu0 0.0
  %2656 = vmatpush2.msra.mxu0 0.0
  %2657 = vmatprep.subr.mxu0 0.0
  %2658 = vmatpush2.msra.mxu0 0.0
  %2659 = vmatprep.subr.mxu0 0.0
  %2660 = vmatpush2.msra.mxu0 0.0
  %2661 = vmatprep.subr.mxu0 0.0
  %2662 = vmatpush2.msra.mxu0 0.0
  %2663 = vmatprep.subr.mxu0 0.0
  %2664 = vmatpush2.msra.mxu0 0.0
  %2665 = vmatprep.subr.mxu0 0.0
  %2666 = vmatpush2.msra.mxu0 0.0
  %2667 = vmatprep.subr.mxu0 0.0
  %2668 = vmatpush2.msra.mxu0 0.0
  %2669 = vmatprep.subr.mxu0 0.0
  %2670 = vmatpush2.msra.mxu0 0.0
  %2671 = vmatprep.subr.mxu0 0.0
  %2672 = vmatpush2.msra.mxu0 0.0
  %2673 = vmatprep.subr.mxu0 0.0
  %2674 = vmatpush2.msra.mxu0 0.0
  %2675 = vmatprep.subr.mxu0 0.0
  %2676 = vmatpush2.msra.mxu0 0.0
  %2677 = vmatprep.subr.mxu0 0.0
  %2678 = vmatpush2.msra.mxu0 0.0
  %2679 = vmatprep.subr.mxu0 0.0
  %2680 = vmatpush2.msra.mxu0 0.0
  %2681 = vmatprep.subr.mxu0 0.0
  %2682 = vmatpush2.msra.mxu0 0.0
  %2683 = vmatprep.subr.mxu0 0.0
  %2684 = vmatpush2.msra.mxu0 0.0
  %2685 = vmatprep.mubr.f32.mxu0 0.0
  %2686 = vmatmul.mubr.f32.gmra.mxu0 %v2617
  %v2687 = vpop.f32.mrf.mxu0
  %v2688 = vadd.f32 0.0, %v2687
  %v2689 = vpop.f32.mrf.mxu0
  %2690 = vmatprep.mubr.f32.mxu0 0.0
  %2691 = vmatmul.mubr.f32.gmra.mxu0 %v2619
  %v2692 = vpop.f32.mrf.mxu0
  %v2693 = vadd.f32 0.0, %v2692
  %v2694 = vpop.f32.mrf.mxu0
  %2695 = vdwg.mxu0
  %2696 = vrot.lane.b32.xlu0 %v2254, 63
  %v2697 = vpop.permute.xlu0 %2696
  %2698 = vrot.lane.b32.xlu0 %v2253, 63
  %v2699 = vpop.permute.xlu0 %2698
  %vm2700 = vcmask 515072
  %v2701 = vsel %vm2700, %v2697, %v2699
  %v2703 = vsel %vm1074, %v22, 0
  %v2705 = vsel %vm1074, %v23, 0
  %2707 = vmatprep.subr.mxu0 0.0
  %2708 = vmatpush1.msra.mxu0 0.0
  %2709 = vmatprep.subr.mxu0 0.0
  %2710 = vmatpush1.msra.mxu0 0.0
  %2711 = vmatprep.subr.mxu0 0.0
  %2712 = vmatpush1.msra.mxu0 0.0
  %2713 = vmatprep.subr.mxu0 0.0
  %2714 = vmatpush1.msra.mxu0 0.0
  %2715 = vmatprep.subr.mxu0 0.0
  %2716 = vmatpush1.msra.mxu0 0.0
  %2717 = vmatprep.subr.mxu0 0.0
  %2718 = vmatpush1.msra.mxu0 0.0
  %2719 = vmatprep.subr.mxu0 0.0
  %2720 = vmatpush1.msra.mxu0 0.0
  %2721 = vmatprep.subr.mxu0 0.0
  %2722 = vmatpush1.msra.mxu0 0.0
  %2723 = vmatprep.subr.mxu0 0.0
  %2724 = vmatpush1.msra.mxu0 0.0
  %2725 = vmatprep.subr.mxu0 0.0
  %2726 = vmatpush1.msra.mxu0 0.0
  %2727 = vmatprep.subr.mxu0 0.0
  %2728 = vmatpush1.msra.mxu0 0.0
  %2729 = vmatprep.subr.mxu0 0.0
  %2730 = vmatpush1.msra.mxu0 0.0
  %2731 = vmatprep.subr.mxu0 0.0
  %2732 = vmatpush1.msra.mxu0 0.0
  %2733 = vmatprep.subr.mxu0 0.0
  %2734 = vmatpush1.msra.mxu0 0.0
  %2735 = vmatprep.subr.mxu0 0.0
  %2736 = vmatpush1.msra.mxu0 0.0
  %2737 = vmatprep.subr.mxu0 0.0
  %2738 = vmatpush1.msra.mxu0 %v2701
  %2739 = vmatprep.subr.mxu0 0.0
  %2740 = vmatpush2.msra.mxu0 0.0
  %2741 = vmatprep.subr.mxu0 0.0
  %2742 = vmatpush2.msra.mxu0 0.0
  %2743 = vmatprep.subr.mxu0 0.0
  %2744 = vmatpush2.msra.mxu0 0.0
  %2745 = vmatprep.subr.mxu0 0.0
  %2746 = vmatpush2.msra.mxu0 0.0
  %2747 = vmatprep.subr.mxu0 0.0
  %2748 = vmatpush2.msra.mxu0 0.0
  %2749 = vmatprep.subr.mxu0 0.0
  %2750 = vmatpush2.msra.mxu0 0.0
  %2751 = vmatprep.subr.mxu0 0.0
  %2752 = vmatpush2.msra.mxu0 0.0
  %2753 = vmatprep.subr.mxu0 0.0
  %2754 = vmatpush2.msra.mxu0 0.0
  %2755 = vmatprep.subr.mxu0 0.0
  %2756 = vmatpush2.msra.mxu0 0.0
  %2757 = vmatprep.subr.mxu0 0.0
  %2758 = vmatpush2.msra.mxu0 0.0
  %2759 = vmatprep.subr.mxu0 0.0
  %2760 = vmatpush2.msra.mxu0 0.0
  %2761 = vmatprep.subr.mxu0 0.0
  %2762 = vmatpush2.msra.mxu0 0.0
  %2763 = vmatprep.subr.mxu0 0.0
  %2764 = vmatpush2.msra.mxu0 0.0
  %2765 = vmatprep.subr.mxu0 0.0
  %2766 = vmatpush2.msra.mxu0 0.0
  %2767 = vmatprep.subr.mxu0 0.0
  %2768 = vmatpush2.msra.mxu0 0.0
  %2769 = vmatprep.subr.mxu0 0.0
  %2770 = vmatpush2.msra.mxu0 0.0
  %2771 = vmatprep.mubr.f32.mxu0 0.0
  %2772 = vmatmul.mubr.f32.gmra.mxu0 %v2703
  %v2773 = vpop.f32.mrf.mxu0
  %v2774 = vadd.f32 %v2341, %v2773
  %v2775 = vpop.f32.mrf.mxu0
  %2776 = vmatprep.mubr.f32.mxu0 0.0
  %2777 = vmatmul.mubr.f32.gmra.mxu0 %v2705
  %v2778 = vpop.f32.mrf.mxu0
  %v2779 = vadd.f32 %v2346, %v2778
  %v2780 = vpop.f32.mrf.mxu0
  %2781 = vdwg.mxu0
  %2782 = vrot.lane.b32.xlu0 %v22, 112
  %v2783 = vpop.permute.xlu0 %2782
  %2784 = vrot.lane.b32.xlu0 %v23, 112
  %v2785 = vpop.permute.xlu0 %2784
  %2786 = vrot.lane.b32.xlu0 %v2254, 61
  %v2787 = vpop.permute.xlu0 %2786
  %2788 = vrot.lane.b32.xlu0 %v2253, 61
  %v2789 = vpop.permute.xlu0 %2788
  %vm2790 = vcmask 498688
  %v2791 = vsel %vm2790, %v2787, %v2789
  %v2793 = vsel %vm1074, %v2783, 0
  %v2795 = vsel %vm1074, %v2785, 0
  %2797 = vmatprep.subr.mxu0 0.0
  %2798 = vmatpush1.msra.mxu0 0.0
  %2799 = vmatprep.subr.mxu0 0.0
  %2800 = vmatpush1.msra.mxu0 0.0
  %2801 = vmatprep.subr.mxu0 0.0
  %2802 = vmatpush1.msra.mxu0 0.0
  %2803 = vmatprep.subr.mxu0 0.0
  %2804 = vmatpush1.msra.mxu0 0.0
  %2805 = vmatprep.subr.mxu0 0.0
  %2806 = vmatpush1.msra.mxu0 0.0
  %2807 = vmatprep.subr.mxu0 0.0
  %2808 = vmatpush1.msra.mxu0 0.0
  %2809 = vmatprep.subr.mxu0 0.0
  %2810 = vmatpush1.msra.mxu0 0.0
  %2811 = vmatprep.subr.mxu0 0.0
  %2812 = vmatpush1.msra.mxu0 0.0
  %2813 = vmatprep.subr.mxu0 0.0
  %2814 = vmatpush1.msra.mxu0 0.0
  %2815 = vmatprep.subr.mxu0 0.0
  %2816 = vmatpush1.msra.mxu0 0.0
  %2817 = vmatprep.subr.mxu0 0.0
  %2818 = vmatpush1.msra.mxu0 0.0
  %2819 = vmatprep.subr.mxu0 0.0
  %2820 = vmatpush1.msra.mxu0 0.0
  %2821 = vmatprep.subr.mxu0 0.0
  %2822 = vmatpush1.msra.mxu0 0.0
  %2823 = vmatprep.subr.mxu0 0.0
  %2824 = vmatpush1.msra.mxu0 0.0
  %2825 = vmatprep.subr.mxu0 0.0
  %2826 = vmatpush1.msra.mxu0 0.0
  %2827 = vmatprep.subr.mxu0 0.0
  %2828 = vmatpush1.msra.mxu0 %v2791
  %2829 = vmatprep.subr.mxu0 0.0
  %2830 = vmatpush2.msra.mxu0 0.0
  %2831 = vmatprep.subr.mxu0 0.0
  %2832 = vmatpush2.msra.mxu0 0.0
  %2833 = vmatprep.subr.mxu0 0.0
  %2834 = vmatpush2.msra.mxu0 0.0
  %2835 = vmatprep.subr.mxu0 0.0
  %2836 = vmatpush2.msra.mxu0 0.0
  %2837 = vmatprep.subr.mxu0 0.0
  %2838 = vmatpush2.msra.mxu0 0.0
  %2839 = vmatprep.subr.mxu0 0.0
  %2840 = vmatpush2.msra.mxu0 0.0
  %2841 = vmatprep.subr.mxu0 0.0
  %2842 = vmatpush2.msra.mxu0 0.0
  %2843 = vmatprep.subr.mxu0 0.0
  %2844 = vmatpush2.msra.mxu0 0.0
  %2845 = vmatprep.subr.mxu0 0.0
  %2846 = vmatpush2.msra.mxu0 0.0
  %2847 = vmatprep.subr.mxu0 0.0
  %2848 = vmatpush2.msra.mxu0 0.0
  %2849 = vmatprep.subr.mxu0 0.0
  %2850 = vmatpush2.msra.mxu0 0.0
  %2851 = vmatprep.subr.mxu0 0.0
  %2852 = vmatpush2.msra.mxu0 0.0
  %2853 = vmatprep.subr.mxu0 0.0
  %2854 = vmatpush2.msra.mxu0 0.0
  %2855 = vmatprep.subr.mxu0 0.0
  %2856 = vmatpush2.msra.mxu0 0.0
  %2857 = vmatprep.subr.mxu0 0.0
  %2858 = vmatpush2.msra.mxu0 0.0
  %2859 = vmatprep.subr.mxu0 0.0
  %2860 = vmatpush2.msra.mxu0 0.0
  %2861 = vmatprep.mubr.f32.mxu0 0.0
  %2862 = vmatmul.mubr.f32.gmra.mxu0 %v2793
  %v2863 = vpop.f32.mrf.mxu0
  %v2864 = vadd.f32 %v2430, %v2863
  %v2865 = vpop.f32.mrf.mxu0
  %2866 = vmatprep.mubr.f32.mxu0 0.0
  %2867 = vmatmul.mubr.f32.gmra.mxu0 %v2795
  %v2868 = vpop.f32.mrf.mxu0
  %v2869 = vadd.f32 %v2435, %v2868
  %v2870 = vpop.f32.mrf.mxu0
  %2871 = vdwg.mxu0
  %2872 = vrot.lane.b32.xlu0 %v22, 96
  %v2873 = vpop.permute.xlu0 %2872
  %2874 = vrot.lane.b32.xlu0 %v23, 96
  %v2875 = vpop.permute.xlu0 %2874
  %v2876 = vsel %vm1074, %v2873, 0
  %v2878 = vsel %vm1074, %v2875, 0
  %2880 = vmatprep.subr.mxu0 0.0
  %2881 = vmatpush1.msra.mxu0 0.0
  %2882 = vmatprep.subr.mxu0 0.0
  %2883 = vmatpush1.msra.mxu0 0.0
  %2884 = vmatprep.subr.mxu0 0.0
  %2885 = vmatpush1.msra.mxu0 0.0
  %2886 = vmatprep.subr.mxu0 0.0
  %2887 = vmatpush1.msra.mxu0 0.0
  %2888 = vmatprep.subr.mxu0 0.0
  %2889 = vmatpush1.msra.mxu0 0.0
  %2890 = vmatprep.subr.mxu0 0.0
  %2891 = vmatpush1.msra.mxu0 0.0
  %2892 = vmatprep.subr.mxu0 0.0
  %2893 = vmatpush1.msra.mxu0 0.0
  %2894 = vmatprep.subr.mxu0 0.0
  %2895 = vmatpush1.msra.mxu0 0.0
  %2896 = vmatprep.subr.mxu0 0.0
  %2897 = vmatpush1.msra.mxu0 0.0
  %2898 = vmatprep.subr.mxu0 0.0
  %2899 = vmatpush1.msra.mxu0 0.0
  %2900 = vmatprep.subr.mxu0 0.0
  %2901 = vmatpush1.msra.mxu0 0.0
  %2902 = vmatprep.subr.mxu0 0.0
  %2903 = vmatpush1.msra.mxu0 0.0
  %2904 = vmatprep.subr.mxu0 0.0
  %2905 = vmatpush1.msra.mxu0 0.0
  %2906 = vmatprep.subr.mxu0 0.0
  %2907 = vmatpush1.msra.mxu0 0.0
  %2908 = vmatprep.subr.mxu0 0.0
  %2909 = vmatpush1.msra.mxu0 0.0
  %2910 = vmatprep.subr.mxu0 0.0
  %2911 = vmatpush1.msra.mxu0 %v2246
  %2912 = vmatprep.subr.mxu0 0.0
  %2913 = vmatpush2.msra.mxu0 0.0
  %2914 = vmatprep.subr.mxu0 0.0
  %2915 = vmatpush2.msra.mxu0 0.0
  %2916 = vmatprep.subr.mxu0 0.0
  %2917 = vmatpush2.msra.mxu0 0.0
  %2918 = vmatprep.subr.mxu0 0.0
  %2919 = vmatpush2.msra.mxu0 0.0
  %2920 = vmatprep.subr.mxu0 0.0
  %2921 = vmatpush2.msra.mxu0 0.0
  %2922 = vmatprep.subr.mxu0 0.0
  %2923 = vmatpush2.msra.mxu0 0.0
  %2924 = vmatprep.subr.mxu0 0.0
  %2925 = vmatpush2.msra.mxu0 0.0
  %2926 = vmatprep.subr.mxu0 0.0
  %2927 = vmatpush2.msra.mxu0 0.0
  %2928 = vmatprep.subr.mxu0 0.0
  %2929 = vmatpush2.msra.mxu0 0.0
  %2930 = vmatprep.subr.mxu0 0.0
  %2931 = vmatpush2.msra.mxu0 0.0
  %2932 = vmatprep.subr.mxu0 0.0
  %2933 = vmatpush2.msra.mxu0 0.0
  %2934 = vmatprep.subr.mxu0 0.0
  %2935 = vmatpush2.msra.mxu0 0.0
  %2936 = vmatprep.subr.mxu0 0.0
  %2937 = vmatpush2.msra.mxu0 0.0
  %2938 = vmatprep.subr.mxu0 0.0
  %2939 = vmatpush2.msra.mxu0 0.0
  %2940 = vmatprep.subr.mxu0 0.0
  %2941 = vmatpush2.msra.mxu0 0.0
  %2942 = vmatprep.subr.mxu0 0.0
  %2943 = vmatpush2.msra.mxu0 0.0
  %2944 = vmatprep.mubr.f32.mxu0 0.0
  %2945 = vmatmul.mubr.f32.gmra.mxu0 %v2876
  %v2946 = vpop.f32.mrf.mxu0
  %v2947 = vadd.f32 %v2516, %v2946
  %v2948 = vpop.f32.mrf.mxu0
  %2949 = vmatprep.mubr.f32.mxu0 0.0
  %2950 = vmatmul.mubr.f32.gmra.mxu0 %v2878
  %v2951 = vpop.f32.mrf.mxu0
  %v2952 = vadd.f32 %v2521, %v2951
  %v2953 = vpop.f32.mrf.mxu0
  %2954 = vdwg.mxu0
  %2955 = vrot.lane.b32.xlu0 %v22, 80
  %v2956 = vpop.permute.xlu0 %2955
  %2957 = vrot.lane.b32.xlu0 %v23, 80
  %v2958 = vpop.permute.xlu0 %2957
  %2959 = vrot.lane.b32.xlu0 %v2254, 123
  %v2960 = vpop.permute.xlu0 %2959
  %v2962 = vsel %vm1074, %v2956, 0
  %v2964 = vsel %vm1074, %v2958, 0
  %2966 = vmatprep.subr.mxu0 0.0
  %2967 = vmatpush1.msra.mxu0 0.0
  %2968 = vmatprep.subr.mxu0 0.0
  %2969 = vmatpush1.msra.mxu0 0.0
  %2970 = vmatprep.subr.mxu0 0.0
  %2971 = vmatpush1.msra.mxu0 0.0
  %2972 = vmatprep.subr.mxu0 0.0
  %2973 = vmatpush1.msra.mxu0 0.0
  %2974 = vmatprep.subr.mxu0 0.0
  %2975 = vmatpush1.msra.mxu0 0.0
  %2976 = vmatprep.subr.mxu0 0.0
  %2977 = vmatpush1.msra.mxu0 0.0
  %2978 = vmatprep.subr.mxu0 0.0
  %2979 = vmatpush1.msra.mxu0 0.0
  %2980 = vmatprep.subr.mxu0 0.0
  %2981 = vmatpush1.msra.mxu0 0.0
  %2982 = vmatprep.subr.mxu0 0.0
  %2983 = vmatpush1.msra.mxu0 0.0
  %2984 = vmatprep.subr.mxu0 0.0
  %2985 = vmatpush1.msra.mxu0 0.0
  %2986 = vmatprep.subr.mxu0 0.0
  %2987 = vmatpush1.msra.mxu0 0.0
  %2988 = vmatprep.subr.mxu0 0.0
  %2989 = vmatpush1.msra.mxu0 0.0
  %2990 = vmatprep.subr.mxu0 0.0
  %2991 = vmatpush1.msra.mxu0 0.0
  %2992 = vmatprep.subr.mxu0 0.0
  %2993 = vmatpush1.msra.mxu0 0.0
  %2994 = vmatprep.subr.mxu0 0.0
  %2995 = vmatpush1.msra.mxu0 0.0
  %2996 = vmatprep.subr.mxu0 0.0
  %2997 = vmatpush1.msra.mxu0 %v2960
  %2998 = vmatprep.subr.mxu0 0.0
  %2999 = vmatpush2.msra.mxu0 0.0
  %3000 = vmatprep.subr.mxu0 0.0
  %3001 = vmatpush2.msra.mxu0 0.0
  %3002 = vmatprep.subr.mxu0 0.0
  %3003 = vmatpush2.msra.mxu0 0.0
  %3004 = vmatprep.subr.mxu0 0.0
  %3005 = vmatpush2.msra.mxu0 0.0
  %3006 = vmatprep.subr.mxu0 0.0
  %3007 = vmatpush2.msra.mxu0 0.0
  %3008 = vmatprep.subr.mxu0 0.0
  %3009 = vmatpush2.msra.mxu0 0.0
  %3010 = vmatprep.subr.mxu0 0.0
  %3011 = vmatpush2.msra.mxu0 0.0
  %3012 = vmatprep.subr.mxu0 0.0
  %3013 = vmatpush2.msra.mxu0 0.0
  %3014 = vmatprep.subr.mxu0 0.0
  %3015 = vmatpush2.msra.mxu0 0.0
  %3016 = vmatprep.subr.mxu0 0.0
  %3017 = vmatpush2.msra.mxu0 0.0
  %3018 = vmatprep.subr.mxu0 0.0
  %3019 = vmatpush2.msra.mxu0 0.0
  %3020 = vmatprep.subr.mxu0 0.0
  %3021 = vmatpush2.msra.mxu0 0.0
  %3022 = vmatprep.subr.mxu0 0.0
  %3023 = vmatpush2.msra.mxu0 0.0
  %3024 = vmatprep.subr.mxu0 0.0
  %3025 = vmatpush2.msra.mxu0 0.0
  %3026 = vmatprep.subr.mxu0 0.0
  %3027 = vmatpush2.msra.mxu0 0.0
  %3028 = vmatprep.subr.mxu0 0.0
  %3029 = vmatpush2.msra.mxu0 0.0
  %3030 = vmatprep.mubr.f32.mxu0 0.0
  %3031 = vmatmul.mubr.f32.gmra.mxu0 %v2962
  %v3032 = vpop.f32.mrf.mxu0
  %v3033 = vadd.f32 %v2602, %v3032
  %v3034 = vpop.f32.mrf.mxu0
  %3035 = vmatprep.mubr.f32.mxu0 0.0
  %3036 = vmatmul.mubr.f32.gmra.mxu0 %v2964
  %v3037 = vpop.f32.mrf.mxu0
  %v3038 = vadd.f32 %v2607, %v3037
  %v3039 = vpop.f32.mrf.mxu0
  %3040 = vdwg.mxu0
  %v3041 = vadd.f32 %v2774, %v2864
  %v3042 = vadd.f32 %v2779, %v2869
  %v3043 = vadd.f32 %v2947, %v3033
  %v3044 = vadd.f32 %v2952, %v3038
  %v3045 = vadd.f32 %v3041, %v3043
  %v3046 = vadd.f32 %v3042, %v3044
  %v3047 = vadd.f32 %v3045, %v2688
  %v3048 = vadd.f32 %v3046, %v2693
  %3049 = vset.pattern.permute.xlu0 72
  %3050 = vperm.xlu0 %3049, %v22
  %v3051 = vpop.permute.xlu0 %3050
  %3053 = vset.pattern.permute.xlu0 72
  %3054 = vperm.xlu0 %3053, %v23
  %v3055 = vpop.permute.xlu0 %3054
  %v3057 = vadd.f32 %v3047, %v3051
  %v3058 = vadd.f32 %v3048, %v3055
  %v3059 = vmax.f32 %v3057, 0.0
  %v3060 = vmax.f32 %v3058, 0.0
  %3061 = vrot.lane.b32.xlu0 %v3059, 72
  %v3062 = vpop.permute.xlu0 %3061
  %v3063 = vsel %vm1290, %v3062, %v3059
  %3064 = vrot.lane.b32.xlu0 %v3060, 72
  %v3065 = vpop.permute.xlu0 %3064
  %v3066 = vsel %vm1290, %v3065, %v3060
  %3067 = vrot.lane.b32.xlu0 %v3063, 72
  %v3068 = vpop.permute.xlu0 %3067
  %3069 = vrot.lane.b32.xlu0 %v3066, 72
  %v3070 = vpop.permute.xlu0 %3069
  %v3071 = vsel %vm1290, %v3068, %v3059
  %v3072 = vsel %vm1290, %v3070, %v3060
  %3075 = vrot.lane.b32.xlu0 %v3071, 127
  %v3076 = vpop.permute.xlu0 %3075
  %3077 = vrot.lane.b32.xlu0 %v3072, 127
  %v3078 = vpop.permute.xlu0 %3077
  %v3081 = vmax.f32 %v3059, %v3076
  %v3082 = vmax.f32 %v3060, %v3078
  %3083 = vrot.lane.b32.xlu0 %v3071, 122
  %v3084 = vpop.permute.xlu0 %3083
  %3085 = vrot.lane.b32.xlu0 %v3072, 122
  %v3086 = vpop.permute.xlu0 %3085
  %v3089 = vmax.f32 %v3081, %v3084
  %v3090 = vmax.f32 %v3082, %v3086
  %3091 = vrot.lane.b32.xlu0 %v3071, 121
  %v3092 = vpop.permute.xlu0 %3091
  %3093 = vrot.lane.b32.xlu0 %v3072, 121
  %v3094 = vpop.permute.xlu0 %3093
  %v3097 = vmax.f32 %v3089, %v3092
  %v3098 = vmax.f32 %v3090, %v3094
  %v3099 = vld [vmem:[%s2 + $0x2] sm:$0x1]
  %v3100 = vlaneseq
  %v3101 = vshrl.u32 %v3100, 7
  %v3102 = vsub.s32 0, %v3101
  %v3103 = vrot.slane %v3099, %v3102
  %vm3104 = vcmp.eq.s32.totalorder %v633, %v3103
  %vm3105 = vcmp.eq.s32.totalorder %v634, %v3103
  %vm3106 = vcmp.eq.s32.totalorder %v635, %v3103
  %vm3107 = vcmp.eq.s32.totalorder %v636, %v3103
  %vm3108 = vcmp.eq.s32.totalorder %v637, %v3103
  %vm3109 = vcmp.eq.s32.totalorder %v638, %v3103
  %vm3110 = vcmp.eq.s32.totalorder %v639, %v3103
  %vm3111 = vcmp.eq.s32.totalorder %v640, %v3103
  %vm3112 = vcmp.eq.s32.totalorder %v641, %v3103
  %v3113 = vsel %vm3104, 1.0, 0.0
  %v3114 = vsel %vm3105, 1.0, 0.0
  %v3115 = vsel %vm3106, 1.0, 0.0
  %v3116 = vsel %vm3107, 1.0, 0.0
  %v3117 = vsel %vm3108, 1.0, 0.0
  %v3118 = vsel %vm3109, 1.0, 0.0
  %v3119 = vsel %vm3110, 1.0, 0.0
  %v3120 = vsel %vm3111, 1.0, 0.0
  %v3121 = vsel %vm3112, 1.0, 0.0
  %v3123 = vsel %vm2175, %v3097, 0
  %v3126 = vsel %vm2175, %v3098, 0
  %3128 = vmatprep.subr.mxu0 0.0
  %3129 = vmatpush1.msra.mxu0 0.0
  %3130 = vmatprep.subr.mxu0 0.0
  %3131 = vmatpush1.msra.mxu0 0.0
  %3132 = vmatprep.subr.mxu0 0.0
  %3133 = vmatpush1.msra.mxu0 0.0
  %3134 = vmatprep.subr.mxu0 0.0
  %3135 = vmatpush1.msra.mxu0 0.0
  %3136 = vmatprep.subr.mxu0 0.0
  %3137 = vmatpush1.msra.mxu0 0.0
  %3138 = vmatprep.subr.mxu0 0.0
  %3139 = vmatpush1.msra.mxu0 0.0
  %3140 = vmatprep.subr.mxu0 0.0
  %3141 = vmatpush1.msra.mxu0 0.0
  %3142 = vmatprep.subr.mxu0 0.0
  %3143 = vmatpush1.msra.mxu0 %v3121
  %3144 = vmatprep.subr.mxu0 0.0
  %3145 = vmatpush1.msra.mxu0 %v3120
  %3146 = vmatprep.subr.mxu0 0.0
  %3147 = vmatpush1.msra.mxu0 %v3119
  %3148 = vmatprep.subr.mxu0 0.0
  %3149 = vmatpush1.msra.mxu0 %v3118
  %3150 = vmatprep.subr.mxu0 0.0
  %3151 = vmatpush1.msra.mxu0 %v3117
  %3152 = vmatprep.subr.mxu0 0.0
  %3153 = vmatpush1.msra.mxu0 %v3116
  %3154 = vmatprep.subr.mxu0 0.0
  %3155 = vmatpush1.msra.mxu0 %v3115
  %3156 = vmatprep.subr.mxu0 0.0
  %3157 = vmatpush1.msra.mxu0 %v3114
  %3158 = vmatprep.subr.mxu0 0.0
  %3159 = vmatpush1.msra.mxu0 %v3113
  %3160 = vmatprep.subr.mxu0 0.0
  %3161 = vmatpush2.msra.mxu0 0.0
  %3162 = vmatprep.subr.mxu0 0.0
  %3163 = vmatpush2.msra.mxu0 0.0
  %3164 = vmatprep.subr.mxu0 0.0
  %3165 = vmatpush2.msra.mxu0 0.0
  %3166 = vmatprep.subr.mxu0 0.0
  %3167 = vmatpush2.msra.mxu0 0.0
  %3168 = vmatprep.subr.mxu0 0.0
  %3169 = vmatpush2.msra.mxu0 0.0
  %3170 = vmatprep.subr.mxu0 0.0
  %3171 = vmatpush2.msra.mxu0 0.0
  %3172 = vmatprep.subr.mxu0 0.0
  %3173 = vmatpush2.msra.mxu0 0.0
  %3174 = vmatprep.subr.mxu0 0.0
  %3175 = vmatpush2.msra.mxu0 0.0
  %3176 = vmatprep.subr.mxu0 0.0
  %3177 = vmatpush2.msra.mxu0 0.0
  %3178 = vmatprep.subr.mxu0 0.0
  %3179 = vmatpush2.msra.mxu0 0.0
  %3180 = vmatprep.subr.mxu0 0.0
  %3181 = vmatpush2.msra.mxu0 0.0
  %3182 = vmatprep.subr.mxu0 0.0
  %3183 = vmatpush2.msra.mxu0 0.0
  %3184 = vmatprep.subr.mxu0 0.0
  %3185 = vmatpush2.msra.mxu0 0.0
  %3186 = vmatprep.subr.mxu0 0.0
  %3187 = vmatpush2.msra.mxu0 0.0
  %3188 = vmatprep.subr.mxu0 0.0
  %3189 = vmatpush2.msra.mxu0 0.0
  %3190 = vmatprep.subr.mxu0 0.0
  %3191 = vmatpush2.msra.mxu0 0.0
  %3192 = vmatprep.mubr.f32.mxu0 0.0
  %3193 = vmatmul.mubr.f32.gmra.mxu0 %v3123
  %v3194 = vpop.f32.mrf.mxu0
  %v3195 = vadd.f32 0.0, %v3194
  %v3196 = vpop.f32.mrf.mxu0
  %3197 = vmatprep.mubr.f32.mxu0 0.0
  %3198 = vmatmul.mubr.f32.gmra.mxu0 %v3126
  %v3199 = vpop.f32.mrf.mxu0
  %v3200 = vadd.f32 0.0, %v3199
  %v3201 = vpop.f32.mrf.mxu0
  %3202 = vdwg.mxu0
  %v3203 = vld [vmem:[%s3] sm:$0xff]
  %v3204 = vld [vmem:[%s3 + $0x8] sm:$0xff]
  %v3205 = vld [vmem:[%s3 + $0x10] sm:$0xff]
  %v3206 = vld [vmem:[%s3 + $0x18] sm:$0xff]
  %v3207 = vld [vmem:[%s3 + $0x20] sm:$0xff]
  %v3208 = vld [vmem:[%s3 + $0x28] sm:$0xff]
  %v3209 = vld [vmem:[%s3 + $0x30] sm:$0xff]
  %v3210 = vld [vmem:[%s3 + $0x38] sm:$0xff]
  %v3211 = vld [vmem:[%s3 + $0x40] sm:$0xff]
  %v3212 = vld [vmem:[%s3 + $0x48] sm:$0xff]
  %v3213 = vld [vmem:[%s3 + $0x50] sm:$0xff]
  %v3214 = vld [vmem:[%s3 + $0x58] sm:$0xff]
  %v3215 = vld [vmem:[%s3 + $0x60] sm:$0xff]
  %v3216 = vld [vmem:[%s3 + $0x68] sm:$0xff]
  %v3217 = vld [vmem:[%s3 + $0x70] sm:$0xff]
  %v3218 = vld [vmem:[%s3 + $0x78] sm:$0xff]
  %3235 = vrot.lane.b32.xlu0 %v3203, 112
  %v3236 = vpop.permute.xlu0 %3235
  %3237 = vrot.lane.b32.xlu0 %v3204, 112
  %v3238 = vpop.permute.xlu0 %3237
  %3239 = vrot.lane.b32.xlu0 %v3205, 112
  %v3240 = vpop.permute.xlu0 %3239
  %3241 = vrot.lane.b32.xlu0 %v3206, 112
  %v3242 = vpop.permute.xlu0 %3241
  %3243 = vrot.lane.b32.xlu0 %v3207, 112
  %v3244 = vpop.permute.xlu0 %3243
  %3245 = vrot.lane.b32.xlu0 %v3208, 112
  %v3246 = vpop.permute.xlu0 %3245
  %3247 = vrot.lane.b32.xlu0 %v3209, 112
  %v3248 = vpop.permute.xlu0 %3247
  %3249 = vrot.lane.b32.xlu0 %v3210, 112
  %v3250 = vpop.permute.xlu0 %3249
  %3251 = vrot.lane.b32.xlu0 %v3211, 112
  %v3252 = vpop.permute.xlu0 %3251
  %3253 = vrot.lane.b32.xlu0 %v3212, 112
  %v3254 = vpop.permute.xlu0 %3253
  %3255 = vrot.lane.b32.xlu0 %v3213, 112
  %v3256 = vpop.permute.xlu0 %3255
  %3257 = vrot.lane.b32.xlu0 %v3214, 112
  %v3258 = vpop.permute.xlu0 %3257
  %3259 = vrot.lane.b32.xlu0 %v3215, 112
  %v3260 = vpop.permute.xlu0 %3259
  %3261 = vrot.lane.b32.xlu0 %v3216, 112
  %v3262 = vpop.permute.xlu0 %3261
  %3263 = vrot.lane.b32.xlu0 %v3217, 112
  %v3264 = vpop.permute.xlu0 %3263
  %3265 = vrot.lane.b32.xlu0 %v3218, 112
  %v3266 = vpop.permute.xlu0 %3265
  %3269 = vrot.lane.b32.xlu0 %v3195, 126
  %v3270 = vpop.permute.xlu0 %3269
  %3271 = vrot.lane.b32.xlu0 %v3200, 126
  %v3272 = vpop.permute.xlu0 %3271
  %vm3275 = vcmask 130048
  %v3276 = vsel %vm3275, %v3236, 0
  %v3278 = vsel %vm3275, %v3238, 0
  %v3280 = vsel %vm3275, %v3240, 0
  %v3282 = vsel %vm3275, %v3242, 0
  %v3284 = vsel %vm3275, %v3244, 0
  %v3286 = vsel %vm3275, %v3246, 0
  %v3288 = vsel %vm3275, %v3248, 0
  %v3290 = vsel %vm3275, %v3250, 0
  %v3292 = vsel %vm3275, %v3252, 0
  %v3294 = vsel %vm3275, %v3254, 0
  %v3296 = vsel %vm3275, %v3256, 0
  %v3298 = vsel %vm3275, %v3258, 0
  %v3300 = vsel %vm3275, %v3260, 0
  %v3302 = vsel %vm3275, %v3262, 0
  %v3304 = vsel %vm3275, %v3264, 0
  %v3306 = vsel %vm3275, %v3266, 0
  %3308 = vmatprep.subr.mxu0 0.0
  %3309 = vmatpush1.msra.mxu0 0.0
  %3310 = vmatprep.subr.mxu0 0.0
  %3311 = vmatpush1.msra.mxu0 0.0
  %3312 = vmatprep.subr.mxu0 0.0
  %3313 = vmatpush1.msra.mxu0 0.0
  %3314 = vmatprep.subr.mxu0 0.0
  %3315 = vmatpush1.msra.mxu0 0.0
  %3316 = vmatprep.subr.mxu0 0.0
  %3317 = vmatpush1.msra.mxu0 0.0
  %3318 = vmatprep.subr.mxu0 0.0
  %3319 = vmatpush1.msra.mxu0 0.0
  %3320 = vmatprep.subr.mxu0 0.0
  %3321 = vmatpush1.msra.mxu0 0.0
  %3322 = vmatprep.subr.mxu0 0.0
  %3323 = vmatpush1.msra.mxu0 0.0
  %3324 = vmatprep.subr.mxu0 0.0
  %3325 = vmatpush1.msra.mxu0 0.0
  %3326 = vmatprep.subr.mxu0 0.0
  %3327 = vmatpush1.msra.mxu0 0.0
  %3328 = vmatprep.subr.mxu0 0.0
  %3329 = vmatpush1.msra.mxu0 0.0
  %3330 = vmatprep.subr.mxu0 0.0
  %3331 = vmatpush1.msra.mxu0 0.0
  %3332 = vmatprep.subr.mxu0 0.0
  %3333 = vmatpush1.msra.mxu0 0.0
  %3334 = vmatprep.subr.mxu0 0.0
  %3335 = vmatpush1.msra.mxu0 0.0
  %3336 = vmatprep.subr.mxu0 0.0
  %3337 = vmatpush1.msra.mxu0 %v3272
  %3338 = vmatprep.subr.mxu0 0.0
  %3339 = vmatpush1.msra.mxu0 %v3270
  %3340 = vmatprep.subr.mxu0 0.0
  %3341 = vmatpush2.msra.mxu0 0.0
  %3342 = vmatprep.subr.mxu0 0.0
  %3343 = vmatpush2.msra.mxu0 0.0
  %3344 = vmatprep.subr.mxu0 0.0
  %3345 = vmatpush2.msra.mxu0 0.0
  %3346 = vmatprep.subr.mxu0 0.0
  %3347 = vmatpush2.msra.mxu0 0.0
  %3348 = vmatprep.subr.mxu0 0.0
  %3349 = vmatpush2.msra.mxu0 0.0
  %3350 = vmatprep.subr.mxu0 0.0
  %3351 = vmatpush2.msra.mxu0 0.0
  %3352 = vmatprep.subr.mxu0 0.0
  %3353 = vmatpush2.msra.mxu0 0.0
  %3354 = vmatprep.subr.mxu0 0.0
  %3355 = vmatpush2.msra.mxu0 0.0
  %3356 = vmatprep.subr.mxu0 0.0
  %3357 = vmatpush2.msra.mxu0 0.0
  %3358 = vmatprep.subr.mxu0 0.0
  %3359 = vmatpush2.msra.mxu0 0.0
  %3360 = vmatprep.subr.mxu0 0.0
  %3361 = vmatpush2.msra.mxu0 0.0
  %3362 = vmatprep.subr.mxu0 0.0
  %3363 = vmatpush2.msra.mxu0 0.0
  %3364 = vmatprep.subr.mxu0 0.0
  %3365 = vmatpush2.msra.mxu0 0.0
  %3366 = vmatprep.subr.mxu0 0.0
  %3367 = vmatpush2.msra.mxu0 0.0
  %3368 = vmatprep.subr.mxu0 0.0
  %3369 = vmatpush2.msra.mxu0 0.0
  %3370 = vmatprep.subr.mxu0 0.0
  %3371 = vmatpush2.msra.mxu0 0.0
  %3372 = vmatprep.mubr.f32.mxu0 0.0
  %3373 = vmatmul.mubr.f32.gmra.mxu0 %v3276
  %v3374 = vpop.f32.mrf.mxu0
  %v3375 = vadd.f32 0.0, %v3374
  %v3376 = vpop.f32.mrf.mxu0
  %3377 = vmatprep.mubr.f32.mxu0 0.0
  %3378 = vmatmul.mubr.f32.gmra.mxu0 %v3278
  %v3379 = vpop.f32.mrf.mxu0
  %v3380 = vadd.f32 0.0, %v3379
  %v3381 = vpop.f32.mrf.mxu0
  %3382 = vmatprep.mubr.f32.mxu0 0.0
  %3383 = vmatmul.mubr.f32.gmra.mxu0 %v3280
  %v3384 = vpop.f32.mrf.mxu0
  %v3385 = vadd.f32 0.0, %v3384
  %v3386 = vpop.f32.mrf.mxu0
  %3387 = vmatprep.mubr.f32.mxu0 0.0
  %3388 = vmatmul.mubr.f32.gmra.mxu0 %v3282
  %v3389 = vpop.f32.mrf.mxu0
  %v3390 = vadd.f32 0.0, %v3389
  %v3391 = vpop.f32.mrf.mxu0
  %3392 = vmatprep.mubr.f32.mxu0 0.0
  %3393 = vmatmul.mubr.f32.gmra.mxu0 %v3284
  %v3394 = vpop.f32.mrf.mxu0
  %v3395 = vadd.f32 0.0, %v3394
  %v3396 = vpop.f32.mrf.mxu0
  %3397 = vmatprep.mubr.f32.mxu0 0.0
  %3398 = vmatmul.mubr.f32.gmra.mxu0 %v3286
  %v3399 = vpop.f32.mrf.mxu0
  %v3400 = vadd.f32 0.0, %v3399
  %v3401 = vpop.f32.mrf.mxu0
  %3402 = vmatprep.mubr.f32.mxu0 0.0
  %3403 = vmatmul.mubr.f32.gmra.mxu0 %v3288
  %v3404 = vpop.f32.mrf.mxu0
  %v3405 = vadd.f32 0.0, %v3404
  %v3406 = vpop.f32.mrf.mxu0
  %3407 = vmatprep.mubr.f32.mxu0 0.0
  %3408 = vmatmul.mubr.f32.gmra.mxu0 %v3290
  %v3409 = vpop.f32.mrf.mxu0
  %v3410 = vadd.f32 0.0, %v3409
  %v3411 = vpop.f32.mrf.mxu0
  %3412 = vmatprep.mubr.f32.mxu0 0.0
  %3413 = vmatmul.mubr.f32.gmra.mxu0 %v3292
  %v3414 = vpop.f32.mrf.mxu0
  %v3415 = vadd.f32 0.0, %v3414
  %v3416 = vpop.f32.mrf.mxu0
  %3417 = vmatprep.mubr.f32.mxu0 0.0
  %3418 = vmatmul.mubr.f32.gmra.mxu0 %v3294
  %v3419 = vpop.f32.mrf.mxu0
  %v3420 = vadd.f32 0.0, %v3419
  %v3421 = vpop.f32.mrf.mxu0
  %3422 = vmatprep.mubr.f32.mxu0 0.0
  %3423 = vmatmul.mubr.f32.gmra.mxu0 %v3296
  %v3424 = vpop.f32.mrf.mxu0
  %v3425 = vadd.f32 0.0, %v3424
  %v3426 = vpop.f32.mrf.mxu0
  %3427 = vmatprep.mubr.f32.mxu0 0.0
  %3428 = vmatmul.mubr.f32.gmra.mxu0 %v3298
  %v3429 = vpop.f32.mrf.mxu0
  %v3430 = vadd.f32 0.0, %v3429
  %v3431 = vpop.f32.mrf.mxu0
  %3432 = vmatprep.mubr.f32.mxu0 0.0
  %3433 = vmatmul.mubr.f32.gmra.mxu0 %v3300
  %v3434 = vpop.f32.mrf.mxu0
  %v3435 = vadd.f32 0.0, %v3434
  %v3436 = vpop.f32.mrf.mxu0
  %3437 = vmatprep.mubr.f32.mxu0 0.0
  %3438 = vmatmul.mubr.f32.gmra.mxu0 %v3302
  %v3439 = vpop.f32.mrf.mxu0
  %v3440 = vadd.f32 0.0, %v3439
  %v3441 = vpop.f32.mrf.mxu0
  %3442 = vmatprep.mubr.f32.mxu0 0.0
  %3443 = vmatmul.mubr.f32.gmra.mxu0 %v3304
  %v3444 = vpop.f32.mrf.mxu0
  %v3445 = vadd.f32 0.0, %v3444
  %v3446 = vpop.f32.mrf.mxu0
  %3447 = vmatprep.mubr.f32.mxu0 0.0
  %3448 = vmatmul.mubr.f32.gmra.mxu0 %v3306
  %v3449 = vpop.f32.mrf.mxu0
  %v3450 = vadd.f32 0.0, %v3449
  %v3451 = vpop.f32.mrf.mxu0
  %3452 = vdwg.mxu0
  %3453 = vrot.lane.b32.xlu0 %v3203, 80
  %v3454 = vpop.permute.xlu0 %3453
  %3455 = vrot.lane.b32.xlu0 %v3204, 80
  %v3456 = vpop.permute.xlu0 %3455
  %3457 = vrot.lane.b32.xlu0 %v3205, 80
  %v3458 = vpop.permute.xlu0 %3457
  %3459 = vrot.lane.b32.xlu0 %v3206, 80
  %v3460 = vpop.permute.xlu0 %3459
  %3461 = vrot.lane.b32.xlu0 %v3207, 80
  %v3462 = vpop.permute.xlu0 %3461
  %3463 = vrot.lane.b32.xlu0 %v3208, 80
  %v3464 = vpop.permute.xlu0 %3463
  %3465 = vrot.lane.b32.xlu0 %v3209, 80
  %v3466 = vpop.permute.xlu0 %3465
  %3467 = vrot.lane.b32.xlu0 %v3210, 80
  %v3468 = vpop.permute.xlu0 %3467
  %3469 = vrot.lane.b32.xlu0 %v3211, 80
  %v3470 = vpop.permute.xlu0 %3469
  %3471 = vrot.lane.b32.xlu0 %v3212, 80
  %v3472 = vpop.permute.xlu0 %3471
  %3473 = vrot.lane.b32.xlu0 %v3213, 80
  %v3474 = vpop.permute.xlu0 %3473
  %3475 = vrot.lane.b32.xlu0 %v3214, 80
  %v3476 = vpop.permute.xlu0 %3475
  %3477 = vrot.lane.b32.xlu0 %v3215, 80
  %v3478 = vpop.permute.xlu0 %3477
  %3479 = vrot.lane.b32.xlu0 %v3216, 80
  %v3480 = vpop.permute.xlu0 %3479
  %3481 = vrot.lane.b32.xlu0 %v3217, 80
  %v3482 = vpop.permute.xlu0 %3481
  %3483 = vrot.lane.b32.xlu0 %v3218, 80
  %v3484 = vpop.permute.xlu0 %3483
  %3485 = vrot.lane.b32.xlu0 %v3195, 122
  %v3486 = vpop.permute.xlu0 %3485
  %3487 = vrot.lane.b32.xlu0 %v3200, 122
  %v3488 = vpop.permute.xlu0 %3487
  %v3491 = vsel %vm3275, %v3454, 0
  %v3493 = vsel %vm3275, %v3456, 0
  %v3495 = vsel %vm3275, %v3458, 0
  %v3497 = vsel %vm3275, %v3460, 0
  %v3499 = vsel %vm3275, %v3462, 0
  %v3501 = vsel %vm3275, %v3464, 0
  %v3503 = vsel %vm3275, %v3466, 0
  %v3505 = vsel %vm3275, %v3468, 0
  %v3507 = vsel %vm3275, %v3470, 0
  %v3509 = vsel %vm3275, %v3472, 0
  %v3511 = vsel %vm3275, %v3474, 0
  %v3513 = vsel %vm3275, %v3476, 0
  %v3515 = vsel %vm3275, %v3478, 0
  %v3517 = vsel %vm3275, %v3480, 0
  %v3519 = vsel %vm3275, %v3482, 0
  %v3521 = vsel %vm3275, %v3484, 0
  %3523 = vmatprep.subr.mxu0 0.0
  %3524 = vmatpush1.msra.mxu0 0.0
  %3525 = vmatprep.subr.mxu0 0.0
  %3526 = vmatpush1.msra.mxu0 0.0
  %3527 = vmatprep.subr.mxu0 0.0
  %3528 = vmatpush1.msra.mxu0 0.0
  %3529 = vmatprep.subr.mxu0 0.0
  %3530 = vmatpush1.msra.mxu0 0.0
  %3531 = vmatprep.subr.mxu0 0.0
  %3532 = vmatpush1.msra.mxu0 0.0
  %3533 = vmatprep.subr.mxu0 0.0
  %3534 = vmatpush1.msra.mxu0 0.0
  %3535 = vmatprep.subr.mxu0 0.0
  %3536 = vmatpush1.msra.mxu0 0.0
  %3537 = vmatprep.subr.mxu0 0.0
  %3538 = vmatpush1.msra.mxu0 0.0
  %3539 = vmatprep.subr.mxu0 0.0
  %3540 = vmatpush1.msra.mxu0 0.0
  %3541 = vmatprep.subr.mxu0 0.0
  %3542 = vmatpush1.msra.mxu0 0.0
  %3543 = vmatprep.subr.mxu0 0.0
  %3544 = vmatpush1.msra.mxu0 0.0
  %3545 = vmatprep.subr.mxu0 0.0
  %3546 = vmatpush1.msra.mxu0 0.0
  %3547 = vmatprep.subr.mxu0 0.0
  %3548 = vmatpush1.msra.mxu0 0.0
  %3549 = vmatprep.subr.mxu0 0.0
  %3550 = vmatpush1.msra.mxu0 0.0
  %3551 = vmatprep.subr.mxu0 0.0
  %3552 = vmatpush1.msra.mxu0 %v3488
  %3553 = vmatprep.subr.mxu0 0.0
  %3554 = vmatpush1.msra.mxu0 %v3486
  %3555 = vmatprep.subr.mxu0 0.0
  %3556 = vmatpush2.msra.mxu0 0.0
  %3557 = vmatprep.subr.mxu0 0.0
  %3558 = vmatpush2.msra.mxu0 0.0
  %3559 = vmatprep.subr.mxu0 0.0
  %3560 = vmatpush2.msra.mxu0 0.0
  %3561 = vmatprep.subr.mxu0 0.0
  %3562 = vmatpush2.msra.mxu0 0.0
  %3563 = vmatprep.subr.mxu0 0.0
  %3564 = vmatpush2.msra.mxu0 0.0
  %3565 = vmatprep.subr.mxu0 0.0
  %3566 = vmatpush2.msra.mxu0 0.0
  %3567 = vmatprep.subr.mxu0 0.0
  %3568 = vmatpush2.msra.mxu0 0.0
  %3569 = vmatprep.subr.mxu0 0.0
  %3570 = vmatpush2.msra.mxu0 0.0
  %3571 = vmatprep.subr.mxu0 0.0
  %3572 = vmatpush2.msra.mxu0 0.0
  %3573 = vmatprep.subr.mxu0 0.0
  %3574 = vmatpush2.msra.mxu0 0.0
  %3575 = vmatprep.subr.mxu0 0.0
  %3576 = vmatpush2.msra.mxu0 0.0
  %3577 = vmatprep.subr.mxu0 0.0
  %3578 = vmatpush2.msra.mxu0 0.0
  %3579 = vmatprep.subr.mxu0 0.0
  %3580 = vmatpush2.msra.mxu0 0.0
  %3581 = vmatprep.subr.mxu0 0.0
  %3582 = vmatpush2.msra.mxu0 0.0
  %3583 = vmatprep.subr.mxu0 0.0
  %3584 = vmatpush2.msra.mxu0 0.0
  %3585 = vmatprep.subr.mxu0 0.0
  %3586 = vmatpush2.msra.mxu0 0.0
  %3587 = vmatprep.mubr.f32.mxu0 0.0
  %3588 = vmatmul.mubr.f32.gmra.mxu0 %v3491
  %v3589 = vpop.f32.mrf.mxu0
  %v3590 = vadd.f32 0.0, %v3589
  %v3591 = vpop.f32.mrf.mxu0
  %3592 = vmatprep.mubr.f32.mxu0 0.0
  %3593 = vmatmul.mubr.f32.gmra.mxu0 %v3493
  %v3594 = vpop.f32.mrf.mxu0
  %v3595 = vadd.f32 0.0, %v3594
  %v3596 = vpop.f32.mrf.mxu0
  %3597 = vmatprep.mubr.f32.mxu0 0.0
  %3598 = vmatmul.mubr.f32.gmra.mxu0 %v3495
  %v3599 = vpop.f32.mrf.mxu0
  %v3600 = vadd.f32 0.0, %v3599
  %v3601 = vpop.f32.mrf.mxu0
  %3602 = vmatprep.mubr.f32.mxu0 0.0
  %3603 = vmatmul.mubr.f32.gmra.mxu0 %v3497
  %v3604 = vpop.f32.mrf.mxu0
  %v3605 = vadd.f32 0.0, %v3604
  %v3606 = vpop.f32.mrf.mxu0
  %3607 = vmatprep.mubr.f32.mxu0 0.0
  %3608 = vmatmul.mubr.f32.gmra.mxu0 %v3499
  %v3609 = vpop.f32.mrf.mxu0
  %v3610 = vadd.f32 0.0, %v3609
  %v3611 = vpop.f32.mrf.mxu0
  %3612 = vmatprep.mubr.f32.mxu0 0.0
  %3613 = vmatmul.mubr.f32.gmra.mxu0 %v3501
  %v3614 = vpop.f32.mrf.mxu0
  %v3615 = vadd.f32 0.0, %v3614
  %v3616 = vpop.f32.mrf.mxu0
  %3617 = vmatprep.mubr.f32.mxu0 0.0
  %3618 = vmatmul.mubr.f32.gmra.mxu0 %v3503
  %v3619 = vpop.f32.mrf.mxu0
  %v3620 = vadd.f32 0.0, %v3619
  %v3621 = vpop.f32.mrf.mxu0
  %3622 = vmatprep.mubr.f32.mxu0 0.0
  %3623 = vmatmul.mubr.f32.gmra.mxu0 %v3505
  %v3624 = vpop.f32.mrf.mxu0
  %v3625 = vadd.f32 0.0, %v3624
  %v3626 = vpop.f32.mrf.mxu0
  %3627 = vmatprep.mubr.f32.mxu0 0.0
  %3628 = vmatmul.mubr.f32.gmra.mxu0 %v3507
  %v3629 = vpop.f32.mrf.mxu0
  %v3630 = vadd.f32 0.0, %v3629
  %v3631 = vpop.f32.mrf.mxu0
  %3632 = vmatprep.mubr.f32.mxu0 0.0
  %3633 = vmatmul.mubr.f32.gmra.mxu0 %v3509
  %v3634 = vpop.f32.mrf.mxu0
  %v3635 = vadd.f32 0.0, %v3634
  %v3636 = vpop.f32.mrf.mxu0
  %3637 = vmatprep.mubr.f32.mxu0 0.0
  %3638 = vmatmul.mubr.f32.gmra.mxu0 %v3511
  %v3639 = vpop.f32.mrf.mxu0
  %v3640 = vadd.f32 0.0, %v3639
  %v3641 = vpop.f32.mrf.mxu0
  %3642 = vmatprep.mubr.f32.mxu0 0.0
  %3643 = vmatmul.mubr.f32.gmra.mxu0 %v3513
  %v3644 = vpop.f32.mrf.mxu0
  %v3645 = vadd.f32 0.0, %v3644
  %v3646 = vpop.f32.mrf.mxu0
  %3647 = vmatprep.mubr.f32.mxu0 0.0
  %3648 = vmatmul.mubr.f32.gmra.mxu0 %v3515
  %v3649 = vpop.f32.mrf.mxu0
  %v3650 = vadd.f32 0.0, %v3649
  %v3651 = vpop.f32.mrf.mxu0
  %3652 = vmatprep.mubr.f32.mxu0 0.0
  %3653 = vmatmul.mubr.f32.gmra.mxu0 %v3517
  %v3654 = vpop.f32.mrf.mxu0
  %v3655 = vadd.f32 0.0, %v3654
  %v3656 = vpop.f32.mrf.mxu0
  %3657 = vmatprep.mubr.f32.mxu0 0.0
  %3658 = vmatmul.mubr.f32.gmra.mxu0 %v3519
  %v3659 = vpop.f32.mrf.mxu0
  %v3660 = vadd.f32 0.0, %v3659
  %v3661 = vpop.f32.mrf.mxu0
  %3662 = vmatprep.mubr.f32.mxu0 0.0
  %3663 = vmatmul.mubr.f32.gmra.mxu0 %v3521
  %v3664 = vpop.f32.mrf.mxu0
  %v3665 = vadd.f32 0.0, %v3664
  %v3666 = vpop.f32.mrf.mxu0
  %3667 = vdwg.mxu0
  %v3668 = vsel %vm3275, %v3203, 0
  %v3670 = vsel %vm3275, %v3204, 0
  %v3672 = vsel %vm3275, %v3205, 0
  %v3674 = vsel %vm3275, %v3206, 0
  %v3676 = vsel %vm3275, %v3207, 0
  %v3678 = vsel %vm3275, %v3208, 0
  %v3680 = vsel %vm3275, %v3209, 0
  %v3682 = vsel %vm3275, %v3210, 0
  %v3684 = vsel %vm3275, %v3211, 0
  %v3686 = vsel %vm3275, %v3212, 0
  %v3688 = vsel %vm3275, %v3213, 0
  %v3690 = vsel %vm3275, %v3214, 0
  %v3692 = vsel %vm3275, %v3215, 0
  %v3694 = vsel %vm3275, %v3216, 0
  %v3696 = vsel %vm3275, %v3217, 0
  %v3698 = vsel %vm3275, %v3218, 0
  %3700 = vmatprep.subr.mxu0 0.0
  %3701 = vmatpush1.msra.mxu0 0.0
  %3702 = vmatprep.subr.mxu0 0.0
  %3703 = vmatpush1.msra.mxu0 0.0
  %3704 = vmatprep.subr.mxu0 0.0
  %3705 = vmatpush1.msra.mxu0 0.0
  %3706 = vmatprep.subr.mxu0 0.0
  %3707 = vmatpush1.msra.mxu0 0.0
  %3708 = vmatprep.subr.mxu0 0.0
  %3709 = vmatpush1.msra.mxu0 0.0
  %3710 = vmatprep.subr.mxu0 0.0
  %3711 = vmatpush1.msra.mxu0 0.0
  %3712 = vmatprep.subr.mxu0 0.0
  %3713 = vmatpush1.msra.mxu0 0.0
  %3714 = vmatprep.subr.mxu0 0.0
  %3715 = vmatpush1.msra.mxu0 0.0
  %3716 = vmatprep.subr.mxu0 0.0
  %3717 = vmatpush1.msra.mxu0 0.0
  %3718 = vmatprep.subr.mxu0 0.0
  %3719 = vmatpush1.msra.mxu0 0.0
  %3720 = vmatprep.subr.mxu0 0.0
  %3721 = vmatpush1.msra.mxu0 0.0
  %3722 = vmatprep.subr.mxu0 0.0
  %3723 = vmatpush1.msra.mxu0 0.0
  %3724 = vmatprep.subr.mxu0 0.0
  %3725 = vmatpush1.msra.mxu0 0.0
  %3726 = vmatprep.subr.mxu0 0.0
  %3727 = vmatpush1.msra.mxu0 0.0
  %3728 = vmatprep.subr.mxu0 0.0
  %3729 = vmatpush1.msra.mxu0 %v3200
  %3730 = vmatprep.subr.mxu0 0.0
  %3731 = vmatpush1.msra.mxu0 %v3195
  %3732 = vmatprep.subr.mxu0 0.0
  %3733 = vmatpush2.msra.mxu0 0.0
  %3734 = vmatprep.subr.mxu0 0.0
  %3735 = vmatpush2.msra.mxu0 0.0
  %3736 = vmatprep.subr.mxu0 0.0
  %3737 = vmatpush2.msra.mxu0 0.0
  %3738 = vmatprep.subr.mxu0 0.0
  %3739 = vmatpush2.msra.mxu0 0.0
  %3740 = vmatprep.subr.mxu0 0.0
  %3741 = vmatpush2.msra.mxu0 0.0
  %3742 = vmatprep.subr.mxu0 0.0
  %3743 = vmatpush2.msra.mxu0 0.0
  %3744 = vmatprep.subr.mxu0 0.0
  %3745 = vmatpush2.msra.mxu0 0.0
  %3746 = vmatprep.subr.mxu0 0.0
  %3747 = vmatpush2.msra.mxu0 0.0
  %3748 = vmatprep.subr.mxu0 0.0
  %3749 = vmatpush2.msra.mxu0 0.0
  %3750 = vmatprep.subr.mxu0 0.0
  %3751 = vmatpush2.msra.mxu0 0.0
  %3752 = vmatprep.subr.mxu0 0.0
  %3753 = vmatpush2.msra.mxu0 0.0
  %3754 = vmatprep.subr.mxu0 0.0
  %3755 = vmatpush2.msra.mxu0 0.0
  %3756 = vmatprep.subr.mxu0 0.0
  %3757 = vmatpush2.msra.mxu0 0.0
  %3758 = vmatprep.subr.mxu0 0.0
  %3759 = vmatpush2.msra.mxu0 0.0
  %3760 = vmatprep.subr.mxu0 0.0
  %3761 = vmatpush2.msra.mxu0 0.0
  %3762 = vmatprep.subr.mxu0 0.0
  %3763 = vmatpush2.msra.mxu0 0.0
  %3764 = vmatprep.mubr.f32.mxu0 0.0
  %3765 = vmatmul.mubr.f32.gmra.mxu0 %v3668
  %v3766 = vpop.f32.mrf.mxu0
  %v3767 = vadd.f32 %v3375, %v3766
  %v3768 = vpop.f32.mrf.mxu0
  %3769 = vmatprep.mubr.f32.mxu0 0.0
  %3770 = vmatmul.mubr.f32.gmra.mxu0 %v3670
  %v3771 = vpop.f32.mrf.mxu0
  %v3772 = vadd.f32 %v3380, %v3771
  %v3773 = vpop.f32.mrf.mxu0
  %3774 = vmatprep.mubr.f32.mxu0 0.0
  %3775 = vmatmul.mubr.f32.gmra.mxu0 %v3672
  %v3776 = vpop.f32.mrf.mxu0
  %v3777 = vadd.f32 %v3385, %v3776
  %v3778 = vpop.f32.mrf.mxu0
  %3779 = vmatprep.mubr.f32.mxu0 0.0
  %3780 = vmatmul.mubr.f32.gmra.mxu0 %v3674
  %v3781 = vpop.f32.mrf.mxu0
  %v3782 = vadd.f32 %v3390, %v3781
  %v3783 = vpop.f32.mrf.mxu0
  %3784 = vmatprep.mubr.f32.mxu0 0.0
  %3785 = vmatmul.mubr.f32.gmra.mxu0 %v3676
  %v3786 = vpop.f32.mrf.mxu0
  %v3787 = vadd.f32 %v3395, %v3786
  %v3788 = vpop.f32.mrf.mxu0
  %3789 = vmatprep.mubr.f32.mxu0 0.0
  %3790 = vmatmul.mubr.f32.gmra.mxu0 %v3678
  %v3791 = vpop.f32.mrf.mxu0
  %v3792 = vadd.f32 %v3400, %v3791
  %v3793 = vpop.f32.mrf.mxu0
  %3794 = vmatprep.mubr.f32.mxu0 0.0
  %3795 = vmatmul.mubr.f32.gmra.mxu0 %v3680
  %v3796 = vpop.f32.mrf.mxu0
  %v3797 = vadd.f32 %v3405, %v3796
  %v3798 = vpop.f32.mrf.mxu0
  %3799 = vmatprep.mubr.f32.mxu0 0.0
  %3800 = vmatmul.mubr.f32.gmra.mxu0 %v3682
  %v3801 = vpop.f32.mrf.mxu0
  %v3802 = vadd.f32 %v3410, %v3801
  %v3803 = vpop.f32.mrf.mxu0
  %3804 = vmatprep.mubr.f32.mxu0 0.0
  %3805 = vmatmul.mubr.f32.gmra.mxu0 %v3684
  %v3806 = vpop.f32.mrf.mxu0
  %v3807 = vadd.f32 %v3415, %v3806
  %v3808 = vpop.f32.mrf.mxu0
  %3809 = vmatprep.mubr.f32.mxu0 0.0
  %3810 = vmatmul.mubr.f32.gmra.mxu0 %v3686
  %v3811 = vpop.f32.mrf.mxu0
  %v3812 = vadd.f32 %v3420, %v3811
  %v3813 = vpop.f32.mrf.mxu0
  %3814 = vmatprep.mubr.f32.mxu0 0.0
  %3815 = vmatmul.mubr.f32.gmra.mxu0 %v3688
  %v3816 = vpop.f32.mrf.mxu0
  %v3817 = vadd.f32 %v3425, %v3816
  %v3818 = vpop.f32.mrf.mxu0
  %3819 = vmatprep.mubr.f32.mxu0 0.0
  %3820 = vmatmul.mubr.f32.gmra.mxu0 %v3690
  %v3821 = vpop.f32.mrf.mxu0
  %v3822 = vadd.f32 %v3430, %v3821
  %v3823 = vpop.f32.mrf.mxu0
  %3824 = vmatprep.mubr.f32.mxu0 0.0
  %3825 = vmatmul.mubr.f32.gmra.mxu0 %v3692
  %v3826 = vpop.f32.mrf.mxu0
  %v3827 = vadd.f32 %v3435, %v3826
  %v3828 = vpop.f32.mrf.mxu0
  %3829 = vmatprep.mubr.f32.mxu0 0.0
  %3830 = vmatmul.mubr.f32.gmra.mxu0 %v3694
  %v3831 = vpop.f32.mrf.mxu0
  %v3832 = vadd.f32 %v3440, %v3831
  %v3833 = vpop.f32.mrf.mxu0
  %3834 = vmatprep.mubr.f32.mxu0 0.0
  %3835 = vmatmul.mubr.f32.gmra.mxu0 %v3696
  %v3836 = vpop.f32.mrf.mxu0
  %v3837 = vadd.f32 %v3445, %v3836
  %v3838 = vpop.f32.mrf.mxu0
  %3839 = vmatprep.mubr.f32.mxu0 0.0
  %3840 = vmatmul.mubr.f32.gmra.mxu0 %v3698
  %v3841 = vpop.f32.mrf.mxu0
  %v3842 = vadd.f32 %v3450, %v3841
  %v3843 = vpop.f32.mrf.mxu0
  %3844 = vdwg.mxu0
  %3845 = vrot.lane.b32.xlu0 %v3203, 96
  %v3846 = vpop.permute.xlu0 %3845
  %3847 = vrot.lane.b32.xlu0 %v3204, 96
  %v3848 = vpop.permute.xlu0 %3847
  %3849 = vrot.lane.b32.xlu0 %v3205, 96
  %v3850 = vpop.permute.xlu0 %3849
  %3851 = vrot.lane.b32.xlu0 %v3206, 96
  %v3852 = vpop.permute.xlu0 %3851
  %3853 = vrot.lane.b32.xlu0 %v3207, 96
  %v3854 = vpop.permute.xlu0 %3853
  %3855 = vrot.lane.b32.xlu0 %v3208, 96
  %v3856 = vpop.permute.xlu0 %3855
  %3857 = vrot.lane.b32.xlu0 %v3209, 96
  %v3858 = vpop.permute.xlu0 %3857
  %3859 = vrot.lane.b32.xlu0 %v3210, 96
  %v3860 = vpop.permute.xlu0 %3859
  %3861 = vrot.lane.b32.xlu0 %v3211, 96
  %v3862 = vpop.permute.xlu0 %3861
  %3863 = vrot.lane.b32.xlu0 %v3212, 96
  %v3864 = vpop.permute.xlu0 %3863
  %3865 = vrot.lane.b32.xlu0 %v3213, 96
  %v3866 = vpop.permute.xlu0 %3865
  %3867 = vrot.lane.b32.xlu0 %v3214, 96
  %v3868 = vpop.permute.xlu0 %3867
  %3869 = vrot.lane.b32.xlu0 %v3215, 96
  %v3870 = vpop.permute.xlu0 %3869
  %3871 = vrot.lane.b32.xlu0 %v3216, 96
  %v3872 = vpop.permute.xlu0 %3871
  %3873 = vrot.lane.b32.xlu0 %v3217, 96
  %v3874 = vpop.permute.xlu0 %3873
  %3875 = vrot.lane.b32.xlu0 %v3218, 96
  %v3876 = vpop.permute.xlu0 %3875
  %3877 = vrot.lane.b32.xlu0 %v3195, 124
  %v3878 = vpop.permute.xlu0 %3877
  %3879 = vrot.lane.b32.xlu0 %v3200, 124
  %v3880 = vpop.permute.xlu0 %3879
  %v3883 = vsel %vm3275, %v3846, 0
  %v3885 = vsel %vm3275, %v3848, 0
  %v3887 = vsel %vm3275, %v3850, 0
  %v3889 = vsel %vm3275, %v3852, 0
  %v3891 = vsel %vm3275, %v3854, 0
  %v3893 = vsel %vm3275, %v3856, 0
  %v3895 = vsel %vm3275, %v3858, 0
  %v3897 = vsel %vm3275, %v3860, 0
  %v3899 = vsel %vm3275, %v3862, 0
  %v3901 = vsel %vm3275, %v3864, 0
  %v3903 = vsel %vm3275, %v3866, 0
  %v3905 = vsel %vm3275, %v3868, 0
  %v3907 = vsel %vm3275, %v3870, 0
  %v3909 = vsel %vm3275, %v3872, 0
  %v3911 = vsel %vm3275, %v3874, 0
  %v3913 = vsel %vm3275, %v3876, 0
  %3915 = vmatprep.subr.mxu0 0.0
  %3916 = vmatpush1.msra.mxu0 0.0
  %3917 = vmatprep.subr.mxu0 0.0
  %3918 = vmatpush1.msra.mxu0 0.0
  %3919 = vmatprep.subr.mxu0 0.0
  %3920 = vmatpush1.msra.mxu0 0.0
  %3921 = vmatprep.subr.mxu0 0.0
  %3922 = vmatpush1.msra.mxu0 0.0
  %3923 = vmatprep.subr.mxu0 0.0
  %3924 = vmatpush1.msra.mxu0 0.0
  %3925 = vmatprep.subr.mxu0 0.0
  %3926 = vmatpush1.msra.mxu0 0.0
  %3927 = vmatprep.subr.mxu0 0.0
  %3928 = vmatpush1.msra.mxu0 0.0
  %3929 = vmatprep.subr.mxu0 0.0
  %3930 = vmatpush1.msra.mxu0 0.0
  %3931 = vmatprep.subr.mxu0 0.0
  %3932 = vmatpush1.msra.mxu0 0.0
  %3933 = vmatprep.subr.mxu0 0.0
  %3934 = vmatpush1.msra.mxu0 0.0
  %3935 = vmatprep.subr.mxu0 0.0
  %3936 = vmatpush1.msra.mxu0 0.0
  %3937 = vmatprep.subr.mxu0 0.0
  %3938 = vmatpush1.msra.mxu0 0.0
  %3939 = vmatprep.subr.mxu0 0.0
  %3940 = vmatpush1.msra.mxu0 0.0
  %3941 = vmatprep.subr.mxu0 0.0
  %3942 = vmatpush1.msra.mxu0 0.0
  %3943 = vmatprep.subr.mxu0 0.0
  %3944 = vmatpush1.msra.mxu0 %v3880
  %3945 = vmatprep.subr.mxu0 0.0
  %3946 = vmatpush1.msra.mxu0 %v3878
  %3947 = vmatprep.subr.mxu0 0.0
  %3948 = vmatpush2.msra.mxu0 0.0
  %3949 = vmatprep.subr.mxu0 0.0
  %3950 = vmatpush2.msra.mxu0 0.0
  %3951 = vmatprep.subr.mxu0 0.0
  %3952 = vmatpush2.msra.mxu0 0.0
  %3953 = vmatprep.subr.mxu0 0.0
  %3954 = vmatpush2.msra.mxu0 0.0
  %3955 = vmatprep.subr.mxu0 0.0
  %3956 = vmatpush2.msra.mxu0 0.0
  %3957 = vmatprep.subr.mxu0 0.0
  %3958 = vmatpush2.msra.mxu0 0.0
  %3959 = vmatprep.subr.mxu0 0.0
  %3960 = vmatpush2.msra.mxu0 0.0
  %3961 = vmatprep.subr.mxu0 0.0
  %3962 = vmatpush2.msra.mxu0 0.0
  %3963 = vmatprep.subr.mxu0 0.0
  %3964 = vmatpush2.msra.mxu0 0.0
  %3965 = vmatprep.subr.mxu0 0.0
  %3966 = vmatpush2.msra.mxu0 0.0
  %3967 = vmatprep.subr.mxu0 0.0
  %3968 = vmatpush2.msra.mxu0 0.0
  %3969 = vmatprep.subr.mxu0 0.0
  %3970 = vmatpush2.msra.mxu0 0.0
  %3971 = vmatprep.subr.mxu0 0.0
  %3972 = vmatpush2.msra.mxu0 0.0
  %3973 = vmatprep.subr.mxu0 0.0
  %3974 = vmatpush2.msra.mxu0 0.0
  %3975 = vmatprep.subr.mxu0 0.0
  %3976 = vmatpush2.msra.mxu0 0.0
  %3977 = vmatprep.subr.mxu0 0.0
  %3978 = vmatpush2.msra.mxu0 0.0
  %3979 = vmatprep.mubr.f32.mxu0 0.0
  %3980 = vmatmul.mubr.f32.gmra.mxu0 %v3883
  %v3981 = vpop.f32.mrf.mxu0
  %v3982 = vadd.f32 %v3590, %v3981
  %v3983 = vpop.f32.mrf.mxu0
  %3984 = vmatprep.mubr.f32.mxu0 0.0
  %3985 = vmatmul.mubr.f32.gmra.mxu0 %v3885
  %v3986 = vpop.f32.mrf.mxu0
  %v3987 = vadd.f32 %v3595, %v3986
  %v3988 = vpop.f32.mrf.mxu0
  %3989 = vmatprep.mubr.f32.mxu0 0.0
  %3990 = vmatmul.mubr.f32.gmra.mxu0 %v3887
  %v3991 = vpop.f32.mrf.mxu0
  %v3992 = vadd.f32 %v3600, %v3991
  %v3993 = vpop.f32.mrf.mxu0
  %3994 = vmatprep.mubr.f32.mxu0 0.0
  %3995 = vmatmul.mubr.f32.gmra.mxu0 %v3889
  %v3996 = vpop.f32.mrf.mxu0
  %v3997 = vadd.f32 %v3605, %v3996
  %v3998 = vpop.f32.mrf.mxu0
  %3999 = vmatprep.mubr.f32.mxu0 0.0
  %4000 = vmatmul.mubr.f32.gmra.mxu0 %v3891
  %v4001 = vpop.f32.mrf.mxu0
  %v4002 = vadd.f32 %v3610, %v4001
  %v4003 = vpop.f32.mrf.mxu0
  %4004 = vmatprep.mubr.f32.mxu0 0.0
  %4005 = vmatmul.mubr.f32.gmra.mxu0 %v3893
  %v4006 = vpop.f32.mrf.mxu0
  %v4007 = vadd.f32 %v3615, %v4006
  %v4008 = vpop.f32.mrf.mxu0
  %4009 = vmatprep.mubr.f32.mxu0 0.0
  %4010 = vmatmul.mubr.f32.gmra.mxu0 %v3895
  %v4011 = vpop.f32.mrf.mxu0
  %v4012 = vadd.f32 %v3620, %v4011
  %v4013 = vpop.f32.mrf.mxu0
  %4014 = vmatprep.mubr.f32.mxu0 0.0
  %4015 = vmatmul.mubr.f32.gmra.mxu0 %v3897
  %v4016 = vpop.f32.mrf.mxu0
  %v4017 = vadd.f32 %v3625, %v4016
  %v4018 = vpop.f32.mrf.mxu0
  %4019 = vmatprep.mubr.f32.mxu0 0.0
  %4020 = vmatmul.mubr.f32.gmra.mxu0 %v3899
  %v4021 = vpop.f32.mrf.mxu0
  %v4022 = vadd.f32 %v3630, %v4021
  %v4023 = vpop.f32.mrf.mxu0
  %4024 = vmatprep.mubr.f32.mxu0 0.0
  %4025 = vmatmul.mubr.f32.gmra.mxu0 %v3901
  %v4026 = vpop.f32.mrf.mxu0
  %v4027 = vadd.f32 %v3635, %v4026
  %v4028 = vpop.f32.mrf.mxu0
  %4029 = vmatprep.mubr.f32.mxu0 0.0
  %4030 = vmatmul.mubr.f32.gmra.mxu0 %v3903
  %v4031 = vpop.f32.mrf.mxu0
  %v4032 = vadd.f32 %v3640, %v4031
  %v4033 = vpop.f32.mrf.mxu0
  %4034 = vmatprep.mubr.f32.mxu0 0.0
  %4035 = vmatmul.mubr.f32.gmra.mxu0 %v3905
  %v4036 = vpop.f32.mrf.mxu0
  %v4037 = vadd.f32 %v3645, %v4036
  %v4038 = vpop.f32.mrf.mxu0
  %4039 = vmatprep.mubr.f32.mxu0 0.0
  %4040 = vmatmul.mubr.f32.gmra.mxu0 %v3907
  %v4041 = vpop.f32.mrf.mxu0
  %v4042 = vadd.f32 %v3650, %v4041
  %v4043 = vpop.f32.mrf.mxu0
  %4044 = vmatprep.mubr.f32.mxu0 0.0
  %4045 = vmatmul.mubr.f32.gmra.mxu0 %v3909
  %v4046 = vpop.f32.mrf.mxu0
  %v4047 = vadd.f32 %v3655, %v4046
  %v4048 = vpop.f32.mrf.mxu0
  %4049 = vmatprep.mubr.f32.mxu0 0.0
  %4050 = vmatmul.mubr.f32.gmra.mxu0 %v3911
  %v4051 = vpop.f32.mrf.mxu0
  %v4052 = vadd.f32 %v3660, %v4051
  %v4053 = vpop.f32.mrf.mxu0
  %4054 = vmatprep.mubr.f32.mxu0 0.0
  %4055 = vmatmul.mubr.f32.gmra.mxu0 %v3913
  %v4056 = vpop.f32.mrf.mxu0
  %v4057 = vadd.f32 %v3665, %v4056
  %v4058 = vpop.f32.mrf.mxu0
  %4059 = vdwg.mxu0
  %v4060 = vadd.f32 %v3767, %v3982
  %v4061 = vadd.f32 %v3772, %v3987
  %v4062 = vadd.f32 %v3777, %v3992
  %v4063 = vadd.f32 %v3782, %v3997
  %v4064 = vadd.f32 %v3787, %v4002
  %v4065 = vadd.f32 %v3792, %v4007
  %v4066 = vadd.f32 %v3797, %v4012
  %v4067 = vadd.f32 %v3802, %v4017
  %v4068 = vadd.f32 %v3807, %v4022
  %v4069 = vadd.f32 %v3812, %v4027
  %v4070 = vadd.f32 %v3817, %v4032
  %v4071 = vadd.f32 %v3822, %v4037
  %v4072 = vadd.f32 %v3827, %v4042
  %v4073 = vadd.f32 %v3832, %v4047
  %v4074 = vadd.f32 %v3837, %v4052
  %v4075 = vadd.f32 %v3842, %v4057
  %4076 = vset.pattern.permute.xlu0 64
  %4077 = vperm.xlu0 %4076, %v3203
  %v4078 = vpop.permute.xlu0 %4077
  %4080 = vset.pattern.permute.xlu0 64
  %4081 = vperm.xlu0 %4080, %v3204
  %v4082 = vpop.permute.xlu0 %4081
  %4084 = vset.pattern.permute.xlu0 64
  %4085 = vperm.xlu0 %4084, %v3205
  %v4086 = vpop.permute.xlu0 %4085
  %4088 = vset.pattern.permute.xlu0 64
  %4089 = vperm.xlu0 %4088, %v3206
  %v4090 = vpop.permute.xlu0 %4089
  %4092 = vset.pattern.permute.xlu0 64
  %4093 = vperm.xlu0 %4092, %v3207
  %v4094 = vpop.permute.xlu0 %4093
  %4096 = vset.pattern.permute.xlu0 64
  %4097 = vperm.xlu0 %4096, %v3208
  %v4098 = vpop.permute.xlu0 %4097
  %4100 = vset.pattern.permute.xlu0 64
  %4101 = vperm.xlu0 %4100, %v3209
  %v4102 = vpop.permute.xlu0 %4101
  %4104 = vset.pattern.permute.xlu0 64
  %4105 = vperm.xlu0 %4104, %v3210
  %v4106 = vpop.permute.xlu0 %4105
  %4108 = vset.pattern.permute.xlu0 64
  %4109 = vperm.xlu0 %4108, %v3211
  %v4110 = vpop.permute.xlu0 %4109
  %4112 = vset.pattern.permute.xlu0 64
  %4113 = vperm.xlu0 %4112, %v3212
  %v4114 = vpop.permute.xlu0 %4113
  %4116 = vset.pattern.permute.xlu0 64
  %4117 = vperm.xlu0 %4116, %v3213
  %v4118 = vpop.permute.xlu0 %4117
  %4120 = vset.pattern.permute.xlu0 64
  %4121 = vperm.xlu0 %4120, %v3214
  %v4122 = vpop.permute.xlu0 %4121
  %4124 = vset.pattern.permute.xlu0 64
  %4125 = vperm.xlu0 %4124, %v3215
  %v4126 = vpop.permute.xlu0 %4125
  %4128 = vset.pattern.permute.xlu0 64
  %4129 = vperm.xlu0 %4128, %v3216
  %v4130 = vpop.permute.xlu0 %4129
  %4132 = vset.pattern.permute.xlu0 64
  %4133 = vperm.xlu0 %4132, %v3217
  %v4134 = vpop.permute.xlu0 %4133
  %4136 = vset.pattern.permute.xlu0 64
  %4137 = vperm.xlu0 %4136, %v3218
  %v4138 = vpop.permute.xlu0 %4137
  %v4140 = vadd.f32 %v4060, %v4078
  %v4141 = vadd.f32 %v4061, %v4082
  %v4142 = vadd.f32 %v4062, %v4086
  %v4143 = vadd.f32 %v4063, %v4090
  %v4144 = vadd.f32 %v4064, %v4094
  %v4145 = vadd.f32 %v4065, %v4098
  %v4146 = vadd.f32 %v4066, %v4102
  %v4147 = vadd.f32 %v4067, %v4106
  %v4148 = vadd.f32 %v4068, %v4110
  %v4149 = vadd.f32 %v4069, %v4114
  %v4150 = vadd.f32 %v4070, %v4118
  %v4151 = vadd.f32 %v4071, %v4122
  %v4152 = vadd.f32 %v4072, %v4126
  %v4153 = vadd.f32 %v4073, %v4130
  %v4154 = vadd.f32 %v4074, %v4134
  %v4155 = vadd.f32 %v4075, %v4138
  %v4156 = vmax.f32 %v4140, 0.0
  %v4157 = vmax.f32 %v4141, 0.0
  %v4158 = vmax.f32 %v4142, 0.0
  %v4159 = vmax.f32 %v4143, 0.0
  %v4160 = vmax.f32 %v4144, 0.0
  %v4161 = vmax.f32 %v4145, 0.0
  %v4162 = vmax.f32 %v4146, 0.0
  %v4163 = vmax.f32 %v4147, 0.0
  %v4164 = vmax.f32 %v4148, 0.0
  %v4165 = vmax.f32 %v4149, 0.0
  %v4166 = vmax.f32 %v4150, 0.0
  %v4167 = vmax.f32 %v4151, 0.0
  %v4168 = vmax.f32 %v4152, 0.0
  %v4169 = vmax.f32 %v4153, 0.0
  %v4170 = vmax.f32 %v4154, 0.0
  %v4171 = vmax.f32 %v4155, 0.0
  %v4172 = vld [vmem:[%s4] sm:$0x3]
  %v4173 = vld [vmem:[%s4 + $0x2] sm:$0x3]
  %4175 = vset.pattern.permute.xlu0 0
  %4176 = vperm.xlu0 %4175, %v4173
  %v4177 = vpop.permute.xlu0 %4176
  %v4180 = vunpack.c.l.s4 269488144
  %v4181 = vunpack.c.0.s8 %v4180
  %v4182 = vlaneseq
  %v4183 = vshrl.u32 %v4182, 7
  %v4184 = vsub.s32 %v4181, %v4183
  %v4185 = vrot.slane %v4177, %v4184
  %4186 = vmatprep.subr.mxu0 0.0
  %4187 = vmatpush1.msra.mxu0 %v4171
  %4188 = vmatprep.subr.mxu0 0.0
  %4189 = vmatpush1.msra.mxu0 %v4170
  %4190 = vmatprep.subr.mxu0 0.0
  %4191 = vmatpush1.msra.mxu0 %v4169
  %4192 = vmatprep.subr.mxu0 0.0
  %4193 = vmatpush1.msra.mxu0 %v4168
  %4194 = vmatprep.subr.mxu0 0.0
  %4195 = vmatpush1.msra.mxu0 %v4167
  %4196 = vmatprep.subr.mxu0 0.0
  %4197 = vmatpush1.msra.mxu0 %v4166
  %4198 = vmatprep.subr.mxu0 0.0
  %4199 = vmatpush1.msra.mxu0 %v4165
  %4200 = vmatprep.subr.mxu0 0.0
  %4201 = vmatpush1.msra.mxu0 %v4164
  %4202 = vmatprep.subr.mxu0 0.0
  %4203 = vmatpush1.msra.mxu0 %v4163
  %4204 = vmatprep.subr.mxu0 0.0
  %4205 = vmatpush1.msra.mxu0 %v4162
  %4206 = vmatprep.subr.mxu0 0.0
  %4207 = vmatpush1.msra.mxu0 %v4161
  %4208 = vmatprep.subr.mxu0 0.0
  %4209 = vmatpush1.msra.mxu0 %v4160
  %4210 = vmatprep.subr.mxu0 0.0
  %4211 = vmatpush1.msra.mxu0 %v4159
  %4212 = vmatprep.subr.mxu0 0.0
  %4213 = vmatpush1.msra.mxu0 %v4158
  %4214 = vmatprep.subr.mxu0 0.0
  %4215 = vmatpush1.msra.mxu0 %v4157
  %4216 = vmatprep.subr.mxu0 0.0
  %4217 = vmatpush1.msra.mxu0 %v4156
  %4218 = vmatprep.subr.mxu0 0.0
  %4219 = vmatpush2.msra.mxu0 0.0
  %4220 = vmatprep.subr.mxu0 0.0
  %4221 = vmatpush2.msra.mxu0 0.0
  %4222 = vmatprep.subr.mxu0 0.0
  %4223 = vmatpush2.msra.mxu0 0.0
  %4224 = vmatprep.subr.mxu0 0.0
  %4225 = vmatpush2.msra.mxu0 0.0
  %4226 = vmatprep.subr.mxu0 0.0
  %4227 = vmatpush2.msra.mxu0 0.0
  %4228 = vmatprep.subr.mxu0 0.0
  %4229 = vmatpush2.msra.mxu0 0.0
  %4230 = vmatprep.subr.mxu0 0.0
  %4231 = vmatpush2.msra.mxu0 0.0
  %4232 = vmatprep.subr.mxu0 0.0
  %4233 = vmatpush2.msra.mxu0 0.0
  %4234 = vmatprep.subr.mxu0 0.0
  %4235 = vmatpush2.msra.mxu0 0.0
  %4236 = vmatprep.subr.mxu0 0.0
  %4237 = vmatpush2.msra.mxu0 0.0
  %4238 = vmatprep.subr.mxu0 0.0
  %4239 = vmatpush2.msra.mxu0 0.0
  %4240 = vmatprep.subr.mxu0 0.0
  %4241 = vmatpush2.msra.mxu0 0.0
  %4242 = vmatprep.subr.mxu0 0.0
  %4243 = vmatpush2.msra.mxu0 0.0
  %4244 = vmatprep.subr.mxu0 0.0
  %4245 = vmatpush2.msra.mxu0 0.0
  %4246 = vmatprep.subr.mxu0 0.0
  %4247 = vmatpush2.msra.mxu0 0.0
  %4248 = vmatprep.subr.mxu0 0.0
  %4249 = vmatpush2.msra.mxu0 0.0
  %4250 = vmatprep.mubr.f32.mxu0 0.0
  %4251 = vmatmul.mubr.f32.gmra.mxu0 %v4172
  %v4252 = vpop.f32.mrf.mxu0
  %v4253 = vadd.f32 %v4185, %v4252
  %v4254 = vpop.f32.mrf.mxu0
  %4255 = vdwg.mxu0
  %vm4256 = vcmask 9216
  %4257 = vst.msk [vmem:[%s5] sm:$0x3] %vm4256, %v4253
  // Predicated region
  $region22: #{membership_classifier_forward.1} parent=0 // pred_check
    _
  $region23: #{membership_classifier_forward.1} parent=0 // pred_check_branch
    %4259 = sbr.rel (0) target = $region25
  $region24: #{membership_classifier_forward.1} parent=0 // pred_region
    _
  $region25: #{membership_classifier_forward.1} parent=0 // pred_fallthru
    _
  // Predicated region
  $region26: #{membership_classifier_forward.1} parent=0 // pred_check
    _
  $region27: #{membership_classifier_forward.1} parent=0 // pred_check_branch
    %4261 = sbr.rel (0) target = $region29
  $region28: #{membership_classifier_forward.1} parent=0 // pred_region
    _
  $region29: #{membership_classifier_forward.1} parent=0 // pred_fallthru
    _

</llo_original>
